<compile_context>
chip_gen: v7x
topology: tpu7x:2x2x1
jax: 0.10.0
libtpu: 0.0.40
codegen_flags: <defaults>
</compile_context>

<pallas_src>
import math
import functools

import jax
import jax.numpy as jnp
from jax import lax
from jax.experimental import pallas as pl
from jax.experimental.pallas import tpu as pltpu

# Finite "-inf": avoids NaN rows for fully-masked queries and is safe under any
# score down-cast; identical to -inf whenever at least one key is visible.
_NEG_INF = -1e30

_PARAM_NAMES = ("wqkv", "bqkv", "wo", "bo", "ln1g", "ln1b",
                "w1", "b1", "w2", "b2", "ln2g", "ln2b")


def _gelu(x):
    # exact formula from FeedForward.gelu
    # TODO(synk): on v6e/v7x this could run in bf16 (bf16 VPU/EUP); kept f32 for accuracy.
    return 0.5 * x * (1.0 + jnp.tanh(math.sqrt(2.0 / math.pi) * (x + 0.044715 * x * x * x)))


def _layernorm(x, g, b, eps=1e-5):
    mu = jnp.mean(x, axis=-1, keepdims=True)
    var = jnp.mean((x - mu) ** 2, axis=-1, keepdims=True)
    return (x - mu) * lax.rsqrt(var + eps) * g + b


def _stack_kernel(n_heads, batch_tile,
                  x_ref, pmask_ref,
                  wqkv_ref, bqkv_ref, wo_ref, bo_ref, ln1g_ref, ln1b_ref,
                  w1_ref, b1_ref, w2_ref, b2_ref, ln2g_ref, ln2b_ref,
                  out_ref, bias_ref, keep_ref):
    """One (batch-tile, layer) grid step of the fused transformer stack."""
    layer = pl.program_id(1)
    Bt = batch_tile
    H = n_heads

    # Layer 0: seed the resident residual stream and hoist all mask construction
    # out of the layer loop into persistent scratch (bias_ref / keep_ref).
    @pl.when(layer == 0)
    def _():
        out_ref[...] = x_ref[...]
        pmask = pmask_ref[...]                         # (Bt, 1, S), 1.0 = padding
        S = pmask.shape[-1]
        key_pad = pmask > 0.5
        row = lax.broadcasted_iota(jnp.int32, (S, S), 0)
        col = lax.broadcasted_iota(jnp.int32, (S, S), 1)
        mask = (col > row)[None, :, :] | key_pad        # causal OR key-padding, (Bt, S, S)
        bias_ref[...] = jnp.where(mask, _NEG_INF, 0.0).astype(jnp.float32)
        # 0.0 where the whole sequence is padding (masked_fill_ after softmax).
        keep_ref[...] = jnp.where(jnp.all(key_pad, axis=-1, keepdims=True),
                                  0.0, 1.0).astype(jnp.float32)

    x = out_ref[...]                                    # (Bt, S, D) f32 residual stream
    _, S, D = x.shape
    hd = D // H

    # -- fused QKV projection: ONE lane-dense (Bt*S, D) x (D, 3D) matmul ------
    # (1/sqrt(hd) is pre-folded into the q columns of wqkv/bqkv at pack time).
    xf = x.reshape(Bt * S, D).astype(jnp.bfloat16)
    qkv = jnp.dot(xf, wqkv_ref[0], preferred_element_type=jnp.float32) + bqkv_ref[0]

    # Head split: (Bt*S, 3D) -> (3H, Bt*S, hd). Minor-dim split + one einshape
    # relayout (done in f32, cast to bf16 once afterwards).
    qkv3 = qkv.reshape(Bt * S, 3 * H, hd)
    g_all = pltpu.einshape("sgd->gsd", qkv3).astype(jnp.bfloat16)   # (3H, Bt*S, hd)
    q_all = g_all[0:H]
    k_all = g_all[H:2 * H]
    v_all = g_all[2 * H:3 * H]

    bias = bias_ref[...]                                # (Bt, S, S) additive mask
    keep = keep_ref[...]                                # (Bt, 1, 1)

    # -- attention: head-batched 3D einsums per batch row of the tile ---------
    # Bt is small (<= 4); the static loop only covers the per-sequence masked
    # softmax, all projections stay batched over Bt*S rows.
    # TODO(synk): switch to fully 4D-batched attention (and flash-style query/KV
    # tiling for S >= ~512 on v7x / ~1024 on v5e/v6e) for large Bt / long S.
    att_rows = []
    for b in range(Bt):
        lo, hi = b * S, (b + 1) * S
        q = q_all[:, lo:hi, :]                          # (H, S, hd)
        k = k_all[:, lo:hi, :]
        v = v_all[:, lo:hi, :]
        s = jnp.einsum("hqe,hke->hqk", q, k, preferred_element_type=jnp.float32)
        s = s + bias[b][None, :, :]
        m = jnp.max(s, axis=-1, keepdims=True)
        e = jnp.exp(s - m)
        denom = jnp.sum(e, axis=-1, keepdims=True)
        p = (e * pl.reciprocal(denom, approx=True)).astype(jnp.bfloat16)
        o = jnp.einsum("hqk,hke->hqe", p, v, preferred_element_type=jnp.float32)  # (H,S,hd)
        o = o * keep[b]                                 # zero if whole sequence is padding
        # Merge heads with a single relayout (no per-head concat loop).
        om = pltpu.einshape("hqe->qhe", o).reshape(S, D)
        att_rows.append(om)
    om_all = att_rows[0] if Bt == 1 else jnp.concatenate(att_rows, axis=0)      # (Bt*S, D)

    # ONE full-K output projection over all Bt*S rows.
    attn = jnp.dot(om_all.astype(jnp.bfloat16), wo_ref[0],
                   preferred_element_type=jnp.float32) + bo_ref[0]

    # residual + LayerNorm 1 (float32)
    x1 = _layernorm(x + attn.reshape(Bt, S, D), ln1g_ref[0], ln1b_ref[0])

    # -- feed forward over all Bt*S rows ---------------------------------------
    # TODO(synk): on v7x (64 MiB VMEM) K-tile w1/w2 or drop them to single
    # buffering once D is realistic; also mark x/pmask single-buffered there.
    h1 = _gelu(jnp.dot(x1.reshape(Bt * S, D).astype(jnp.bfloat16), w1_ref[0],
                       preferred_element_type=jnp.float32) + b1_ref[0])
    f = jnp.dot(h1.astype(jnp.bfloat16), w2_ref[0],
                preferred_element_type=jnp.float32) + b2_ref[0]

    # residual + LayerNorm 2 (float32), write back into the resident stream
    out_ref[...] = _layernorm(x1 + f.reshape(Bt, S, D), ln2g_ref[0], ln2b_ref[0])


def transformer_stack_apply(x, pmask_f, packed, n_heads, batch_tile=None,
                            vmem_limit_bytes=64 * 1024 * 1024):
    """x: (B, S, D) f32, pmask_f: (B, 1, S) f32 (1.0 = padding). Runs ALL layers."""
    B, S, D = x.shape
    L = packed["wqkv"].shape[0]
    if batch_tile is None:
        batch_tile = next(bt for bt in (4, 2, 1) if B % bt == 0)
    Bt = batch_tile
    assert B % Bt == 0

    weights = [packed[name] for name in _PARAM_NAMES]

    def w_spec(a):
        nd = a.ndim
        return pl.BlockSpec((1,) + a.shape[1:],
                            lambda b, l, _nd=nd: (l,) + (0,) * (_nd - 1))

    in_specs = ([pl.BlockSpec((Bt, S, D), lambda b, l: (b, 0, 0)),
                 pl.BlockSpec((Bt, 1, S), lambda b, l: (b, 0, 0))]
                + [w_spec(a) for a in weights])
    out_spec = pl.BlockSpec((Bt, S, D), lambda b, l: (b, 0, 0))

    kernel = functools.partial(_stack_kernel, n_heads, Bt)
    return pl.pallas_call(
        kernel,
        out_shape=jax.ShapeDtypeStruct((B, S, D), jnp.float32),
        grid=(B // Bt, L),
        in_specs=in_specs,
        out_specs=out_spec,
        scratch_shapes=[pltpu.VMEM((Bt, S, S), jnp.float32),   # additive mask bias
                        pltpu.VMEM((Bt, 1, 1), jnp.float32)],  # all-padding keep flag
        compiler_params=pltpu.CompilerParams(
            # batch tiles are megacore-parallel; the layer axis carries the
            # residual stream in the resident output block, so it stays sequential.
            dimension_semantics=("parallel", "arbitrary"),
            vmem_limit_bytes=vmem_limit_bytes),
    )(x, pmask_f, *weights)


def init_params(key, n_layers, vocab, n_pos, D, padding_idx):
    keys = jax.random.split(key, 2 + n_layers)
    emb = jax.random.normal(keys[0], (vocab, D), jnp.float32) * 0.02
    emb = emb.at[padding_idx].set(0.0)
    pos = jax.random.normal(keys[1], (n_pos + 1, D), jnp.float32) * 0.02
    pos = pos.at[0].set(0.0)
    layers = []
    for l in range(n_layers):
        lk = jax.random.split(keys[2 + l], 8)
        layers.append(dict(
            wqkv=(jax.random.normal(lk[0], (D, 3 * D), jnp.float32) * 0.02),
            bqkv=(jax.random.uniform(lk[1], (1, 3 * D), jnp.float32, -1.0, 1.0) / math.sqrt(D)),
            wo=(jax.random.normal(lk[2], (D, D), jnp.float32) * 0.02),
            bo=(jax.random.uniform(lk[3], (1, D), jnp.float32, -1.0, 1.0) / math.sqrt(D)),
            ln1g=jnp.ones((1, D), jnp.float32), ln1b=jnp.zeros((1, D), jnp.float32),
            w1=(jax.random.normal(lk[4], (D, 4 * D), jnp.float32) * 0.02),
            b1=(jax.random.uniform(lk[5], (1, 4 * D), jnp.float32, -1.0, 1.0) / math.sqrt(D)),
            w2=(jax.random.normal(lk[6], (4 * D, D), jnp.float32) * 0.02),
            b2=(jax.random.uniform(lk[7], (1, D), jnp.float32, -1.0, 1.0) / math.sqrt(4 * D)),
            ln2g=jnp.ones((1, D), jnp.float32), ln2b=jnp.zeros((1, D), jnp.float32),
        ))
    return emb, pos, layers


def pack_layer_params(layers, n_heads):
    """Stack per-layer params with a leading layer axis.

    The fused (D, 3D) QKV weight stays lane-dense; the 1/sqrt(hd) attention scale
    is folded into the q columns (weights + bias) so the kernel never rescales.
    Matmul weights are stored bf16 (accumulation is f32 in the kernel); biases /
    LayerNorm params stay f32.
    """
    D = layers[0]["wqkv"].shape[0]
    hd = D // n_heads
    scale = 1.0 / math.sqrt(hd)
    col_scale = jnp.concatenate([jnp.full((D,), scale, jnp.float32),
                                 jnp.ones((2 * D,), jnp.float32)])      # (3D,)

    per_name = {name: [] for name in _PARAM_NAMES}
    for p in layers:
        per_name["wqkv"].append((p["wqkv"] * col_scale[None, :]).astype(jnp.bfloat16))
        per_name["bqkv"].append(p["bqkv"] * col_scale[None, :])
        per_name["wo"].append(p["wo"].astype(jnp.bfloat16))
        per_name["bo"].append(p["bo"])
        per_name["ln1g"].append(p["ln1g"])
        per_name["ln1b"].append(p["ln1b"])
        per_name["w1"].append(p["w1"].astype(jnp.bfloat16))
        per_name["b1"].append(p["b1"])
        per_name["w2"].append(p["w2"].astype(jnp.bfloat16))
        per_name["b2"].append(p["b2"])
        per_name["ln2g"].append(p["ln2g"])
        per_name["ln2b"].append(p["ln2b"])
    return {name: jnp.stack(vals, axis=0) for name, vals in per_name.items()}


def transformer_module_forward(ids, emb, pos_emb, packed, padding_idx, n_heads):
    """Equivalent of TransformerModule.forward(x) with enc_contexts=[] (eval mode)."""
    pad_mask = (ids == padding_idx)                                 # (B, S) bool
    positions = jnp.cumsum((~pad_mask).astype(jnp.int32), axis=-1)
    positions = jnp.where(pad_mask, 0, positions)                   # pos padding_idx = 0
    D = emb.shape[1]
    # TODO(synk): token/position embedding gathers stay in plain JAX/XLA (no clean
    # tiny-kernel win for a gather at these sizes).
    x = emb[ids] * math.sqrt(D) + pos_emb[positions]
    # embed_dropout / dropout / attn_dropout / ff_dropout: identity in eval mode
    pmask_f = pad_mask.astype(jnp.float32)[:, None, :]              # (B, 1, S)
    out = transformer_stack_apply(x, pmask_f, packed, n_heads)
    return out, pad_mask


if __name__ == "__main__":
    B, S, D, H = 2, 8, 32, 4
    vocab, n_pos, pad_idx, n_layers = 50, 16, 0, 2

    key = jax.random.PRNGKey(0)
    pkey, ikey = jax.random.split(key)
    emb, pos_emb, layers = init_params(pkey, n_layers, vocab, n_pos, D, pad_idx)
    packed = pack_layer_params(layers, H)

    ids = jax.random.randint(ikey, (B, S), 1, vocab)   # non-padding tokens
    ids = ids.at[1, S - 2:].set(pad_idx)               # pad the tail of sequence 1

    out, pmask = transformer_module_forward(ids, emb, pos_emb, packed, pad_idx, H)
    out = jax.block_until_ready(out)

    assert out.shape == (B, S, D)
    assert pmask.shape == (B, S)
    assert bool(jnp.all(jnp.isfinite(out)))
    print("KERNEL_OK")
</pallas_src>

<mosaic_0001>
module attributes {stable_mosaic.version = 11 : i64} {
  func.func @_stack_kernel(%arg0: i32, %arg1: i32, %arg2: memref<2x8x32xf32, #tpu.memory_space<vmem>>, %arg3: memref<2x1x8xf32, #tpu.memory_space<vmem>>, %arg4: memref<1x32x96xbf16, #tpu.memory_space<vmem>>, %arg5: memref<1x1x96xf32, #tpu.memory_space<vmem>>, %arg6: memref<1x32x32xbf16, #tpu.memory_space<vmem>>, %arg7: memref<1x1x32xf32, #tpu.memory_space<vmem>>, %arg8: memref<1x1x32xf32, #tpu.memory_space<vmem>>, %arg9: memref<1x1x32xf32, #tpu.memory_space<vmem>>, %arg10: memref<1x32x128xbf16, #tpu.memory_space<vmem>>, %arg11: memref<1x1x128xf32, #tpu.memory_space<vmem>>, %arg12: memref<1x128x32xbf16, #tpu.memory_space<vmem>>, %arg13: memref<1x1x32xf32, #tpu.memory_space<vmem>>, %arg14: memref<1x1x32xf32, #tpu.memory_space<vmem>>, %arg15: memref<1x1x32xf32, #tpu.memory_space<vmem>>, %arg16: memref<2x8x32xf32, #tpu.memory_space<vmem>>, %arg17: memref<2x8x8xf32, #tpu.memory_space<vmem>>, %arg18: memref<2x1x1xf32, #tpu.memory_space<vmem>>) attributes {dimension_semantics = [#tpu.dimension_semantics<parallel>, #tpu.dimension_semantics<arbitrary>], iteration_bounds = array<i64: 1, 2>, scalar_prefetch = 0 : i64, scratch_operands = 2 : i64, tpu.core_type = #tpu.core_type<tc>, window_params = [{transform_indices = @transform_0, window_bounds = array<i64: 2, 8, 32>}, {transform_indices = @transform_1, window_bounds = array<i64: 2, 1, 8>}, {transform_indices = @transform_2, window_bounds = array<i64: 1, 32, 96>}, {transform_indices = @transform_3, window_bounds = array<i64: 1, 1, 96>}, {transform_indices = @transform_4, window_bounds = array<i64: 1, 32, 32>}, {transform_indices = @transform_5, window_bounds = array<i64: 1, 1, 32>}, {transform_indices = @transform_6, window_bounds = array<i64: 1, 1, 32>}, {transform_indices = @transform_7, window_bounds = array<i64: 1, 1, 32>}, {transform_indices = @transform_8, window_bounds = array<i64: 1, 32, 128>}, {transform_indices = @transform_9, window_bounds = array<i64: 1, 1, 128>}, {transform_indices = @transform_10, window_bounds = array<i64: 1, 128, 32>}, {transform_indices = @transform_11, window_bounds = array<i64: 1, 1, 32>}, {transform_indices = @transform_12, window_bounds = array<i64: 1, 1, 32>}, {transform_indices = @transform_13, window_bounds = array<i64: 1, 1, 32>}, {transform_indices = @transform_14, window_bounds = array<i64: 2, 8, 32>}]} {
    %c0_i32 = arith.constant 0 : i32
    %0 = arith.cmpi eq, %arg1, %c0_i32 : i32
    %1 = arith.extui %0 : i1 to i32
    %c0_i32_0 = arith.constant 0 : i32
    %2 = arith.cmpi ne, %1, %c0_i32_0 : i32
    scf.if %2 {
      %c0_73 = arith.constant 0 : index
      %c0_74 = arith.constant 0 : index
      %c0_75 = arith.constant 0 : index
      %177 = vector.load %arg2[%c0_73, %c0_74, %c0_75] : memref<2x8x32xf32, #tpu.memory_space<vmem>>, vector<2x8x32xf32>
      %c0_76 = arith.constant 0 : index
      %c0_77 = arith.constant 0 : index
      %c0_78 = arith.constant 0 : index
      %178 = vector.load %arg16[%c0_76, %c0_77, %c0_78] : memref<2x8x32xf32, #tpu.memory_space<vmem>>, vector<2x8x32xf32>
      tpu.vector_store %arg16[%c0_76, %c0_77, %c0_78], %177 {strides = array<i32>} : memref<2x8x32xf32, #tpu.memory_space<vmem>>, vector<2x8x32xf32>,
      %c0_79 = arith.constant 0 : index
      %c0_80 = arith.constant 0 : index
      %c0_81 = arith.constant 0 : index
      %179 = vector.load %arg3[%c0_79, %c0_80, %c0_81] : memref<2x1x8xf32, #tpu.memory_space<vmem>>, vector<2x1x8xf32>
      %cst_82 = arith.constant 5.000000e-01 : f32
      %180 = vector.broadcast %cst_82 : f32 to vector<2x1x8xf32>
      %181 = arith.cmpf ogt, %179, %180 : vector<2x1x8xf32>
      %182 = tpu.iota {dimensions = array<i32: 0>} : vector<8x8xi32>
      %183 = tpu.iota {dimensions = array<i32: 1>} : vector<8x8xi32>
      %184 = arith.cmpi sgt, %183, %182 : vector<8x8xi32>
      %185 = vector.shape_cast %184 : vector<8x8xi1> to vector<1x8x8xi1>
      %186 = vector.broadcast %185 : vector<1x8x8xi1> to vector<2x8x8xi1>
      %187 = vector.broadcast %181 : vector<2x1x8xi1> to vector<2x8x8xi1>
      %188 = arith.ori %186, %187 : vector<2x8x8xi1>
      %cst_83 = arith.constant -1.000000e+30 : f32
      %cst_84 = arith.constant 0.000000e+00 : f32
      %189 = vector.broadcast %cst_83 : f32 to vector<2x8x8xf32>
      %190 = vector.broadcast %cst_84 : f32 to vector<2x8x8xf32>
      %191 = arith.select %188, %189, %190 : vector<2x8x8xi1>, vector<2x8x8xf32>
      %c0_85 = arith.constant 0 : index
      %c0_86 = arith.constant 0 : index
      %c0_87 = arith.constant 0 : index
      %192 = vector.load %arg17[%c0_85, %c0_86, %c0_87] : memref<2x8x8xf32, #tpu.memory_space<vmem>>, vector<2x8x8xf32>
      tpu.vector_store %arg17[%c0_85, %c0_86, %c0_87], %191 {strides = array<i32>} : memref<2x8x8xf32, #tpu.memory_space<vmem>>, vector<2x8x8xf32>,
      %cst_88 = arith.constant 1.000000e+00 : f32
      %cst_89 = arith.constant 0.000000e+00 : f32
      %193 = vector.broadcast %cst_88 : f32 to vector<2x1x8xf32>
      %194 = vector.broadcast %cst_89 : f32 to vector<2x1x8xf32>
      %195 = arith.select %181, %193, %194 : vector<2x1x8xi1>, vector<2x1x8xf32>
      %cst_90 = arith.constant dense<0x7F800000> : vector<2x1xf32>
      %196 = vector.multi_reduction <minimumf>, %195, %cst_90 [2] : vector<2x1x8xf32> to vector<2x1xf32>
      %cst_91 = arith.constant 0.000000e+00 : f32
      %197 = vector.broadcast %cst_91 : f32 to vector<2x1xf32>
      %198 = arith.cmpf ogt, %196, %197 : vector<2x1xf32>
      %199 = vector.shape_cast %198 : vector<2x1xi1> to vector<2x1x1xi1>
      %cst_92 = arith.constant 0.000000e+00 : f32
      %cst_93 = arith.constant 1.000000e+00 : f32
      %200 = vector.broadcast %cst_92 : f32 to vector<2x1x1xf32>
      %201 = vector.broadcast %cst_93 : f32 to vector<2x1x1xf32>
      %202 = arith.select %199, %200, %201 : vector<2x1x1xi1>, vector<2x1x1xf32>
      %c0_94 = arith.constant 0 : index
      %c0_95 = arith.constant 0 : index
      %c0_96 = arith.constant 0 : index
      %203 = vector.load %arg18[%c0_94, %c0_95, %c0_96] : memref<2x1x1xf32, #tpu.memory_space<vmem>>, vector<2x1x1xf32>
      tpu.vector_store %arg18[%c0_94, %c0_95, %c0_96], %202 {strides = array<i32>} : memref<2x1x1xf32, #tpu.memory_space<vmem>>, vector<2x1x1xf32>,
    } else {
    }
    %c0 = arith.constant 0 : index
    %c0_1 = arith.constant 0 : index
    %c0_2 = arith.constant 0 : index
    %3 = vector.load %arg16[%c0, %c0_1, %c0_2] : memref<2x8x32xf32, #tpu.memory_space<vmem>>, vector<2x8x32xf32>
    %4 = vector.shape_cast %3 : vector<2x8x32xf32> to vector<16x32xf32>
    %5 = arith.truncf %4 : vector<16x32xf32> to vector<16x32xbf16>
    %c0_3 = arith.constant 0 : index
    %c0_4 = arith.constant 0 : index
    %c0_5 = arith.constant 0 : index
    %6 = vector.load %arg4[%c0_3, %c0_4, %c0_5] : memref<1x32x96xbf16, #tpu.memory_space<vmem>>, vector<1x32x96xbf16>
    %7 = vector.shape_cast %6 : vector<1x32x96xbf16> to vector<32x96xbf16>
    %cst = arith.constant dense<0.000000e+00> : vector<16x96xf32>
    %8 = tpu.matmul %5, %7, %cst {dimension_numbers = #tpu.dot_dimension_numbers<[1], [0], [0], [1], [0, 0, 1, 1], [], []>} : vector<16x32xbf16>, vector<32x96xbf16>, vector<16x96xf32> -> vector<16x96xf32>
    %c0_6 = arith.constant 0 : index
    %c0_7 = arith.constant 0 : index
    %c0_8 = arith.constant 0 : index
    %9 = vector.load %arg5[%c0_6, %c0_7, %c0_8] : memref<1x1x96xf32, #tpu.memory_space<vmem>>, vector<1x1x96xf32>
    %10 = vector.shape_cast %9 : vector<1x1x96xf32> to vector<1x96xf32>
    %11 = vector.broadcast %10 : vector<1x96xf32> to vector<16x96xf32>
    %12 = arith.addf %8, %11 : vector<16x96xf32>
    %13 = vector.shape_cast %12 : vector<16x96xf32> to vector<16x12x8xf32>
    %14 = tpu.transpose %13, [1, 0, 2] : vector<16x12x8xf32> -> vector<12x16x8xf32>
    %15 = arith.truncf %14 : vector<12x16x8xf32> to vector<12x16x8xbf16>
    %16 = vector.extract_strided_slice %15 {offsets = [0, 0, 0], sizes = [4, 16, 8], strides = [1, 1, 1]} : vector<12x16x8xbf16> to vector<4x16x8xbf16>
    %17 = vector.extract_strided_slice %15 {offsets = [4, 0, 0], sizes = [4, 16, 8], strides = [1, 1, 1]} : vector<12x16x8xbf16> to vector<4x16x8xbf16>
    %18 = vector.extract_strided_slice %15 {offsets = [8, 0, 0], sizes = [4, 16, 8], strides = [1, 1, 1]} : vector<12x16x8xbf16> to vector<4x16x8xbf16>
    %c0_9 = arith.constant 0 : index
    %c0_10 = arith.constant 0 : index
    %c0_11 = arith.constant 0 : index
    %19 = vector.load %arg17[%c0_9, %c0_10, %c0_11] : memref<2x8x8xf32, #tpu.memory_space<vmem>>, vector<2x8x8xf32>
    %c0_12 = arith.constant 0 : index
    %c0_13 = arith.constant 0 : index
    %c0_14 = arith.constant 0 : index
    %20 = vector.load %arg18[%c0_12, %c0_13, %c0_14] : memref<2x1x1xf32, #tpu.memory_space<vmem>>, vector<2x1x1xf32>
    %21 = vector.extract_strided_slice %16 {offsets = [0, 0, 0], sizes = [4, 8, 8], strides = [1, 1, 1]} : vector<4x16x8xbf16> to vector<4x8x8xbf16>
    %22 = vector.extract_strided_slice %17 {offsets = [0, 0, 0], sizes = [4, 8, 8], strides = [1, 1, 1]} : vector<4x16x8xbf16> to vector<4x8x8xbf16>
    %23 = vector.extract_strided_slice %18 {offsets = [0, 0, 0], sizes = [4, 8, 8], strides = [1, 1, 1]} : vector<4x16x8xbf16> to vector<4x8x8xbf16>
    "tpu.trace_start"() <{level = 10 : i32, message = "hqe,hke->hqk"}> : () -> ()
    %cst_15 = arith.constant dense<0.000000e+00> : vector<4x8x8xf32>
    %24 = tpu.matmul %21, %22, %cst_15 {dimension_numbers = #tpu.dot_dimension_numbers<[2], [2], [1], [1], [0, 0, 0, 1, 1, 1], [0], [0]>} : vector<4x8x8xbf16>, vector<4x8x8xbf16>, vector<4x8x8xf32> -> vector<4x8x8xf32>
    "tpu.trace_stop"() : () -> ()
    %25 = vector.extract_strided_slice %19 {offsets = [0, 0, 0], sizes = [1, 8, 8], strides = [1, 1, 1]} : vector<2x8x8xf32> to vector<1x8x8xf32>
    %26 = vector.shape_cast %25 : vector<1x8x8xf32> to vector<8x8xf32>
    %27 = vector.shape_cast %26 : vector<8x8xf32> to vector<1x8x8xf32>
    %28 = vector.broadcast %27 : vector<1x8x8xf32> to vector<4x8x8xf32>
    %29 = arith.addf %24, %28 : vector<4x8x8xf32>
    %cst_16 = arith.constant dense<0xFF800000> : vector<4x8xf32>
    %30 = vector.multi_reduction <maximumf>, %29, %cst_16 [2] : vector<4x8x8xf32> to vector<4x8xf32>
    %31 = vector.shape_cast %30 : vector<4x8xf32> to vector<4x8x1xf32>
    %32 = vector.broadcast %31 : vector<4x8x1xf32> to vector<4x8x8xf32>
    %33 = arith.subf %29, %32 : vector<4x8x8xf32>
    %34 = math.exp %33 : vector<4x8x8xf32>
    %cst_17 = arith.constant dense<0.000000e+00> : vector<4x8xf32>
    %35 = vector.multi_reduction <add>, %34, %cst_17 [2] : vector<4x8x8xf32> to vector<4x8xf32>
    %36 = vector.shape_cast %35 : vector<4x8xf32> to vector<4x8x1xf32>
    %37 = tpu.reciprocal %36 {approx = true} : vector<4x8x1xf32> -> vector<4x8x1xf32>
    %38 = vector.broadcast %37 : vector<4x8x1xf32> to vector<4x8x8xf32>
    %39 = arith.mulf %34, %38 : vector<4x8x8xf32>
    %40 = arith.truncf %39 : vector<4x8x8xf32> to vector<4x8x8xbf16>
    "tpu.trace_start"() <{level = 10 : i32, message = "hqk,hke->hqe"}> : () -> ()
    %cst_18 = arith.constant dense<0.000000e+00> : vector<4x8x8xf32>
    %41 = tpu.matmul %40, %23, %cst_18 {dimension_numbers = #tpu.dot_dimension_numbers<[2], [1], [1], [2], [0, 0, 0, 1, 1, 2], [0], [0]>} : vector<4x8x8xbf16>, vector<4x8x8xbf16>, vector<4x8x8xf32> -> vector<4x8x8xf32>
    "tpu.trace_stop"() : () -> ()
    %42 = vector.extract_strided_slice %20 {offsets = [0, 0, 0], sizes = [1, 1, 1], strides = [1, 1, 1]} : vector<2x1x1xf32> to vector<1x1x1xf32>
    %43 = vector.shape_cast %42 : vector<1x1x1xf32> to vector<1x1xf32>
    %44 = vector.shape_cast %43 : vector<1x1xf32> to vector<1x1x1xf32>
    %45 = vector.broadcast %44 : vector<1x1x1xf32> to vector<4x8x8xf32>
    %46 = arith.mulf %41, %45 : vector<4x8x8xf32>
    %47 = tpu.transpose %46, [1, 0, 2] : vector<4x8x8xf32> -> vector<8x4x8xf32>
    %48 = vector.shape_cast %47 : vector<8x4x8xf32> to vector<8x32xf32>
    %49 = vector.extract_strided_slice %16 {offsets = [0, 8, 0], sizes = [4, 8, 8], strides = [1, 1, 1]} : vector<4x16x8xbf16> to vector<4x8x8xbf16>
    %50 = vector.extract_strided_slice %17 {offsets = [0, 8, 0], sizes = [4, 8, 8], strides = [1, 1, 1]} : vector<4x16x8xbf16> to vector<4x8x8xbf16>
    %51 = vector.extract_strided_slice %18 {offsets = [0, 8, 0], sizes = [4, 8, 8], strides = [1, 1, 1]} : vector<4x16x8xbf16> to vector<4x8x8xbf16>
    "tpu.trace_start"() <{level = 10 : i32, message = "hqe,hke->hqk"}> : () -> ()
    %cst_19 = arith.constant dense<0.000000e+00> : vector<4x8x8xf32>
    %52 = tpu.matmul %49, %50, %cst_19 {dimension_numbers = #tpu.dot_dimension_numbers<[2], [2], [1], [1], [0, 0, 0, 1, 1, 1], [0], [0]>} : vector<4x8x8xbf16>, vector<4x8x8xbf16>, vector<4x8x8xf32> -> vector<4x8x8xf32>
    "tpu.trace_stop"() : () -> ()
    %53 = vector.extract_strided_slice %19 {offsets = [1, 0, 0], sizes = [1, 8, 8], strides = [1, 1, 1]} : vector<2x8x8xf32> to vector<1x8x8xf32>
    %54 = vector.shape_cast %53 : vector<1x8x8xf32> to vector<8x8xf32>
    %55 = vector.shape_cast %54 : vector<8x8xf32> to vector<1x8x8xf32>
    %56 = vector.broadcast %55 : vector<1x8x8xf32> to vector<4x8x8xf32>
    %57 = arith.addf %52, %56 : vector<4x8x8xf32>
    %cst_20 = arith.constant dense<0xFF800000> : vector<4x8xf32>
    %58 = vector.multi_reduction <maximumf>, %57, %cst_20 [2] : vector<4x8x8xf32> to vector<4x8xf32>
    %59 = vector.shape_cast %58 : vector<4x8xf32> to vector<4x8x1xf32>
    %60 = vector.broadcast %59 : vector<4x8x1xf32> to vector<4x8x8xf32>
    %61 = arith.subf %57, %60 : vector<4x8x8xf32>
    %62 = math.exp %61 : vector<4x8x8xf32>
    %cst_21 = arith.constant dense<0.000000e+00> : vector<4x8xf32>
    %63 = vector.multi_reduction <add>, %62, %cst_21 [2] : vector<4x8x8xf32> to vector<4x8xf32>
    %64 = vector.shape_cast %63 : vector<4x8xf32> to vector<4x8x1xf32>
    %65 = tpu.reciprocal %64 {approx = true} : vector<4x8x1xf32> -> vector<4x8x1xf32>
    %66 = vector.broadcast %65 : vector<4x8x1xf32> to vector<4x8x8xf32>
    %67 = arith.mulf %62, %66 : vector<4x8x8xf32>
    %68 = arith.truncf %67 : vector<4x8x8xf32> to vector<4x8x8xbf16>
    "tpu.trace_start"() <{level = 10 : i32, message = "hqk,hke->hqe"}> : () -> ()
    %cst_22 = arith.constant dense<0.000000e+00> : vector<4x8x8xf32>
    %69 = tpu.matmul %68, %51, %cst_22 {dimension_numbers = #tpu.dot_dimension_numbers<[2], [1], [1], [2], [0, 0, 0, 1, 1, 2], [0], [0]>} : vector<4x8x8xbf16>, vector<4x8x8xbf16>, vector<4x8x8xf32> -> vector<4x8x8xf32>
    "tpu.trace_stop"() : () -> ()
    %70 = vector.extract_strided_slice %20 {offsets = [1, 0, 0], sizes = [1, 1, 1], strides = [1, 1, 1]} : vector<2x1x1xf32> to vector<1x1x1xf32>
    %71 = vector.shape_cast %70 : vector<1x1x1xf32> to vector<1x1xf32>
    %72 = vector.shape_cast %71 : vector<1x1xf32> to vector<1x1x1xf32>
    %73 = vector.broadcast %72 : vector<1x1x1xf32> to vector<4x8x8xf32>
    %74 = arith.mulf %69, %73 : vector<4x8x8xf32>
    %75 = tpu.transpose %74, [1, 0, 2] : vector<4x8x8xf32> -> vector<8x4x8xf32>
    %76 = vector.shape_cast %75 : vector<8x4x8xf32> to vector<8x32xf32>
    %77 = tpu.concatenate %48, %76 in 0 : vector<8x32xf32>, vector<8x32xf32> -> vector<16x32xf32>
    %78 = arith.truncf %77 : vector<16x32xf32> to vector<16x32xbf16>
    %c0_23 = arith.constant 0 : index
    %c0_24 = arith.constant 0 : index
    %c0_25 = arith.constant 0 : index
    %79 = vector.load %arg6[%c0_23, %c0_24, %c0_25] : memref<1x32x32xbf16, #tpu.memory_space<vmem>>, vector<1x32x32xbf16>
    %80 = vector.shape_cast %79 : vector<1x32x32xbf16> to vector<32x32xbf16>
    %cst_26 = arith.constant dense<0.000000e+00> : vector<16x32xf32>
    %81 = tpu.matmul %78, %80, %cst_26 {dimension_numbers = #tpu.dot_dimension_numbers<[1], [0], [0], [1], [0, 0, 1, 1], [], []>} : vector<16x32xbf16>, vector<32x32xbf16>, vector<16x32xf32> -> vector<16x32xf32>
    %c0_27 = arith.constant 0 : index
    %c0_28 = arith.constant 0 : index
    %c0_29 = arith.constant 0 : index
    %82 = vector.load %arg7[%c0_27, %c0_28, %c0_29] : memref<1x1x32xf32, #tpu.memory_space<vmem>>, vector<1x1x32xf32>
    %83 = vector.shape_cast %82 : vector<1x1x32xf32> to vector<1x32xf32>
    %84 = vector.broadcast %83 : vector<1x32xf32> to vector<16x32xf32>
    %85 = arith.addf %81, %84 : vector<16x32xf32>
    %86 = vector.shape_cast %85 : vector<16x32xf32> to vector<2x8x32xf32>
    %87 = arith.addf %3, %86 : vector<2x8x32xf32>
    %c0_30 = arith.constant 0 : index
    %c0_31 = arith.constant 0 : index
    %c0_32 = arith.constant 0 : index
    %88 = vector.load %arg8[%c0_30, %c0_31, %c0_32] : memref<1x1x32xf32, #tpu.memory_space<vmem>>, vector<1x1x32xf32>
    %89 = vector.shape_cast %88 : vector<1x1x32xf32> to vector<1x32xf32>
    %c0_33 = arith.constant 0 : index
    %c0_34 = arith.constant 0 : index
    %c0_35 = arith.constant 0 : index
    %90 = vector.load %arg9[%c0_33, %c0_34, %c0_35] : memref<1x1x32xf32, #tpu.memory_space<vmem>>, vector<1x1x32xf32>
    %91 = vector.shape_cast %90 : vector<1x1x32xf32> to vector<1x32xf32>
    %cst_36 = arith.constant dense<0.000000e+00> : vector<2x8xf32>
    %92 = vector.multi_reduction <add>, %87, %cst_36 [2] : vector<2x8x32xf32> to vector<2x8xf32>
    %93 = vector.shape_cast %92 : vector<2x8xf32> to vector<2x8x1xf32>
    %cst_37 = arith.constant 3.200000e+01 : f32
    %94 = vector.broadcast %cst_37 : f32 to vector<2x8x1xf32>
    %95 = arith.divf %93, %94 : vector<2x8x1xf32>
    %96 = vector.broadcast %95 : vector<2x8x1xf32> to vector<2x8x32xf32>
    %97 = arith.subf %87, %96 : vector<2x8x32xf32>
    %98 = arith.mulf %97, %97 : vector<2x8x32xf32>
    %cst_38 = arith.constant dense<0.000000e+00> : vector<2x8xf32>
    %99 = vector.multi_reduction <add>, %98, %cst_38 [2] : vector<2x8x32xf32> to vector<2x8xf32>
    %100 = vector.shape_cast %99 : vector<2x8xf32> to vector<2x8x1xf32>
    %cst_39 = arith.constant 3.200000e+01 : f32
    %101 = vector.broadcast %cst_39 : f32 to vector<2x8x1xf32>
    %102 = arith.divf %100, %101 : vector<2x8x1xf32>
    %103 = vector.broadcast %95 : vector<2x8x1xf32> to vector<2x8x32xf32>
    %104 = arith.subf %87, %103 : vector<2x8x32xf32>
    %cst_40 = arith.constant 9.99999974E-6 : f32
    %105 = vector.broadcast %cst_40 : f32 to vector<2x8x1xf32>
    %106 = arith.addf %102, %105 : vector<2x8x1xf32>
    %107 = math.rsqrt %106 : vector<2x8x1xf32>
    %108 = vector.broadcast %107 : vector<2x8x1xf32> to vector<2x8x32xf32>
    %109 = arith.mulf %104, %108 : vector<2x8x32xf32>
    %110 = vector.shape_cast %89 : vector<1x32xf32> to vector<1x1x32xf32>
    %111 = vector.broadcast %110 : vector<1x1x32xf32> to vector<2x8x32xf32>
    %112 = arith.mulf %109, %111 : vector<2x8x32xf32>
    %113 = vector.shape_cast %91 : vector<1x32xf32> to vector<1x1x32xf32>
    %114 = vector.broadcast %113 : vector<1x1x32xf32> to vector<2x8x32xf32>
    %115 = arith.addf %112, %114 : vector<2x8x32xf32>
    %116 = vector.shape_cast %115 : vector<2x8x32xf32> to vector<16x32xf32>
    %117 = arith.truncf %116 : vector<16x32xf32> to vector<16x32xbf16>
    %c0_41 = arith.constant 0 : index
    %c0_42 = arith.constant 0 : index
    %c0_43 = arith.constant 0 : index
    %118 = vector.load %arg10[%c0_41, %c0_42, %c0_43] : memref<1x32x128xbf16, #tpu.memory_space<vmem>>, vector<1x32x128xbf16>
    %119 = vector.shape_cast %118 : vector<1x32x128xbf16> to vector<32x128xbf16>
    %cst_44 = arith.constant dense<0.000000e+00> : vector<16x128xf32>
    %120 = tpu.matmul %117, %119, %cst_44 {dimension_numbers = #tpu.dot_dimension_numbers<[1], [0], [0], [1], [0, 0, 1, 1], [], []>} : vector<16x32xbf16>, vector<32x128xbf16>, vector<16x128xf32> -> vector<16x128xf32>
    %c0_45 = arith.constant 0 : index
    %c0_46 = arith.constant 0 : index
    %c0_47 = arith.constant 0 : index
    %121 = vector.load %arg11[%c0_45, %c0_46, %c0_47] : memref<1x1x128xf32, #tpu.memory_space<vmem>>, vector<1x1x128xf32>
    %122 = vector.shape_cast %121 : vector<1x1x128xf32> to vector<1x128xf32>
    %123 = vector.broadcast %122 : vector<1x128xf32> to vector<16x128xf32>
    %124 = arith.addf %120, %123 : vector<16x128xf32>
    %cst_48 = arith.constant 5.000000e-01 : f32
    %125 = vector.broadcast %cst_48 : f32 to vector<16x128xf32>
    %126 = arith.mulf %125, %124 : vector<16x128xf32>
    %cst_49 = arith.constant 4.471500e-02 : f32
    %127 = vector.broadcast %cst_49 : f32 to vector<16x128xf32>
    %128 = arith.mulf %127, %124 : vector<16x128xf32>
    %129 = arith.mulf %128, %124 : vector<16x128xf32>
    %130 = arith.mulf %129, %124 : vector<16x128xf32>
    %131 = arith.addf %124, %130 : vector<16x128xf32>
    %cst_50 = arith.constant 0.797884583 : f32
    %132 = vector.broadcast %cst_50 : f32 to vector<16x128xf32>
    %133 = arith.mulf %132, %131 : vector<16x128xf32>
    %134 = math.tanh %133 : vector<16x128xf32>
    %cst_51 = arith.constant 1.000000e+00 : f32
    %135 = vector.broadcast %cst_51 : f32 to vector<16x128xf32>
    %136 = arith.addf %135, %134 : vector<16x128xf32>
    %137 = arith.mulf %126, %136 : vector<16x128xf32>
    %138 = arith.truncf %137 : vector<16x128xf32> to vector<16x128xbf16>
    %c0_52 = arith.constant 0 : index
    %c0_53 = arith.constant 0 : index
    %c0_54 = arith.constant 0 : index
    %139 = vector.load %arg12[%c0_52, %c0_53, %c0_54] : memref<1x128x32xbf16, #tpu.memory_space<vmem>>, vector<1x128x32xbf16>
    %140 = vector.shape_cast %139 : vector<1x128x32xbf16> to vector<128x32xbf16>
    %cst_55 = arith.constant dense<0.000000e+00> : vector<16x32xf32>
    %141 = tpu.matmul %138, %140, %cst_55 {dimension_numbers = #tpu.dot_dimension_numbers<[1], [0], [0], [1], [0, 0, 1, 1], [], []>} : vector<16x128xbf16>, vector<128x32xbf16>, vector<16x32xf32> -> vector<16x32xf32>
    %c0_56 = arith.constant 0 : index
    %c0_57 = arith.constant 0 : index
    %c0_58 = arith.constant 0 : index
    %142 = vector.load %arg13[%c0_56, %c0_57, %c0_58] : memref<1x1x32xf32, #tpu.memory_space<vmem>>, vector<1x1x32xf32>
    %143 = vector.shape_cast %142 : vector<1x1x32xf32> to vector<1x32xf32>
    %144 = vector.broadcast %143 : vector<1x32xf32> to vector<16x32xf32>
    %145 = arith.addf %141, %144 : vector<16x32xf32>
    %146 = vector.shape_cast %145 : vector<16x32xf32> to vector<2x8x32xf32>
    %147 = arith.addf %115, %146 : vector<2x8x32xf32>
    %c0_59 = arith.constant 0 : index
    %c0_60 = arith.constant 0 : index
    %c0_61 = arith.constant 0 : index
    %148 = vector.load %arg14[%c0_59, %c0_60, %c0_61] : memref<1x1x32xf32, #tpu.memory_space<vmem>>, vector<1x1x32xf32>
    %149 = vector.shape_cast %148 : vector<1x1x32xf32> to vector<1x32xf32>
    %c0_62 = arith.constant 0 : index
    %c0_63 = arith.constant 0 : index
    %c0_64 = arith.constant 0 : index
    %150 = vector.load %arg15[%c0_62, %c0_63, %c0_64] : memref<1x1x32xf32, #tpu.memory_space<vmem>>, vector<1x1x32xf32>
    %151 = vector.shape_cast %150 : vector<1x1x32xf32> to vector<1x32xf32>
    %cst_65 = arith.constant dense<0.000000e+00> : vector<2x8xf32>
    %152 = vector.multi_reduction <add>, %147, %cst_65 [2] : vector<2x8x32xf32> to vector<2x8xf32>
    %153 = vector.shape_cast %152 : vector<2x8xf32> to vector<2x8x1xf32>
    %cst_66 = arith.constant 3.200000e+01 : f32
    %154 = vector.broadcast %cst_66 : f32 to vector<2x8x1xf32>
    %155 = arith.divf %153, %154 : vector<2x8x1xf32>
    %156 = vector.broadcast %155 : vector<2x8x1xf32> to vector<2x8x32xf32>
    %157 = arith.subf %147, %156 : vector<2x8x32xf32>
    %158 = arith.mulf %157, %157 : vector<2x8x32xf32>
    %cst_67 = arith.constant dense<0.000000e+00> : vector<2x8xf32>
    %159 = vector.multi_reduction <add>, %158, %cst_67 [2] : vector<2x8x32xf32> to vector<2x8xf32>
    %160 = vector.shape_cast %159 : vector<2x8xf32> to vector<2x8x1xf32>
    %cst_68 = arith.constant 3.200000e+01 : f32
    %161 = vector.broadcast %cst_68 : f32 to vector<2x8x1xf32>
    %162 = arith.divf %160, %161 : vector<2x8x1xf32>
    %163 = vector.broadcast %155 : vector<2x8x1xf32> to vector<2x8x32xf32>
    %164 = arith.subf %147, %163 : vector<2x8x32xf32>
    %cst_69 = arith.constant 9.99999974E-6 : f32
    %165 = vector.broadcast %cst_69 : f32 to vector<2x8x1xf32>
    %166 = arith.addf %162, %165 : vector<2x8x1xf32>
    %167 = math.rsqrt %166 : vector<2x8x1xf32>
    %168 = vector.broadcast %167 : vector<2x8x1xf32> to vector<2x8x32xf32>
    %169 = arith.mulf %164, %168 : vector<2x8x32xf32>
    %170 = vector.shape_cast %149 : vector<1x32xf32> to vector<1x1x32xf32>
    %171 = vector.broadcast %170 : vector<1x1x32xf32> to vector<2x8x32xf32>
    %172 = arith.mulf %169, %171 : vector<2x8x32xf32>
    %173 = vector.shape_cast %151 : vector<1x32xf32> to vector<1x1x32xf32>
    %174 = vector.broadcast %173 : vector<1x1x32xf32> to vector<2x8x32xf32>
    %175 = arith.addf %172, %174 : vector<2x8x32xf32>
    %c0_70 = arith.constant 0 : index
    %c0_71 = arith.constant 0 : index
    %c0_72 = arith.constant 0 : index
    %176 = vector.load %arg16[%c0_70, %c0_71, %c0_72] : memref<2x8x32xf32, #tpu.memory_space<vmem>>, vector<2x8x32xf32>
    tpu.vector_store %arg16[%c0_70, %c0_71, %c0_72], %175 {strides = array<i32>} : memref<2x8x32xf32, #tpu.memory_space<vmem>>, vector<2x8x32xf32>,
    return
  }
  func.func @transform_0(%arg0: i32, %arg1: i32) -> (i32, i32, i32) {
    %c0_i32 = arith.constant 0 : i32
    %c0_i32_0 = arith.constant 0 : i32
    %c0_i32_1 = arith.constant 0 : i32
    return %arg0, %c0_i32, %c0_i32_0 : i32, i32, i32
  }
  func.func @transform_1(%arg0: i32, %arg1: i32) -> (i32, i32, i32) {
    %c0_i32 = arith.constant 0 : i32
    %c0_i32_0 = arith.constant 0 : i32
    %c0_i32_1 = arith.constant 0 : i32
    return %arg0, %c0_i32, %c0_i32_0 : i32, i32, i32
  }
  func.func @transform_2(%arg0: i32, %arg1: i32) -> (i32, i32, i32) {
    %c0_i32 = arith.constant 0 : i32
    %c0_i32_0 = arith.constant 0 : i32
    %c0_i32_1 = arith.constant 0 : i32
    return %arg1, %c0_i32, %c0_i32_0 : i32, i32, i32
  }
  func.func @transform_3(%arg0: i32, %arg1: i32) -> (i32, i32, i32) {
    %c0_i32 = arith.constant 0 : i32
    %c0_i32_0 = arith.constant 0 : i32
    %c0_i32_1 = arith.constant 0 : i32
    return %arg1, %c0_i32, %c0_i32_0 : i32, i32, i32
  }
  func.func @transform_4(%arg0: i32, %arg1: i32) -> (i32, i32, i32) {
    %c0_i32 = arith.constant 0 : i32
    %c0_i32_0 = arith.constant 0 : i32
    %c0_i32_1 = arith.constant 0 : i32
    return %arg1, %c0_i32, %c0_i32_0 : i32, i32, i32
  }
  func.func @transform_5(%arg0: i32, %arg1: i32) -> (i32, i32, i32) {
    %c0_i32 = arith.constant 0 : i32
    %c0_i32_0 = arith.constant 0 : i32
    %c0_i32_1 = arith.constant 0 : i32
    return %arg1, %c0_i32, %c0_i32_0 : i32, i32, i32
  }
  func.func @transform_6(%arg0: i32, %arg1: i32) -> (i32, i32, i32) {
    %c0_i32 = arith.constant 0 : i32
    %c0_i32_0 = arith.constant 0 : i32
    %c0_i32_1 = arith.constant 0 : i32
    return %arg1, %c0_i32, %c0_i32_0 : i32, i32, i32
  }
  func.func @transform_7(%arg0: i32, %arg1: i32) -> (i32, i32, i32) {
    %c0_i32 = arith.constant 0 : i32
    %c0_i32_0 = arith.constant 0 : i32
    %c0_i32_1 = arith.constant 0 : i32
    return %arg1, %c0_i32, %c0_i32_0 : i32, i32, i32
  }
  func.func @transform_8(%arg0: i32, %arg1: i32) -> (i32, i32, i32) {
    %c0_i32 = arith.constant 0 : i32
    %c0_i32_0 = arith.constant 0 : i32
    %c0_i32_1 = arith.constant 0 : i32
    return %arg1, %c0_i32, %c0_i32_0 : i32, i32, i32
  }
  func.func @transform_9(%arg0: i32, %arg1: i32) -> (i32, i32, i32) {
    %c0_i32 = arith.constant 0 : i32
    %c0_i32_0 = arith.constant 0 : i32
    %c0_i32_1 = arith.constant 0 : i32
    return %arg1, %c0_i32, %c0_i32_0 : i32, i32, i32
  }
  func.func @transform_10(%arg0: i32, %arg1: i32) -> (i32, i32, i32) {
    %c0_i32 = arith.constant 0 : i32
    %c0_i32_0 = arith.constant 0 : i32
    %c0_i32_1 = arith.constant 0 : i32
    return %arg1, %c0_i32, %c0_i32_0 : i32, i32, i32
  }
  func.func @transform_11(%arg0: i32, %arg1: i32) -> (i32, i32, i32) {
    %c0_i32 = arith.constant 0 : i32
    %c0_i32_0 = arith.constant 0 : i32
    %c0_i32_1 = arith.constant 0 : i32
    return %arg1, %c0_i32, %c0_i32_0 : i32, i32, i32
  }
  func.func @transform_12(%arg0: i32, %arg1: i32) -> (i32, i32, i32) {
    %c0_i32 = arith.constant 0 : i32
    %c0_i32_0 = arith.constant 0 : i32
    %c0_i32_1 = arith.constant 0 : i32
    return %arg1, %c0_i32, %c0_i32_0 : i32, i32, i32
  }
  func.func @transform_13(%arg0: i32, %arg1: i32) -> (i32, i32, i32) {
    %c0_i32 = arith.constant 0 : i32
    %c0_i32_0 = arith.constant 0 : i32
    %c0_i32_1 = arith.constant 0 : i32
    return %arg1, %c0_i32, %c0_i32_0 : i32, i32, i32
  }
  func.func @transform_14(%arg0: i32, %arg1: i32) -> (i32, i32, i32) {
    %c0_i32 = arith.constant 0 : i32
    %c0_i32_0 = arith.constant 0 : i32
    %c0_i32_1 = arith.constant 0 : i32
    return %arg0, %c0_i32, %c0_i32_0 : i32, i32, i32
  }
}

</mosaic_0001>

<llo_original>
// kernel: tpu_custom_call.1
$region0: #{tpu_custom_call.1}
  #allocation0 [shape = 'u32[]', space=smem, size = 0x4, offset = 0x4, fixed_abs, tag = 'smem constant byte address 0x4 - core index']
  #allocation1 [shape = 'u32[144,128]{1,0:T(1,128)}', space=vmem, size = 0x12000, scoped, tag = 'internal scratch']
  #allocation2 [shape = 'f32[2,8,8]{2,1,0:T(8,128)}', space=vmem, size = 0x2000, scoped, tag = 'scratch operand']
  #allocation3 [shape = 'f32[2,1,1]{2,1,0:T(1,128)}', space=vmem, size = 0x400, scoped, tag = 'scratch operand']
  %s0 = inlined_call_operand.hbm [shape: f32[2,8,32], index: 0, kind: input, shape index: {}]
  %s1 = inlined_call_operand.hbm [shape: f32[2,1,8], index: 1, kind: input, shape index: {}]
  %s2 = inlined_call_operand.hbm [shape: bf16[2,32,96], index: 2, kind: input, shape index: {}]
  %s3 = inlined_call_operand.hbm [shape: f32[2,1,96], index: 3, kind: input, shape index: {}]
  %s4 = inlined_call_operand.hbm [shape: bf16[2,32,32], index: 4, kind: input, shape index: {}]
  %s5 = inlined_call_operand.hbm [shape: f32[2,1,32], index: 5, kind: input, shape index: {}]
  %s6 = inlined_call_operand.hbm [shape: f32[2,1,32], index: 6, kind: input, shape index: {}]
  %s7 = inlined_call_operand.hbm [shape: f32[2,1,32], index: 7, kind: input, shape index: {}]
  %s8 = inlined_call_operand.hbm [shape: bf16[2,32,128], index: 8, kind: input, shape index: {}]
  %s9 = inlined_call_operand.hbm [shape: f32[2,1,128], index: 9, kind: input, shape index: {}]
  %s10 = inlined_call_operand.hbm [shape: bf16[2,128,32], index: 10, kind: input, shape index: {}]
  %s11 = inlined_call_operand.hbm [shape: f32[2,1,32], index: 11, kind: input, shape index: {}]
  %s12 = inlined_call_operand.hbm [shape: f32[2,1,32], index: 12, kind: input, shape index: {}]
  %s13 = inlined_call_operand.hbm [shape: f32[2,1,32], index: 13, kind: input, shape index: {}]
  %s14 = inlined_call_operand.hbm [shape: f32[2,8,32], index: 14, kind: output, shape index: {}]
  %s15 = sld [smem:[#allocation0]]
  $region149: #{tpu_custom_call.1} parent=0
    _
  %s17 = ssub.s32 1, %s15
  %s18 = scalar_select 0, %s17, %s15
  $region1: #{tpu_custom_call.1} parent=0
    #allocation4 [shape = 'u8[8192]{0}', space=vmem, size = 0x2000, scoped, tag = 'input window, operand 0, single buffered']
    #allocation5 [shape = 's32[2]{0}', space=sflag, size = 0x8, scoped, tag = 'scoped memory for tpu_custom_call.1']
    #allocation6 [shape = 's32[2]{0}', space=sflag, size = 0x8, scoped, tag = 'scoped memory for tpu_custom_call.1']
    #allocation7 [shape = 'u8[1024]{0}', space=vmem, size = 0x400, scoped, tag = 'input window, operand 1, single buffered']
    #allocation8 [shape = 's32[1]{0}', space=sflag, size = 0x4, scoped, tag = 'scoped memory for tpu_custom_call.1']
    #allocation9 [shape = 'u8[16384]{0}', space=vmem, size = 0x4000, scoped, tag = 'input window, operand 2']
    #allocation10 [shape = 'u8[1024]{0}', space=vmem, size = 0x400, scoped, tag = 'input window, operand 3']
    #allocation11 [shape = 'u8[16384]{0}', space=vmem, size = 0x4000, scoped, tag = 'input window, operand 4']
    #allocation12 [shape = 'u8[1024]{0}', space=vmem, size = 0x400, scoped, tag = 'input window, operand 5']
    #allocation13 [shape = 'u8[1024]{0}', space=vmem, size = 0x400, scoped, tag = 'input window, operand 6']
    #allocation14 [shape = 'u8[1024]{0}', space=vmem, size = 0x400, scoped, tag = 'input window, operand 7']
    #allocation15 [shape = 'u8[16384]{0}', space=vmem, size = 0x4000, scoped, tag = 'input window, operand 8']
    #allocation16 [shape = 'u8[1024]{0}', space=vmem, size = 0x400, scoped, tag = 'input window, operand 9']
    #allocation17 [shape = 'u8[65536]{0}', space=vmem, size = 0x10000, scoped, tag = 'input window, operand 10']
    #allocation18 [shape = 'u8[1024]{0}', space=vmem, size = 0x400, scoped, tag = 'input window, operand 11']
    #allocation19 [shape = 'u8[1024]{0}', space=vmem, size = 0x400, scoped, tag = 'input window, operand 12']
    #allocation20 [shape = 'u8[1024]{0}', space=vmem, size = 0x400, scoped, tag = 'input window, operand 13']
    #allocation21 [shape = 'u8[8192]{0}', space=vmem, size = 0x2000, scoped, tag = 'output window, operand 0, single buffered']
    %19 = vsyncpa [#allocation5], 0
    %20 = vsyncpa [#allocation8], 0
    %21 = vsyncpa [#allocation6], 0
    loop: start=0, step=1, limit=4
    $region2: #{tpu_custom_call.1} parent=1 // loop_pre_header
      _
    $region3: #{tpu_custom_call.1} parent=1 // loop_header
      %s23 = sphi 0, %s27
      %p24 = scmp.ge.s32.totalorder %s23, 4
      %s30 = sphi 0, %s42
      %s31 = sphi 0, %s38
      %s32 = sphi 0, %s30
      %s33 = sphi 0, %s31
      %s34 = sphi 0, %s32
      %s35 = sphi 0, %s33
      %s45 = sphi 0, %s47
      %s48 = sphi 0, %s45
      %s49 = sphi 0, %s48
      %s65 = sphi 0, %s49
      %s71 = sphi 0, %s73
      %s74 = sphi 0, %s71
      %s75 = sphi 0, %s74
      %s91 = sphi 0, %s75
      %s97 = sphi 0, %s99
      %s100 = sphi 0, %s97
      %s101 = sphi 0, %s100
      %s117 = sphi 0, %s101
      %s123 = sphi 0, %s125
      %s126 = sphi 0, %s123
      %s127 = sphi 0, %s126
      %s143 = sphi 0, %s127
      %s149 = sphi 0, %s151
      %s152 = sphi 0, %s149
      %s153 = sphi 0, %s152
      %s169 = sphi 0, %s153
      %s175 = sphi 0, %s177
      %s178 = sphi 0, %s175
      %s179 = sphi 0, %s178
      %s195 = sphi 0, %s179
      %s201 = sphi 0, %s203
      %s204 = sphi 0, %s201
      %s205 = sphi 0, %s204
      %s221 = sphi 0, %s205
      %s227 = sphi 0, %s229
      %s230 = sphi 0, %s227
      %s231 = sphi 0, %s230
      %s247 = sphi 0, %s231
      %s253 = sphi 0, %s255
      %s256 = sphi 0, %s253
      %s257 = sphi 0, %s256
      %s273 = sphi 0, %s257
      %s279 = sphi 0, %s281
      %s282 = sphi 0, %s279
      %s283 = sphi 0, %s282
      %s299 = sphi 0, %s283
      %s305 = sphi 0, %s307
      %s308 = sphi 0, %s305
      %s309 = sphi 0, %s308
      %s325 = sphi 0, %s309
      %s331 = sphi 0, %s333
      %s334 = sphi 0, %s331
      %s335 = sphi 0, %s334
      %s351 = sphi 0, %s335
      %s357 = sphi 0, %s359
      %s360 = sphi 0, %s357
      %s361 = sphi 0, %s360
      %s377 = sphi 0, %s361
      %s383 = sphi 0, %s385
      %s386 = sphi 0, %s383
      %s387 = sphi 0, %s386
      %s403 = sphi 0, %s387
      %s409 = sphi 0, %s411
      %s412 = sphi 0, %s409
      %s413 = sphi 0, %s412
      %s429 = sphi 0, %s413
    $region4: #{tpu_custom_call.1} parent=1 // loop_header_branch
      %26 = sbr.rel (%p24) target = $region8
    $region5: #{tpu_custom_call.1} parent=1 // loop_body
      %s28 = ssub.s32 %s23, 1
      %s29 = ssub.s32 %s23, 2
      %s36 = sadd.s32 1, %s31
      %p37 = scmp.ge.s32.totalorder %s36, 2
      %s38 = scalar_select %p37, 0, %s36
      %s39 = sadd.s32 1, %s30
      %s40 = scalar_select %p37, %s39, %s30
      %p41 = scmp.ge.s32.totalorder %s40, 1
      %s42 = scalar_select %p41, 0, %s40
      %s43 = ssub.s32 %s30, %s42
      %p44 = scmp.eq.s32.totalorder %s43, 0
      %s46 = sadd.s32 %s45, 1
      %s47 = scalar_select %p44, %s45, %s46
      %p50 = pneg %p44
      %p51 = scmp.eq.s32.totalorder %s23, 1
      %p52 = por %p50, %p51
      %p53 = scmp.ne.s32.totalorder %s45, %s48
      %p54 = scmp.eq.s32.totalorder %s23, 0
      %p55 = por %p53, %p54
      %p56 = scmp.ne.s32.totalorder %s45, %s48
      %p57 = scmp.eq.s32.totalorder %s28, 1
      %p58 = por %p56, %p57
      %p59 = scmp.ne.s32.totalorder %s48, %s49
      %p60 = scmp.eq.s32.totalorder %s28, 0
      %p61 = por %p59, %p60
      %p62 = scmp.ne.s32.totalorder %s48, %s49
      %p63 = scmp.eq.s32.totalorder %s29, 1
      %p64 = por %p62, %p63
      %p66 = scmp.ne.s32.totalorder %s49, %s65
      %p67 = scmp.eq.s32.totalorder %s29, 0
      %p68 = por %p66, %p67
      %s69 = ssub.s32 %s30, %s42
      %p70 = scmp.eq.s32.totalorder %s69, 0
      %s72 = sadd.s32 %s71, 1
      %s73 = scalar_select %p70, %s71, %s72
      %p76 = pneg %p70
      %p77 = scmp.eq.s32.totalorder %s23, 1
      %p78 = por %p76, %p77
      %p79 = scmp.ne.s32.totalorder %s71, %s74
      %p80 = scmp.eq.s32.totalorder %s23, 0
      %p81 = por %p79, %p80
      %p82 = scmp.ne.s32.totalorder %s71, %s74
      %p83 = scmp.eq.s32.totalorder %s28, 1
      %p84 = por %p82, %p83
      %p85 = scmp.ne.s32.totalorder %s74, %s75
      %p86 = scmp.eq.s32.totalorder %s28, 0
      %p87 = por %p85, %p86
      %p88 = scmp.ne.s32.totalorder %s74, %s75
      %p89 = scmp.eq.s32.totalorder %s29, 1
      %p90 = por %p88, %p89
      %p92 = scmp.ne.s32.totalorder %s75, %s91
      %p93 = scmp.eq.s32.totalorder %s29, 0
      %p94 = por %p92, %p93
      %s95 = ssub.s32 %s31, %s38
      %p96 = scmp.eq.s32.totalorder %s95, 0
      %s98 = sadd.s32 %s97, 1
      %s99 = scalar_select %p96, %s97, %s98
      %p102 = pneg %p96
      %p103 = scmp.eq.s32.totalorder %s23, 1
      %p104 = por %p102, %p103
      %p105 = scmp.ne.s32.totalorder %s97, %s100
      %p106 = scmp.eq.s32.totalorder %s23, 0
      %p107 = por %p105, %p106
      %p108 = scmp.ne.s32.totalorder %s97, %s100
      %p109 = scmp.eq.s32.totalorder %s28, 1
      %p110 = por %p108, %p109
      %p111 = scmp.ne.s32.totalorder %s100, %s101
      %p112 = scmp.eq.s32.totalorder %s28, 0
      %p113 = por %p111, %p112
      %p114 = scmp.ne.s32.totalorder %s100, %s101
      %p115 = scmp.eq.s32.totalorder %s29, 1
      %p116 = por %p114, %p115
      %p118 = scmp.ne.s32.totalorder %s101, %s117
      %p119 = scmp.eq.s32.totalorder %s29, 0
      %p120 = por %p118, %p119
      %s121 = ssub.s32 %s31, %s38
      %p122 = scmp.eq.s32.totalorder %s121, 0
      %s124 = sadd.s32 %s123, 1
      %s125 = scalar_select %p122, %s123, %s124
      %p128 = pneg %p122
      %p129 = scmp.eq.s32.totalorder %s23, 1
      %p130 = por %p128, %p129
      %p131 = scmp.ne.s32.totalorder %s123, %s126
      %p132 = scmp.eq.s32.totalorder %s23, 0
      %p133 = por %p131, %p132
      %p134 = scmp.ne.s32.totalorder %s123, %s126
      %p135 = scmp.eq.s32.totalorder %s28, 1
      %p136 = por %p134, %p135
      %p137 = scmp.ne.s32.totalorder %s126, %s127
      %p138 = scmp.eq.s32.totalorder %s28, 0
      %p139 = por %p137, %p138
      %p140 = scmp.ne.s32.totalorder %s126, %s127
      %p141 = scmp.eq.s32.totalorder %s29, 1
      %p142 = por %p140, %p141
      %p144 = scmp.ne.s32.totalorder %s127, %s143
      %p145 = scmp.eq.s32.totalorder %s29, 0
      %p146 = por %p144, %p145
      %s147 = ssub.s32 %s31, %s38
      %p148 = scmp.eq.s32.totalorder %s147, 0
      %s150 = sadd.s32 %s149, 1
      %s151 = scalar_select %p148, %s149, %s150
      %p154 = pneg %p148
      %p155 = scmp.eq.s32.totalorder %s23, 1
      %p156 = por %p154, %p155
      %p157 = scmp.ne.s32.totalorder %s149, %s152
      %p158 = scmp.eq.s32.totalorder %s23, 0
      %p159 = por %p157, %p158
      %p160 = scmp.ne.s32.totalorder %s149, %s152
      %p161 = scmp.eq.s32.totalorder %s28, 1
      %p162 = por %p160, %p161
      %p163 = scmp.ne.s32.totalorder %s152, %s153
      %p164 = scmp.eq.s32.totalorder %s28, 0
      %p165 = por %p163, %p164
      %p166 = scmp.ne.s32.totalorder %s152, %s153
      %p167 = scmp.eq.s32.totalorder %s29, 1
      %p168 = por %p166, %p167
      %p170 = scmp.ne.s32.totalorder %s153, %s169
      %p171 = scmp.eq.s32.totalorder %s29, 0
      %p172 = por %p170, %p171
      %s173 = ssub.s32 %s31, %s38
      %p174 = scmp.eq.s32.totalorder %s173, 0
      %s176 = sadd.s32 %s175, 1
      %s177 = scalar_select %p174, %s175, %s176
      %p180 = pneg %p174
      %p181 = scmp.eq.s32.totalorder %s23, 1
      %p182 = por %p180, %p181
      %p183 = scmp.ne.s32.totalorder %s175, %s178
      %p184 = scmp.eq.s32.totalorder %s23, 0
      %p185 = por %p183, %p184
      %p186 = scmp.ne.s32.totalorder %s175, %s178
      %p187 = scmp.eq.s32.totalorder %s28, 1
      %p188 = por %p186, %p187
      %p189 = scmp.ne.s32.totalorder %s178, %s179
      %p190 = scmp.eq.s32.totalorder %s28, 0
      %p191 = por %p189, %p190
      %p192 = scmp.ne.s32.totalorder %s178, %s179
      %p193 = scmp.eq.s32.totalorder %s29, 1
      %p194 = por %p192, %p193
      %p196 = scmp.ne.s32.totalorder %s179, %s195
      %p197 = scmp.eq.s32.totalorder %s29, 0
      %p198 = por %p196, %p197
      %s199 = ssub.s32 %s31, %s38
      %p200 = scmp.eq.s32.totalorder %s199, 0
      %s202 = sadd.s32 %s201, 1
      %s203 = scalar_select %p200, %s201, %s202
      %p206 = pneg %p200
      %p207 = scmp.eq.s32.totalorder %s23, 1
      %p208 = por %p206, %p207
      %p209 = scmp.ne.s32.totalorder %s201, %s204
      %p210 = scmp.eq.s32.totalorder %s23, 0
      %p211 = por %p209, %p210
      %p212 = scmp.ne.s32.totalorder %s201, %s204
      %p213 = scmp.eq.s32.totalorder %s28, 1
      %p214 = por %p212, %p213
      %p215 = scmp.ne.s32.totalorder %s204, %s205
      %p216 = scmp.eq.s32.totalorder %s28, 0
      %p217 = por %p215, %p216
      %p218 = scmp.ne.s32.totalorder %s204, %s205
      %p219 = scmp.eq.s32.totalorder %s29, 1
      %p220 = por %p218, %p219
      %p222 = scmp.ne.s32.totalorder %s205, %s221
      %p223 = scmp.eq.s32.totalorder %s29, 0
      %p224 = por %p222, %p223
      %s225 = ssub.s32 %s31, %s38
      %p226 = scmp.eq.s32.totalorder %s225, 0
      %s228 = sadd.s32 %s227, 1
      %s229 = scalar_select %p226, %s227, %s228
      %p232 = pneg %p226
      %p233 = scmp.eq.s32.totalorder %s23, 1
      %p234 = por %p232, %p233
      %p235 = scmp.ne.s32.totalorder %s227, %s230
      %p236 = scmp.eq.s32.totalorder %s23, 0
      %p237 = por %p235, %p236
      %p238 = scmp.ne.s32.totalorder %s227, %s230
      %p239 = scmp.eq.s32.totalorder %s28, 1
      %p240 = por %p238, %p239
      %p241 = scmp.ne.s32.totalorder %s230, %s231
      %p242 = scmp.eq.s32.totalorder %s28, 0
      %p243 = por %p241, %p242
      %p244 = scmp.ne.s32.totalorder %s230, %s231
      %p245 = scmp.eq.s32.totalorder %s29, 1
      %p246 = por %p244, %p245
      %p248 = scmp.ne.s32.totalorder %s231, %s247
      %p249 = scmp.eq.s32.totalorder %s29, 0
      %p250 = por %p248, %p249
      %s251 = ssub.s32 %s31, %s38
      %p252 = scmp.eq.s32.totalorder %s251, 0
      %s254 = sadd.s32 %s253, 1
      %s255 = scalar_select %p252, %s253, %s254
      %p258 = pneg %p252
      %p259 = scmp.eq.s32.totalorder %s23, 1
      %p260 = por %p258, %p259
      %p261 = scmp.ne.s32.totalorder %s253, %s256
      %p262 = scmp.eq.s32.totalorder %s23, 0
      %p263 = por %p261, %p262
      %p264 = scmp.ne.s32.totalorder %s253, %s256
      %p265 = scmp.eq.s32.totalorder %s28, 1
      %p266 = por %p264, %p265
      %p267 = scmp.ne.s32.totalorder %s256, %s257
      %p268 = scmp.eq.s32.totalorder %s28, 0
      %p269 = por %p267, %p268
      %p270 = scmp.ne.s32.totalorder %s256, %s257
      %p271 = scmp.eq.s32.totalorder %s29, 1
      %p272 = por %p270, %p271
      %p274 = scmp.ne.s32.totalorder %s257, %s273
      %p275 = scmp.eq.s32.totalorder %s29, 0
      %p276 = por %p274, %p275
      %s277 = ssub.s32 %s31, %s38
      %p278 = scmp.eq.s32.totalorder %s277, 0
      %s280 = sadd.s32 %s279, 1
      %s281 = scalar_select %p278, %s279, %s280
      %p284 = pneg %p278
      %p285 = scmp.eq.s32.totalorder %s23, 1
      %p286 = por %p284, %p285
      %p287 = scmp.ne.s32.totalorder %s279, %s282
      %p288 = scmp.eq.s32.totalorder %s23, 0
      %p289 = por %p287, %p288
      %p290 = scmp.ne.s32.totalorder %s279, %s282
      %p291 = scmp.eq.s32.totalorder %s28, 1
      %p292 = por %p290, %p291
      %p293 = scmp.ne.s32.totalorder %s282, %s283
      %p294 = scmp.eq.s32.totalorder %s28, 0
      %p295 = por %p293, %p294
      %p296 = scmp.ne.s32.totalorder %s282, %s283
      %p297 = scmp.eq.s32.totalorder %s29, 1
      %p298 = por %p296, %p297
      %p300 = scmp.ne.s32.totalorder %s283, %s299
      %p301 = scmp.eq.s32.totalorder %s29, 0
      %p302 = por %p300, %p301
      %s303 = ssub.s32 %s31, %s38
      %p304 = scmp.eq.s32.totalorder %s303, 0
      %s306 = sadd.s32 %s305, 1
      %s307 = scalar_select %p304, %s305, %s306
      %p310 = pneg %p304
      %p311 = scmp.eq.s32.totalorder %s23, 1
      %p312 = por %p310, %p311
      %p313 = scmp.ne.s32.totalorder %s305, %s308
      %p314 = scmp.eq.s32.totalorder %s23, 0
      %p315 = por %p313, %p314
      %p316 = scmp.ne.s32.totalorder %s305, %s308
      %p317 = scmp.eq.s32.totalorder %s28, 1
      %p318 = por %p316, %p317
      %p319 = scmp.ne.s32.totalorder %s308, %s309
      %p320 = scmp.eq.s32.totalorder %s28, 0
      %p321 = por %p319, %p320
      %p322 = scmp.ne.s32.totalorder %s308, %s309
      %p323 = scmp.eq.s32.totalorder %s29, 1
      %p324 = por %p322, %p323
      %p326 = scmp.ne.s32.totalorder %s309, %s325
      %p327 = scmp.eq.s32.totalorder %s29, 0
      %p328 = por %p326, %p327
      %s329 = ssub.s32 %s31, %s38
      %p330 = scmp.eq.s32.totalorder %s329, 0
      %s332 = sadd.s32 %s331, 1
      %s333 = scalar_select %p330, %s331, %s332
      %p336 = pneg %p330
      %p337 = scmp.eq.s32.totalorder %s23, 1
      %p338 = por %p336, %p337
      %p339 = scmp.ne.s32.totalorder %s331, %s334
      %p340 = scmp.eq.s32.totalorder %s23, 0
      %p341 = por %p339, %p340
      %p342 = scmp.ne.s32.totalorder %s331, %s334
      %p343 = scmp.eq.s32.totalorder %s28, 1
      %p344 = por %p342, %p343
      %p345 = scmp.ne.s32.totalorder %s334, %s335
      %p346 = scmp.eq.s32.totalorder %s28, 0
      %p347 = por %p345, %p346
      %p348 = scmp.ne.s32.totalorder %s334, %s335
      %p349 = scmp.eq.s32.totalorder %s29, 1
      %p350 = por %p348, %p349
      %p352 = scmp.ne.s32.totalorder %s335, %s351
      %p353 = scmp.eq.s32.totalorder %s29, 0
      %p354 = por %p352, %p353
      %s355 = ssub.s32 %s31, %s38
      %p356 = scmp.eq.s32.totalorder %s355, 0
      %s358 = sadd.s32 %s357, 1
      %s359 = scalar_select %p356, %s357, %s358
      %p362 = pneg %p356
      %p363 = scmp.eq.s32.totalorder %s23, 1
      %p364 = por %p362, %p363
      %p365 = scmp.ne.s32.totalorder %s357, %s360
      %p366 = scmp.eq.s32.totalorder %s23, 0
      %p367 = por %p365, %p366
      %p368 = scmp.ne.s32.totalorder %s357, %s360
      %p369 = scmp.eq.s32.totalorder %s28, 1
      %p370 = por %p368, %p369
      %p371 = scmp.ne.s32.totalorder %s360, %s361
      %p372 = scmp.eq.s32.totalorder %s28, 0
      %p373 = por %p371, %p372
      %p374 = scmp.ne.s32.totalorder %s360, %s361
      %p375 = scmp.eq.s32.totalorder %s29, 1
      %p376 = por %p374, %p375
      %p378 = scmp.ne.s32.totalorder %s361, %s377
      %p379 = scmp.eq.s32.totalorder %s29, 0
      %p380 = por %p378, %p379
      %s381 = ssub.s32 %s31, %s38
      %p382 = scmp.eq.s32.totalorder %s381, 0
      %s384 = sadd.s32 %s383, 1
      %s385 = scalar_select %p382, %s383, %s384
      %p388 = pneg %p382
      %p389 = scmp.eq.s32.totalorder %s23, 1
      %p390 = por %p388, %p389
      %p391 = scmp.ne.s32.totalorder %s383, %s386
      %p392 = scmp.eq.s32.totalorder %s23, 0
      %p393 = por %p391, %p392
      %p394 = scmp.ne.s32.totalorder %s383, %s386
      %p395 = scmp.eq.s32.totalorder %s28, 1
      %p396 = por %p394, %p395
      %p397 = scmp.ne.s32.totalorder %s386, %s387
      %p398 = scmp.eq.s32.totalorder %s28, 0
      %p399 = por %p397, %p398
      %p400 = scmp.ne.s32.totalorder %s386, %s387
      %p401 = scmp.eq.s32.totalorder %s29, 1
      %p402 = por %p400, %p401
      %p404 = scmp.ne.s32.totalorder %s387, %s403
      %p405 = scmp.eq.s32.totalorder %s29, 0
      %p406 = por %p404, %p405
      %s407 = ssub.s32 %s30, %s42
      %p408 = scmp.eq.s32.totalorder %s407, 0
      %s410 = sadd.s32 %s409, 1
      %s411 = scalar_select %p408, %s409, %s410
      %p414 = pneg %p408
      %p415 = scmp.eq.s32.totalorder %s23, 1
      %p416 = por %p414, %p415
      %p417 = scmp.ne.s32.totalorder %s409, %s412
      %p418 = scmp.eq.s32.totalorder %s23, 0
      %p419 = por %p417, %p418
      %p420 = scmp.ne.s32.totalorder %s409, %s412
      %p421 = scmp.eq.s32.totalorder %s28, 1
      %p422 = por %p420, %p421
      %p423 = scmp.ne.s32.totalorder %s412, %s413
      %p424 = scmp.eq.s32.totalorder %s28, 0
      %p425 = por %p423, %p424
      %p426 = scmp.ne.s32.totalorder %s412, %s413
      %p427 = scmp.eq.s32.totalorder %s29, 1
      %p428 = por %p426, %p427
      %p430 = scmp.ne.s32.totalorder %s413, %s429
      %p431 = scmp.eq.s32.totalorder %s29, 0
      %p432 = por %p430, %p431
      %p433 = scmp.le.s32.totalorder 1, %s23
      %p434 = scmp.lt.s32.totalorder %s23, 3
      %p435 = pnand %p433, %p434
      %p436 = pneg %p435
      // Predicated region
      $region9: #{tpu_custom_call.1} parent=5 // pred_check
        _
      $region10: #{tpu_custom_call.1} parent=5 // pred_check_branch
        %438 = sbr.rel (%p435) target = $region12
      $region11: #{tpu_custom_call.1} parent=5 // pred_region
        %s439 = ssub.s32 %s23, 1
        // Predicated region
        $region13: #{tpu_custom_call.1} parent=11 // pred_check
          %p440 = pneg %p61
        $region14: #{tpu_custom_call.1} parent=11 // pred_check_branch
          %442 = sbr.rel (%p440) target = $region16
        $region15: #{tpu_custom_call.1} parent=11 // pred_region
          %s443 = smul.u32 2, %s32
          %s445 = ssub.s32 256, 256
          %446 = vsyncadd [#allocation5], %s445
          %s447 = smul.addr %s443, 128
          %s448 = scalar_lea.hbm %s0, %s447
          %s449 = sshll.u32 [#allocation4], 4
          %s450 = int_to_ptr.vmem [resolvable:$true] %s449
          %455 = dma.hbm_to_vmem [thread:$0]  %s448, 256, %s450, [#allocation5], 128, 128, 8
        $region16: #{tpu_custom_call.1} parent=11 // pred_fallthru
          _
        // Predicated region
        $region17: #{tpu_custom_call.1} parent=11 // pred_check
          %p456 = pneg %p87
        $region18: #{tpu_custom_call.1} parent=11 // pred_check_branch
          %458 = sbr.rel (%p456) target = $region20
        $region19: #{tpu_custom_call.1} parent=11 // pred_region
          %s459 = smul.u32 2, %s32
          %s461 = ssub.s32 32, 32
          %462 = vsyncadd [#allocation8], %s461
          %s463 = smul.addr %s459, 16
          %s464 = scalar_lea.hbm %s1, %s463
          %s465 = sshll.u32 [#allocation7], 4
          %s466 = int_to_ptr.vmem [resolvable:$true] %s465
          %471 = dma.hbm_to_vmem [thread:$0]  %s464, 32, %s466, [#allocation8], 16, 16, 1
        $region20: #{tpu_custom_call.1} parent=11 // pred_fallthru
          _
      $region12: #{tpu_custom_call.1} parent=5 // pred_fallthru
        _
      %p472 = scmp.lt.s32.totalorder %s23, 2
      // Predicated region
      $region21: #{tpu_custom_call.1} parent=5 // pred_check
        %p473 = pneg %p472
      $region22: #{tpu_custom_call.1} parent=5 // pred_check_branch
        %475 = sbr.rel (%p473) target = $region24
      $region23: #{tpu_custom_call.1} parent=5 // pred_region
        // Predicated region
        $region25: #{tpu_custom_call.1} parent=23 // pred_check
          %p476 = pneg %p107
        $region26: #{tpu_custom_call.1} parent=23 // pred_check_branch
          %478 = sbr.rel (%p476) target = $region28
        $region27: #{tpu_custom_call.1} parent=23 // pred_region
          %s479 = sand.u32 %s23, 1
          %s480 = scalar_lea.sflag [#allocation5], %s479
          %s481 = sand.u32 %s97, 1
          %s482 = smul.addr %s481, 16
          %s483 = scalar_lea.vmem [#allocation9], %s482
          %s485 = ssub.s32 256, 256
          %486 = vsyncadd %s480, %s485
          %s487 = smul.addr %s31, 4
          %s488 = smul.addr %s487, 64
          %s489 = scalar_lea.hbm %s2, %s488
          %s490 = sshll.u32 %s483, 4
          %s491 = int_to_ptr.vmem [resolvable:$true] %s490
          %496 = dma.hbm_to_vmem [thread:$0]  %s489, 256, %s491, %s480, 64, 64, 4
        $region28: #{tpu_custom_call.1} parent=23 // pred_fallthru
          _
        // Predicated region
        $region29: #{tpu_custom_call.1} parent=23 // pred_check
          %p497 = pneg %p133
        $region30: #{tpu_custom_call.1} parent=23 // pred_check_branch
          %499 = sbr.rel (%p497) target = $region32
        $region31: #{tpu_custom_call.1} parent=23 // pred_region
          %s500 = sand.u32 %s23, 1
          %s501 = scalar_lea.sflag [#allocation5], %s500
          %s502 = sand.u32 %s123, 1
          %s503 = scalar_lea.vmem [#allocation10], %s502
          %s505 = ssub.s32 16, 16
          %506 = vsyncadd %s501, %s505
          %s507 = smul.addr %s31, 16
          %s508 = scalar_lea.hbm %s3, %s507
          %s510 = sshll.u32 %s503, 4
          %s511 = int_to_ptr.vmem [resolvable:$true] %s510
          %513 = dma.hbm_to_vmem [thread:$0]  %s508, 16, %s511, %s501
        $region32: #{tpu_custom_call.1} parent=23 // pred_fallthru
          _
        // Predicated region
        $region33: #{tpu_custom_call.1} parent=23 // pred_check
          %p514 = pneg %p159
        $region34: #{tpu_custom_call.1} parent=23 // pred_check_branch
          %516 = sbr.rel (%p514) target = $region36
        $region35: #{tpu_custom_call.1} parent=23 // pred_region
          %s517 = sand.u32 %s23, 1
          %s518 = scalar_lea.sflag [#allocation5], %s517
          %s519 = sand.u32 %s149, 1
          %s520 = smul.addr %s519, 16
          %s521 = scalar_lea.vmem [#allocation11], %s520
          %s523 = ssub.s32 256, 256
          %524 = vsyncadd %s518, %s523
          %s525 = smul.addr %s31, 4
          %s526 = smul.addr %s525, 64
          %s527 = scalar_lea.hbm %s4, %s526
          %s528 = sshll.u32 %s521, 4
          %s529 = int_to_ptr.vmem [resolvable:$true] %s528
          %534 = dma.hbm_to_vmem [thread:$0]  %s527, 256, %s529, %s518, 64, 64, 4
        $region36: #{tpu_custom_call.1} parent=23 // pred_fallthru
          _
        // Predicated region
        $region37: #{tpu_custom_call.1} parent=23 // pred_check
          %p535 = pneg %p185
        $region38: #{tpu_custom_call.1} parent=23 // pred_check_branch
          %537 = sbr.rel (%p535) target = $region40
        $region39: #{tpu_custom_call.1} parent=23 // pred_region
          %s538 = sand.u32 %s23, 1
          %s539 = scalar_lea.sflag [#allocation5], %s538
          %s540 = sand.u32 %s175, 1
          %s541 = scalar_lea.vmem [#allocation12], %s540
          %s543 = ssub.s32 16, 16
          %544 = vsyncadd %s539, %s543
          %s545 = smul.addr %s31, 16
          %s546 = scalar_lea.hbm %s5, %s545
          %s548 = sshll.u32 %s541, 4
          %s549 = int_to_ptr.vmem [resolvable:$true] %s548
          %551 = dma.hbm_to_vmem [thread:$0]  %s546, 16, %s549, %s539
        $region40: #{tpu_custom_call.1} parent=23 // pred_fallthru
          _
        // Predicated region
        $region41: #{tpu_custom_call.1} parent=23 // pred_check
          %p552 = pneg %p211
        $region42: #{tpu_custom_call.1} parent=23 // pred_check_branch
          %554 = sbr.rel (%p552) target = $region44
        $region43: #{tpu_custom_call.1} parent=23 // pred_region
          %s555 = sand.u32 %s23, 1
          %s556 = scalar_lea.sflag [#allocation5], %s555
          %s557 = sand.u32 %s201, 1
          %s558 = scalar_lea.vmem [#allocation13], %s557
          %s560 = ssub.s32 16, 16
          %561 = vsyncadd %s556, %s560
          %s562 = smul.addr %s31, 16
          %s563 = scalar_lea.hbm %s6, %s562
          %s565 = sshll.u32 %s558, 4
          %s566 = int_to_ptr.vmem [resolvable:$true] %s565
          %568 = dma.hbm_to_vmem [thread:$0]  %s563, 16, %s566, %s556
        $region44: #{tpu_custom_call.1} parent=23 // pred_fallthru
          _
        // Predicated region
        $region45: #{tpu_custom_call.1} parent=23 // pred_check
          %p569 = pneg %p237
        $region46: #{tpu_custom_call.1} parent=23 // pred_check_branch
          %571 = sbr.rel (%p569) target = $region48
        $region47: #{tpu_custom_call.1} parent=23 // pred_region
          %s572 = sand.u32 %s23, 1
          %s573 = scalar_lea.sflag [#allocation5], %s572
          %s574 = sand.u32 %s227, 1
          %s575 = scalar_lea.vmem [#allocation14], %s574
          %s577 = ssub.s32 16, 16
          %578 = vsyncadd %s573, %s577
          %s579 = smul.addr %s31, 16
          %s580 = scalar_lea.hbm %s7, %s579
          %s582 = sshll.u32 %s575, 4
          %s583 = int_to_ptr.vmem [resolvable:$true] %s582
          %585 = dma.hbm_to_vmem [thread:$0]  %s580, 16, %s583, %s573
        $region48: #{tpu_custom_call.1} parent=23 // pred_fallthru
          _
        // Predicated region
        $region49: #{tpu_custom_call.1} parent=23 // pred_check
          %p586 = pneg %p263
        $region50: #{tpu_custom_call.1} parent=23 // pred_check_branch
          %588 = sbr.rel (%p586) target = $region52
        $region51: #{tpu_custom_call.1} parent=23 // pred_region
          %s589 = sand.u32 %s23, 1
          %s590 = scalar_lea.sflag [#allocation5], %s589
          %s591 = sand.u32 %s253, 1
          %s592 = smul.addr %s591, 16
          %s593 = scalar_lea.vmem [#allocation15], %s592
          %s595 = ssub.s32 256, 256
          %596 = vsyncadd %s590, %s595
          %s597 = smul.addr %s31, 4
          %s598 = smul.addr %s597, 64
          %s599 = scalar_lea.hbm %s8, %s598
          %s600 = sshll.u32 %s593, 4
          %s601 = int_to_ptr.vmem [resolvable:$true] %s600
          %606 = dma.hbm_to_vmem [thread:$0]  %s599, 256, %s601, %s590, 64, 64, 4
        $region52: #{tpu_custom_call.1} parent=23 // pred_fallthru
          _
        // Predicated region
        $region53: #{tpu_custom_call.1} parent=23 // pred_check
          %p607 = pneg %p289
        $region54: #{tpu_custom_call.1} parent=23 // pred_check_branch
          %609 = sbr.rel (%p607) target = $region56
        $region55: #{tpu_custom_call.1} parent=23 // pred_region
          %s610 = sand.u32 %s23, 1
          %s611 = scalar_lea.sflag [#allocation5], %s610
          %s612 = sand.u32 %s279, 1
          %s613 = scalar_lea.vmem [#allocation16], %s612
          %s615 = ssub.s32 16, 16
          %616 = vsyncadd %s611, %s615
          %s617 = smul.addr %s31, 16
          %s618 = scalar_lea.hbm %s9, %s617
          %s620 = sshll.u32 %s613, 4
          %s621 = int_to_ptr.vmem [resolvable:$true] %s620
          %623 = dma.hbm_to_vmem [thread:$0]  %s618, 16, %s621, %s611
        $region56: #{tpu_custom_call.1} parent=23 // pred_fallthru
          _
        // Predicated region
        $region57: #{tpu_custom_call.1} parent=23 // pred_check
          %p624 = pneg %p315
        $region58: #{tpu_custom_call.1} parent=23 // pred_check_branch
          %626 = sbr.rel (%p624) target = $region60
        $region59: #{tpu_custom_call.1} parent=23 // pred_region
          %s627 = sand.u32 %s23, 1
          %s628 = scalar_lea.sflag [#allocation5], %s627
          %s629 = sand.u32 %s305, 1
          %s630 = smul.addr %s629, 64
          %s631 = scalar_lea.vmem [#allocation17], %s630
          %s633 = ssub.s32 1024, 1024
          %634 = vsyncadd %s628, %s633
          %s635 = smul.addr %s31, 16
          %s636 = smul.addr %s635, 64
          %s637 = scalar_lea.hbm %s10, %s636
          %s638 = sshll.u32 %s631, 4
          %s639 = int_to_ptr.vmem [resolvable:$true] %s638
          %644 = dma.hbm_to_vmem [thread:$0]  %s637, 1024, %s639, %s628, 64, 64, 4
        $region60: #{tpu_custom_call.1} parent=23 // pred_fallthru
          _
        // Predicated region
        $region61: #{tpu_custom_call.1} parent=23 // pred_check
          %p645 = pneg %p341
        $region62: #{tpu_custom_call.1} parent=23 // pred_check_branch
          %647 = sbr.rel (%p645) target = $region64
        $region63: #{tpu_custom_call.1} parent=23 // pred_region
          %s648 = sand.u32 %s23, 1
          %s649 = scalar_lea.sflag [#allocation5], %s648
          %s650 = sand.u32 %s331, 1
          %s651 = scalar_lea.vmem [#allocation18], %s650
          %s653 = ssub.s32 16, 16
          %654 = vsyncadd %s649, %s653
          %s655 = smul.addr %s31, 16
          %s656 = scalar_lea.hbm %s11, %s655
          %s658 = sshll.u32 %s651, 4
          %s659 = int_to_ptr.vmem [resolvable:$true] %s658
          %661 = dma.hbm_to_vmem [thread:$0]  %s656, 16, %s659, %s649
        $region64: #{tpu_custom_call.1} parent=23 // pred_fallthru
          _
        // Predicated region
        $region65: #{tpu_custom_call.1} parent=23 // pred_check
          %p662 = pneg %p367
        $region66: #{tpu_custom_call.1} parent=23 // pred_check_branch
          %664 = sbr.rel (%p662) target = $region68
        $region67: #{tpu_custom_call.1} parent=23 // pred_region
          %s665 = sand.u32 %s23, 1
          %s666 = scalar_lea.sflag [#allocation5], %s665
          %s667 = sand.u32 %s357, 1
          %s668 = scalar_lea.vmem [#allocation19], %s667
          %s670 = ssub.s32 16, 16
          %671 = vsyncadd %s666, %s670
          %s672 = smul.addr %s31, 16
          %s673 = scalar_lea.hbm %s12, %s672
          %s675 = sshll.u32 %s668, 4
          %s676 = int_to_ptr.vmem [resolvable:$true] %s675
          %678 = dma.hbm_to_vmem [thread:$0]  %s673, 16, %s676, %s666
        $region68: #{tpu_custom_call.1} parent=23 // pred_fallthru
          _
        // Predicated region
        $region69: #{tpu_custom_call.1} parent=23 // pred_check
          %p679 = pneg %p393
        $region70: #{tpu_custom_call.1} parent=23 // pred_check_branch
          %681 = sbr.rel (%p679) target = $region72
        $region71: #{tpu_custom_call.1} parent=23 // pred_region
          %s682 = sand.u32 %s23, 1
          %s683 = scalar_lea.sflag [#allocation5], %s682
          %s684 = sand.u32 %s383, 1
          %s685 = scalar_lea.vmem [#allocation20], %s684
          %s687 = ssub.s32 16, 16
          %688 = vsyncadd %s683, %s687
          %s689 = smul.addr %s31, 16
          %s690 = scalar_lea.hbm %s13, %s689
          %s692 = sshll.u32 %s685, 4
          %s693 = int_to_ptr.vmem [resolvable:$true] %s692
          %695 = dma.hbm_to_vmem [thread:$0]  %s690, 16, %s693, %s683
        $region72: #{tpu_custom_call.1} parent=23 // pred_fallthru
          _
      $region24: #{tpu_custom_call.1} parent=5 // pred_fallthru
        _
      %p696 = scmp.le.s32.totalorder 1, %s23
      %p697 = scmp.lt.s32.totalorder %s23, 3
      %p698 = pnand %p696, %p697
      %p699 = pneg %p698
      // Predicated region
      $region73: #{tpu_custom_call.1} parent=5 // pred_check
        _
      $region74: #{tpu_custom_call.1} parent=5 // pred_check_branch
        %701 = sbr.rel (%p698) target = $region76
      $region75: #{tpu_custom_call.1} parent=5 // pred_region
        %s702 = ssub.s32 %s23, 1
        // Predicated region
        $region77: #{tpu_custom_call.1} parent=75 // pred_check
          %p703 = pneg %p61
        $region78: #{tpu_custom_call.1} parent=75 // pred_check_branch
          %705 = sbr.rel (%p703) target = $region80
        $region79: #{tpu_custom_call.1} parent=75 // pred_region
          %706 = dma.done [#allocation5], 256
        $region80: #{tpu_custom_call.1} parent=75 // pred_fallthru
          _
        // Predicated region
        $region81: #{tpu_custom_call.1} parent=75 // pred_check
          %p707 = pneg %p87
        $region82: #{tpu_custom_call.1} parent=75 // pred_check_branch
          %709 = sbr.rel (%p707) target = $region84
        $region83: #{tpu_custom_call.1} parent=75 // pred_region
          %710 = dma.done [#allocation8], 32
        $region84: #{tpu_custom_call.1} parent=75 // pred_fallthru
          _
        %s711 = sand.u32 %s28, 1
        %s712 = scalar_lea.sflag [#allocation5], %s711
        %s713 = sand.u32 %s100, 1
        %s714 = smul.addr %s713, 16
        %s715 = scalar_lea.vmem [#allocation9], %s714
        // Predicated region
        $region85: #{tpu_custom_call.1} parent=75 // pred_check
          %p716 = pneg %p113
        $region86: #{tpu_custom_call.1} parent=75 // pred_check_branch
          %718 = sbr.rel (%p716) target = $region88
        $region87: #{tpu_custom_call.1} parent=75 // pred_region
          %719 = dma.done %s712, 256
        $region88: #{tpu_custom_call.1} parent=75 // pred_fallthru
          _
        %s720 = sand.u32 %s28, 1
        %s721 = scalar_lea.sflag [#allocation5], %s720
        %s722 = sand.u32 %s126, 1
        %s723 = scalar_lea.vmem [#allocation10], %s722
        // Predicated region
        $region89: #{tpu_custom_call.1} parent=75 // pred_check
          %p724 = pneg %p139
        $region90: #{tpu_custom_call.1} parent=75 // pred_check_branch
          %726 = sbr.rel (%p724) target = $region92
        $region91: #{tpu_custom_call.1} parent=75 // pred_region
          %727 = dma.done %s721, 16
        $region92: #{tpu_custom_call.1} parent=75 // pred_fallthru
          _
        %s728 = sand.u32 %s28, 1
        %s729 = scalar_lea.sflag [#allocation5], %s728
        %s730 = sand.u32 %s152, 1
        %s731 = smul.addr %s730, 16
        %s732 = scalar_lea.vmem [#allocation11], %s731
        // Predicated region
        $region93: #{tpu_custom_call.1} parent=75 // pred_check
          %p733 = pneg %p165
        $region94: #{tpu_custom_call.1} parent=75 // pred_check_branch
          %735 = sbr.rel (%p733) target = $region96
        $region95: #{tpu_custom_call.1} parent=75 // pred_region
          %736 = dma.done %s729, 256
        $region96: #{tpu_custom_call.1} parent=75 // pred_fallthru
          _
        %s737 = sand.u32 %s28, 1
        %s738 = scalar_lea.sflag [#allocation5], %s737
        %s739 = sand.u32 %s178, 1
        %s740 = scalar_lea.vmem [#allocation12], %s739
        // Predicated region
        $region97: #{tpu_custom_call.1} parent=75 // pred_check
          %p741 = pneg %p191
        $region98: #{tpu_custom_call.1} parent=75 // pred_check_branch
          %743 = sbr.rel (%p741) target = $region100
        $region99: #{tpu_custom_call.1} parent=75 // pred_region
          %744 = dma.done %s738, 16
        $region100: #{tpu_custom_call.1} parent=75 // pred_fallthru
          _
        %s745 = sand.u32 %s28, 1
        %s746 = scalar_lea.sflag [#allocation5], %s745
        %s747 = sand.u32 %s204, 1
        %s748 = scalar_lea.vmem [#allocation13], %s747
        // Predicated region
        $region101: #{tpu_custom_call.1} parent=75 // pred_check
          %p749 = pneg %p217
        $region102: #{tpu_custom_call.1} parent=75 // pred_check_branch
          %751 = sbr.rel (%p749) target = $region104
        $region103: #{tpu_custom_call.1} parent=75 // pred_region
          %752 = dma.done %s746, 16
        $region104: #{tpu_custom_call.1} parent=75 // pred_fallthru
          _
        %s753 = sand.u32 %s28, 1
        %s754 = scalar_lea.sflag [#allocation5], %s753
        %s755 = sand.u32 %s230, 1
        %s756 = scalar_lea.vmem [#allocation14], %s755
        // Predicated region
        $region105: #{tpu_custom_call.1} parent=75 // pred_check
          %p757 = pneg %p243
        $region106: #{tpu_custom_call.1} parent=75 // pred_check_branch
          %759 = sbr.rel (%p757) target = $region108
        $region107: #{tpu_custom_call.1} parent=75 // pred_region
          %760 = dma.done %s754, 16
        $region108: #{tpu_custom_call.1} parent=75 // pred_fallthru
          _
        %s761 = sand.u32 %s28, 1
        %s762 = scalar_lea.sflag [#allocation5], %s761
        %s763 = sand.u32 %s256, 1
        %s764 = smul.addr %s763, 16
        %s765 = scalar_lea.vmem [#allocation15], %s764
        // Predicated region
        $region109: #{tpu_custom_call.1} parent=75 // pred_check
          %p766 = pneg %p269
        $region110: #{tpu_custom_call.1} parent=75 // pred_check_branch
          %768 = sbr.rel (%p766) target = $region112
        $region111: #{tpu_custom_call.1} parent=75 // pred_region
          %769 = dma.done %s762, 256
        $region112: #{tpu_custom_call.1} parent=75 // pred_fallthru
          _
        %s770 = sand.u32 %s28, 1
        %s771 = scalar_lea.sflag [#allocation5], %s770
        %s772 = sand.u32 %s282, 1
        %s773 = scalar_lea.vmem [#allocation16], %s772
        // Predicated region
        $region113: #{tpu_custom_call.1} parent=75 // pred_check
          %p774 = pneg %p295
        $region114: #{tpu_custom_call.1} parent=75 // pred_check_branch
          %776 = sbr.rel (%p774) target = $region116
        $region115: #{tpu_custom_call.1} parent=75 // pred_region
          %777 = dma.done %s771, 16
        $region116: #{tpu_custom_call.1} parent=75 // pred_fallthru
          _
        %s778 = sand.u32 %s28, 1
        %s779 = scalar_lea.sflag [#allocation5], %s778
        %s780 = sand.u32 %s308, 1
        %s781 = smul.addr %s780, 64
        %s782 = scalar_lea.vmem [#allocation17], %s781
        // Predicated region
        $region117: #{tpu_custom_call.1} parent=75 // pred_check
          %p783 = pneg %p321
        $region118: #{tpu_custom_call.1} parent=75 // pred_check_branch
          %785 = sbr.rel (%p783) target = $region120
        $region119: #{tpu_custom_call.1} parent=75 // pred_region
          %786 = dma.done %s779, 1024
        $region120: #{tpu_custom_call.1} parent=75 // pred_fallthru
          _
        %s787 = sand.u32 %s28, 1
        %s788 = scalar_lea.sflag [#allocation5], %s787
        %s789 = sand.u32 %s334, 1
        %s790 = scalar_lea.vmem [#allocation18], %s789
        // Predicated region
        $region121: #{tpu_custom_call.1} parent=75 // pred_check
          %p791 = pneg %p347
        $region122: #{tpu_custom_call.1} parent=75 // pred_check_branch
          %793 = sbr.rel (%p791) target = $region124
        $region123: #{tpu_custom_call.1} parent=75 // pred_region
          %794 = dma.done %s788, 16
        $region124: #{tpu_custom_call.1} parent=75 // pred_fallthru
          _
        %s795 = sand.u32 %s28, 1
        %s796 = scalar_lea.sflag [#allocation5], %s795
        %s797 = sand.u32 %s360, 1
        %s798 = scalar_lea.vmem [#allocation19], %s797
        // Predicated region
        $region125: #{tpu_custom_call.1} parent=75 // pred_check
          %p799 = pneg %p373
        $region126: #{tpu_custom_call.1} parent=75 // pred_check_branch
          %801 = sbr.rel (%p799) target = $region128
        $region127: #{tpu_custom_call.1} parent=75 // pred_region
          %802 = dma.done %s796, 16
        $region128: #{tpu_custom_call.1} parent=75 // pred_fallthru
          _
        %s803 = sand.u32 %s28, 1
        %s804 = scalar_lea.sflag [#allocation5], %s803
        %s805 = sand.u32 %s386, 1
        %s806 = scalar_lea.vmem [#allocation20], %s805
        // Predicated region
        $region129: #{tpu_custom_call.1} parent=75 // pred_check
          %p807 = pneg %p399
        $region130: #{tpu_custom_call.1} parent=75 // pred_check_branch
          %809 = sbr.rel (%p807) target = $region132
        $region131: #{tpu_custom_call.1} parent=75 // pred_region
          %810 = dma.done %s804, 16
        $region132: #{tpu_custom_call.1} parent=75 // pred_fallthru
          _
        %p811 = pneg %p61
        %p812 = pneg %p58
        %p813 = pneg %p87
        %p814 = pneg %p84
        %s815 = sand.u32 %s28, 1
        %s816 = scalar_lea.sflag [#allocation5], %s815
        %s817 = sand.u32 %s100, 1
        %s818 = smul.addr %s817, 16
        %s819 = scalar_lea.vmem [#allocation9], %s818
        %p820 = pneg %p113
        %p821 = pneg %p110
        %s822 = sand.u32 %s28, 1
        %s823 = scalar_lea.sflag [#allocation5], %s822
        %s824 = sand.u32 %s126, 1
        %s825 = scalar_lea.vmem [#allocation10], %s824
        %p826 = pneg %p139
        %p827 = pneg %p136
        %s828 = sand.u32 %s28, 1
        %s829 = scalar_lea.sflag [#allocation5], %s828
        %s830 = sand.u32 %s152, 1
        %s831 = smul.addr %s830, 16
        %s832 = scalar_lea.vmem [#allocation11], %s831
        %p833 = pneg %p165
        %p834 = pneg %p162
        %s835 = sand.u32 %s28, 1
        %s836 = scalar_lea.sflag [#allocation5], %s835
        %s837 = sand.u32 %s178, 1
        %s838 = scalar_lea.vmem [#allocation12], %s837
        %p839 = pneg %p191
        %p840 = pneg %p188
        %s841 = sand.u32 %s28, 1
        %s842 = scalar_lea.sflag [#allocation5], %s841
        %s843 = sand.u32 %s204, 1
        %s844 = scalar_lea.vmem [#allocation13], %s843
        %p845 = pneg %p217
        %p846 = pneg %p214
        %s847 = sand.u32 %s28, 1
        %s848 = scalar_lea.sflag [#allocation5], %s847
        %s849 = sand.u32 %s230, 1
        %s850 = scalar_lea.vmem [#allocation14], %s849
        %p851 = pneg %p243
        %p852 = pneg %p240
        %s853 = sand.u32 %s28, 1
        %s854 = scalar_lea.sflag [#allocation5], %s853
        %s855 = sand.u32 %s256, 1
        %s856 = smul.addr %s855, 16
        %s857 = scalar_lea.vmem [#allocation15], %s856
        %p858 = pneg %p269
        %p859 = pneg %p266
        %s860 = sand.u32 %s28, 1
        %s861 = scalar_lea.sflag [#allocation5], %s860
        %s862 = sand.u32 %s282, 1
        %s863 = scalar_lea.vmem [#allocation16], %s862
        %p864 = pneg %p295
        %p865 = pneg %p292
        %s866 = sand.u32 %s28, 1
        %s867 = scalar_lea.sflag [#allocation5], %s866
        %s868 = sand.u32 %s308, 1
        %s869 = smul.addr %s868, 64
        %s870 = scalar_lea.vmem [#allocation17], %s869
        %p871 = pneg %p321
        %p872 = pneg %p318
        %s873 = sand.u32 %s28, 1
        %s874 = scalar_lea.sflag [#allocation5], %s873
        %s875 = sand.u32 %s334, 1
        %s876 = scalar_lea.vmem [#allocation18], %s875
        %p877 = pneg %p347
        %p878 = pneg %p344
        %s879 = sand.u32 %s28, 1
        %s880 = scalar_lea.sflag [#allocation5], %s879
        %s881 = sand.u32 %s360, 1
        %s882 = scalar_lea.vmem [#allocation19], %s881
        %p883 = pneg %p373
        %p884 = pneg %p370
        %s885 = sand.u32 %s28, 1
        %s886 = scalar_lea.sflag [#allocation5], %s885
        %s887 = sand.u32 %s386, 1
        %s888 = scalar_lea.vmem [#allocation20], %s887
        %p889 = pneg %p399
        %p890 = pneg %p396
        %p891 = pneg %p425
        %p892 = pneg %p422
        %s893 = smul.u32 2, %s32
        %s894 = smul.u32 2, %s32
        %s895 = smul.u32 2, %s32
        %p897 = scmp.eq.s32.totalorder %s33, 0
        // Predicated region
        $region133: #{tpu_custom_call.1} parent=75 // pred_check
          %p898 = pneg %p897
        $region134: #{tpu_custom_call.1} parent=75 // pred_check_branch
          %900 = sbr.rel (%p898) target = $region136
        $region135: #{tpu_custom_call.1} parent=75 // pred_region
          %v901 = vld [vmem:[#allocation4] sm:$0xff]
          %v902 = vld [vmem:[#allocation4 + $0x8] sm:$0xff]
          %vm903 = vcmask 261120
          %904 = vst.msk [vmem:[#allocation21] sm:$0xff] %vm903, %v901
          %905 = vst.msk [vmem:[#allocation21 + $0x8] sm:$0xff] %vm903, %v902
          %v906 = vld [vmem:[#allocation7] sm:$0x1]
          %v907 = vld [vmem:[#allocation7 + $0x1] sm:$0x1]
          %vm908 = vcmp.gt.f32.partialorder %v906, 0.5
          %vm909 = vcmp.gt.f32.partialorder %v907, 0.5
          %v910 = vlaneseq
          %v911 = vshrl.u32 %v910, 7
          %v912 = vlaneseq
          %v913 = vand.u32 %v912, 127
          %vm914 = vcmp.gt.s32.totalorder %v913, %v911
          %v915 = vsel %vm914, 1, 0
          %vm916 = vcmp.eq.s32.totalorder %v915, 1
          %v917 = vsel %vm908, 1, 0
          %v918 = vsel %vm909, 1, 0
          %v919 = vlaneseq
          %v920 = vshrl.u32 %v919, 7
          %v921 = vsub.s32 0, %v920
          %v922 = vrot.slane %v917, %v921
          %v923 = vlaneseq
          %v924 = vshrl.u32 %v923, 7
          %v925 = vsub.s32 0, %v924
          %v926 = vrot.slane %v918, %v925
          %vm927 = vcmp.eq.s32.totalorder %v922, 1
          %vm928 = vcmp.eq.s32.totalorder %v926, 1
          %vm929 = vmor %vm916, %vm927
          %vm930 = vmor %vm916, %vm928
          %v931 = vsel %vm929, -1e+30, 0.0
          %v932 = vsel %vm930, -1e+30, 0.0
          %vm933 = vcmask 64512
          %934 = vst.msk [vmem:[#allocation2] sm:$0xff] %vm933, %v931
          %935 = vst.msk [vmem:[#allocation2 + $0x8] sm:$0xff] %vm933, %v932
          %v936 = vsel %vm908, 1.0, 0.0
          %v937 = vsel %vm909, 1.0, 0.0
          %vm938 = vcmask 57344
          %v939 = vsel %vm938, %v936, inf
          %940 = vmin.xlane.f32.xlu0 %v939
          %v941 = vpop.xlane.xlu0 %940
          %v942 = vsel %vm938, %v937, inf
          %943 = vmin.xlane.f32.xlu0 %v942
          %v944 = vpop.xlane.xlu0 %943
          %vm945 = vcmp.gt.f32.partialorder %v941, 0.0
          %vm946 = vcmp.gt.f32.partialorder %v944, 0.0
          %v947 = vsel %vm945, 0.0, 1.0
          %v948 = vsel %vm946, 0.0, 1.0
          %vm949 = vcmask 0
          %950 = vst.msk [vmem:[#allocation3] sm:$0x1] %vm949, %v947
          %951 = vst.msk [vmem:[#allocation3 + $0x1] sm:$0x1] %vm949, %v948
        $region136: #{tpu_custom_call.1} parent=75 // pred_fallthru
          _
        %v952 = vld [vmem:[#allocation21] sm:$0xff]
        %v953 = vld [vmem:[#allocation21 + $0x8] sm:$0xff]
        %v954 = vpack.c.bf16 %v953, %v952
        %v955 = vld [vmem:[%s715] sm:$0xf]
        %v956 = vld [vmem:[%s715 + $0x4] sm:$0xf]
        %v957 = vld [vmem:[%s715 + $0x8] sm:$0xf]
        %v958 = vld [vmem:[%s715 + $0xc] sm:$0xf]
        %v959 = vld [vmem:[%s723] sm:$0x1]
        %v961 = vlaneseq
        %v962 = vshrl.u32 %v961, 7
        %v963 = vsub.s32 0, %v962
        %v964 = vrot.slane %v959, %v963
        %v970 = vunpack.c.l.b16 %v955
        %v971 = vunpack.c.l.b16 %v956
        %v972 = vunpack.c.l.b16 %v957
        %v973 = vunpack.c.l.b16 %v958
        %v974 = vpack.c.b16 %v971, %v970
        %v975 = vpack.c.b16 %v973, %v972
        %vm978 = vcmask 261120
        %v980 = vsel %vm978, %v954, 0
        %982 = vmatprep.subr.bf16.mxu0 0
        %983 = vmatpush1.bf16.msra.mxu0 %v974
        %984 = vmatprep.subr.bf16.mxu0 0
        %985 = vmatpush1.bf16.msra.mxu0 %v975
        %986 = vmatprep.subr.bf16.mxu0 0
        %987 = vmatpush1.bf16.msra.mxu0 0
        %988 = vmatprep.subr.bf16.mxu0 0
        %989 = vmatpush1.bf16.msra.mxu0 0
        %990 = vmatprep.subr.bf16.mxu0 0
        %991 = vmatpush1.bf16.msra.mxu0 0
        %992 = vmatprep.subr.bf16.mxu0 0
        %993 = vmatpush1.bf16.msra.mxu0 0
        %994 = vmatprep.subr.bf16.mxu0 0
        %995 = vmatpush1.bf16.msra.mxu0 0
        %996 = vmatprep.subr.bf16.mxu0 0
        %997 = vmatpush1.bf16.msra.mxu0 0
        %998 = vmatprep.subr.bf16.mxu0 0
        %999 = vmatpush1.bf16.msra.mxu0 0
        %1000 = vmatprep.subr.bf16.mxu0 0
        %1001 = vmatpush1.bf16.msra.mxu0 0
        %1002 = vmatprep.subr.bf16.mxu0 0
        %1003 = vmatpush1.bf16.msra.mxu0 0
        %1004 = vmatprep.subr.bf16.mxu0 0
        %1005 = vmatpush1.bf16.msra.mxu0 0
        %1006 = vmatprep.subr.bf16.mxu0 0
        %1007 = vmatpush1.bf16.msra.mxu0 0
        %1008 = vmatprep.subr.bf16.mxu0 0
        %1009 = vmatpush1.bf16.msra.mxu0 0
        %1010 = vmatprep.subr.bf16.mxu0 0
        %1011 = vmatpush1.bf16.msra.mxu0 0
        %1012 = vmatprep.subr.bf16.mxu0 0
        %1013 = vmatpush1.bf16.msra.mxu0 0
        %1014 = vmatprep.mubr.bf16.mxu0 0
        %1015 = vmatmul.mubr.bf16.gmra.mrb[0].mxu0 %v980
        %v1016 = vpop.f32.mrb[0].mxu0
        %v1017 = vadd.f32 %v964, %v1016
        %v1018 = vpop.f32.mrb[0].mxu0
        %v1019 = vpop.f32.mrb[0].mxu0
        %v1020 = vadd.f32 %v964, %v1019
        %v1021 = vpop.f32.mrb[0].mxu0
        %1022 = vdwg.mxu0
        %1025 = vrot.lane.b32.xlu0 %v1017, 120
        %v1026 = vpop.permute.xlu0 %1025
        %1027 = vrot.lane.b32.xlu0 %v1020, 120
        %v1028 = vpop.permute.xlu0 %1027
        %1031 = vrot.lane.b32.xlu0 %v1017, 112
        %v1032 = vpop.permute.xlu0 %1031
        %1033 = vrot.lane.b32.xlu0 %v1020, 112
        %v1034 = vpop.permute.xlu0 %1033
        %1037 = vrot.lane.b32.xlu0 %v1017, 104
        %v1038 = vpop.permute.xlu0 %1037
        %1039 = vrot.lane.b32.xlu0 %v1020, 104
        %v1040 = vpop.permute.xlu0 %1039
        %1043 = vrot.lane.b32.xlu0 %v1017, 96
        %v1044 = vpop.permute.xlu0 %1043
        %1045 = vrot.lane.b32.xlu0 %v1020, 96
        %v1046 = vpop.permute.xlu0 %1045
        %1049 = vrot.lane.b32.xlu0 %v1017, 88
        %v1050 = vpop.permute.xlu0 %1049
        %1051 = vrot.lane.b32.xlu0 %v1020, 88
        %v1052 = vpop.permute.xlu0 %1051
        %1055 = vrot.lane.b32.xlu0 %v1017, 80
        %v1056 = vpop.permute.xlu0 %1055
        %1057 = vrot.lane.b32.xlu0 %v1020, 80
        %v1058 = vpop.permute.xlu0 %1057
        %1061 = vrot.lane.b32.xlu0 %v1017, 72
        %v1062 = vpop.permute.xlu0 %1061
        %1063 = vrot.lane.b32.xlu0 %v1020, 72
        %v1064 = vpop.permute.xlu0 %1063
        %1067 = vrot.lane.b32.xlu0 %v1017, 64
        %v1068 = vpop.permute.xlu0 %1067
        %1069 = vrot.lane.b32.xlu0 %v1020, 64
        %v1070 = vpop.permute.xlu0 %1069
        %1073 = vrot.lane.b32.xlu0 %v1017, 56
        %v1074 = vpop.permute.xlu0 %1073
        %1075 = vrot.lane.b32.xlu0 %v1020, 56
        %v1076 = vpop.permute.xlu0 %1075
        %1079 = vrot.lane.b32.xlu0 %v1017, 48
        %v1080 = vpop.permute.xlu0 %1079
        %1081 = vrot.lane.b32.xlu0 %v1020, 48
        %v1082 = vpop.permute.xlu0 %1081
        %1085 = vrot.lane.b32.xlu0 %v1017, 40
        %v1086 = vpop.permute.xlu0 %1085
        %1087 = vrot.lane.b32.xlu0 %v1020, 40
        %v1088 = vpop.permute.xlu0 %1087
        %v1091 = vcombine.low %v1017, %v1032
        %v1092 = vcombine.high %v1017, %v1032
        %v1094 = vunpack.c.l.s4 1983009808
        %v1095 = vunpack.c.0.s8 %v1094
        %v1096 = vlaneseq
        %v1097 = vshrl.u32 %v1096, 7
        %v1098 = vsub.s32 %v1095, %v1097
        %v1099 = vrot.slane %v1091, %v1098
        %v1101 = vunpack.c.l.s4 1983009808
        %v1102 = vunpack.c.0.s8 %v1101
        %v1103 = vlaneseq
        %v1104 = vshrl.u32 %v1103, 7
        %v1105 = vsub.s32 %v1102, %v1104
        %v1106 = vrot.slane %v1092, %v1105
        %v1107 = vcombine.low %v1026, %v1038
        %v1108 = vcombine.high %v1026, %v1038
        %v1110 = vunpack.c.l.s4 1983009808
        %v1111 = vunpack.c.0.s8 %v1110
        %v1112 = vlaneseq
        %v1113 = vshrl.u32 %v1112, 7
        %v1114 = vsub.s32 %v1111, %v1113
        %v1115 = vrot.slane %v1107, %v1114
        %v1117 = vunpack.c.l.s4 1983009808
        %v1118 = vunpack.c.0.s8 %v1117
        %v1119 = vlaneseq
        %v1120 = vshrl.u32 %v1119, 7
        %v1121 = vsub.s32 %v1118, %v1120
        %v1122 = vrot.slane %v1108, %v1121
        %v1123 = vcombine.low %v1044, %v1056
        %v1124 = vcombine.high %v1044, %v1056
        %v1126 = vunpack.c.l.s4 1983009808
        %v1127 = vunpack.c.0.s8 %v1126
        %v1128 = vlaneseq
        %v1129 = vshrl.u32 %v1128, 7
        %v1130 = vsub.s32 %v1127, %v1129
        %v1131 = vrot.slane %v1123, %v1130
        %v1133 = vunpack.c.l.s4 1983009808
        %v1134 = vunpack.c.0.s8 %v1133
        %v1135 = vlaneseq
        %v1136 = vshrl.u32 %v1135, 7
        %v1137 = vsub.s32 %v1134, %v1136
        %v1138 = vrot.slane %v1124, %v1137
        %v1139 = vcombine.low %v1050, %v1062
        %v1140 = vcombine.high %v1050, %v1062
        %v1142 = vunpack.c.l.s4 1983009808
        %v1143 = vunpack.c.0.s8 %v1142
        %v1144 = vlaneseq
        %v1145 = vshrl.u32 %v1144, 7
        %v1146 = vsub.s32 %v1143, %v1145
        %v1147 = vrot.slane %v1139, %v1146
        %v1149 = vunpack.c.l.s4 1983009808
        %v1150 = vunpack.c.0.s8 %v1149
        %v1151 = vlaneseq
        %v1152 = vshrl.u32 %v1151, 7
        %v1153 = vsub.s32 %v1150, %v1152
        %v1154 = vrot.slane %v1140, %v1153
        %v1155 = vcombine.low %v1099, %v1115
        %v1156 = vcombine.high %v1099, %v1115
        %v1158 = vunpack.c.l.s4 1934713408
        %v1159 = vunpack.c.0.s8 %v1158
        %v1160 = vlaneseq
        %v1161 = vshrl.u32 %v1160, 7
        %v1162 = vsub.s32 %v1159, %v1161
        %v1163 = vrot.slane %v1155, %v1162
        %v1165 = vunpack.c.l.s4 1934713408
        %v1166 = vunpack.c.0.s8 %v1165
        %v1167 = vlaneseq
        %v1168 = vshrl.u32 %v1167, 7
        %v1169 = vsub.s32 %v1166, %v1168
        %v1170 = vrot.slane %v1156, %v1169
        %v1171 = vcombine.low %v1106, %v1122
        %v1172 = vcombine.high %v1106, %v1122
        %v1174 = vunpack.c.l.s4 1934713408
        %v1175 = vunpack.c.0.s8 %v1174
        %v1176 = vlaneseq
        %v1177 = vshrl.u32 %v1176, 7
        %v1178 = vsub.s32 %v1175, %v1177
        %v1179 = vrot.slane %v1171, %v1178
        %v1181 = vunpack.c.l.s4 1934713408
        %v1182 = vunpack.c.0.s8 %v1181
        %v1183 = vlaneseq
        %v1184 = vshrl.u32 %v1183, 7
        %v1185 = vsub.s32 %v1182, %v1184
        %v1186 = vrot.slane %v1172, %v1185
        %v1187 = vcombine.low %v1131, %v1147
        %v1188 = vcombine.high %v1131, %v1147
        %v1190 = vunpack.c.l.s4 1934713408
        %v1191 = vunpack.c.0.s8 %v1190
        %v1192 = vlaneseq
        %v1193 = vshrl.u32 %v1192, 7
        %v1194 = vsub.s32 %v1191, %v1193
        %v1195 = vrot.slane %v1187, %v1194
        %v1197 = vunpack.c.l.s4 1934713408
        %v1198 = vunpack.c.0.s8 %v1197
        %v1199 = vlaneseq
        %v1200 = vshrl.u32 %v1199, 7
        %v1201 = vsub.s32 %v1198, %v1200
        %v1202 = vrot.slane %v1188, %v1201
        %v1203 = vcombine.low %v1138, %v1154
        %v1204 = vcombine.high %v1138, %v1154
        %v1206 = vunpack.c.l.s4 1934713408
        %v1207 = vunpack.c.0.s8 %v1206
        %v1208 = vlaneseq
        %v1209 = vshrl.u32 %v1208, 7
        %v1210 = vsub.s32 %v1207, %v1209
        %v1211 = vrot.slane %v1203, %v1210
        %v1213 = vunpack.c.l.s4 1934713408
        %v1214 = vunpack.c.0.s8 %v1213
        %v1215 = vlaneseq
        %v1216 = vshrl.u32 %v1215, 7
        %v1217 = vsub.s32 %v1214, %v1216
        %v1218 = vrot.slane %v1204, %v1217
        %v1219 = vcombine.low %v1163, %v1195
        %v1220 = vcombine.high %v1163, %v1195
        %v1221 = vcombine.low %v1170, %v1202
        %v1222 = vcombine.high %v1170, %v1202
        %v1223 = vcombine.low %v1179, %v1211
        %v1224 = vcombine.high %v1179, %v1211
        %v1225 = vcombine.low %v1186, %v1218
        %v1226 = vcombine.high %v1186, %v1218
        %v1227 = vcombine.low %v1068, %v1080
        %v1228 = vcombine.high %v1068, %v1080
        %v1230 = vunpack.c.l.s4 1983009808
        %v1231 = vunpack.c.0.s8 %v1230
        %v1232 = vlaneseq
        %v1233 = vshrl.u32 %v1232, 7
        %v1234 = vsub.s32 %v1231, %v1233
        %v1235 = vrot.slane %v1227, %v1234
        %v1237 = vunpack.c.l.s4 1983009808
        %v1238 = vunpack.c.0.s8 %v1237
        %v1239 = vlaneseq
        %v1240 = vshrl.u32 %v1239, 7
        %v1241 = vsub.s32 %v1238, %v1240
        %v1242 = vrot.slane %v1228, %v1241
        %v1243 = vcombine.low %v1074, %v1086
        %v1244 = vcombine.high %v1074, %v1086
        %v1246 = vunpack.c.l.s4 1983009808
        %v1247 = vunpack.c.0.s8 %v1246
        %v1248 = vlaneseq
        %v1249 = vshrl.u32 %v1248, 7
        %v1250 = vsub.s32 %v1247, %v1249
        %v1251 = vrot.slane %v1243, %v1250
        %v1253 = vunpack.c.l.s4 1983009808
        %v1254 = vunpack.c.0.s8 %v1253
        %v1255 = vlaneseq
        %v1256 = vshrl.u32 %v1255, 7
        %v1257 = vsub.s32 %v1254, %v1256
        %v1258 = vrot.slane %v1244, %v1257
        %v1259 = vcombine.low %v1235, %v1251
        %v1260 = vcombine.high %v1235, %v1251
        %v1262 = vunpack.c.l.s4 1934713408
        %v1263 = vunpack.c.0.s8 %v1262
        %v1264 = vlaneseq
        %v1265 = vshrl.u32 %v1264, 7
        %v1266 = vsub.s32 %v1263, %v1265
        %v1267 = vrot.slane %v1259, %v1266
        %v1269 = vunpack.c.l.s4 1934713408
        %v1270 = vunpack.c.0.s8 %v1269
        %v1271 = vlaneseq
        %v1272 = vshrl.u32 %v1271, 7
        %v1273 = vsub.s32 %v1270, %v1272
        %v1274 = vrot.slane %v1260, %v1273
        %v1275 = vcombine.low %v1242, %v1258
        %v1276 = vcombine.high %v1242, %v1258
        %v1278 = vunpack.c.l.s4 1934713408
        %v1279 = vunpack.c.0.s8 %v1278
        %v1280 = vlaneseq
        %v1281 = vshrl.u32 %v1280, 7
        %v1282 = vsub.s32 %v1279, %v1281
        %v1283 = vrot.slane %v1275, %v1282
        %v1285 = vunpack.c.l.s4 1934713408
        %v1286 = vunpack.c.0.s8 %v1285
        %v1287 = vlaneseq
        %v1288 = vshrl.u32 %v1287, 7
        %v1289 = vsub.s32 %v1286, %v1288
        %v1290 = vrot.slane %v1276, %v1289
        %v1291 = vcombine.high %v1267, 0.0
        %v1292 = vcombine.high %v1274, 0.0
        %v1293 = vcombine.high %v1283, 0.0
        %v1294 = vcombine.high %v1290, 0.0
        %v1295 = vcombine.low %v1020, %v1034
        %v1296 = vcombine.high %v1020, %v1034
        %v1298 = vunpack.c.l.s4 1983009808
        %v1299 = vunpack.c.0.s8 %v1298
        %v1300 = vlaneseq
        %v1301 = vshrl.u32 %v1300, 7
        %v1302 = vsub.s32 %v1299, %v1301
        %v1303 = vrot.slane %v1295, %v1302
        %v1305 = vunpack.c.l.s4 1983009808
        %v1306 = vunpack.c.0.s8 %v1305
        %v1307 = vlaneseq
        %v1308 = vshrl.u32 %v1307, 7
        %v1309 = vsub.s32 %v1306, %v1308
        %v1310 = vrot.slane %v1296, %v1309
        %v1311 = vcombine.low %v1028, %v1040
        %v1312 = vcombine.high %v1028, %v1040
        %v1314 = vunpack.c.l.s4 1983009808
        %v1315 = vunpack.c.0.s8 %v1314
        %v1316 = vlaneseq
        %v1317 = vshrl.u32 %v1316, 7
        %v1318 = vsub.s32 %v1315, %v1317
        %v1319 = vrot.slane %v1311, %v1318
        %v1321 = vunpack.c.l.s4 1983009808
        %v1322 = vunpack.c.0.s8 %v1321
        %v1323 = vlaneseq
        %v1324 = vshrl.u32 %v1323, 7
        %v1325 = vsub.s32 %v1322, %v1324
        %v1326 = vrot.slane %v1312, %v1325
        %v1327 = vcombine.low %v1046, %v1058
        %v1328 = vcombine.high %v1046, %v1058
        %v1330 = vunpack.c.l.s4 1983009808
        %v1331 = vunpack.c.0.s8 %v1330
        %v1332 = vlaneseq
        %v1333 = vshrl.u32 %v1332, 7
        %v1334 = vsub.s32 %v1331, %v1333
        %v1335 = vrot.slane %v1327, %v1334
        %v1337 = vunpack.c.l.s4 1983009808
        %v1338 = vunpack.c.0.s8 %v1337
        %v1339 = vlaneseq
        %v1340 = vshrl.u32 %v1339, 7
        %v1341 = vsub.s32 %v1338, %v1340
        %v1342 = vrot.slane %v1328, %v1341
        %v1343 = vcombine.low %v1052, %v1064
        %v1344 = vcombine.high %v1052, %v1064
        %v1346 = vunpack.c.l.s4 1983009808
        %v1347 = vunpack.c.0.s8 %v1346
        %v1348 = vlaneseq
        %v1349 = vshrl.u32 %v1348, 7
        %v1350 = vsub.s32 %v1347, %v1349
        %v1351 = vrot.slane %v1343, %v1350
        %v1353 = vunpack.c.l.s4 1983009808
        %v1354 = vunpack.c.0.s8 %v1353
        %v1355 = vlaneseq
        %v1356 = vshrl.u32 %v1355, 7
        %v1357 = vsub.s32 %v1354, %v1356
        %v1358 = vrot.slane %v1344, %v1357
        %v1359 = vcombine.low %v1303, %v1319
        %v1360 = vcombine.high %v1303, %v1319
        %v1362 = vunpack.c.l.s4 1934713408
        %v1363 = vunpack.c.0.s8 %v1362
        %v1364 = vlaneseq
        %v1365 = vshrl.u32 %v1364, 7
        %v1366 = vsub.s32 %v1363, %v1365
        %v1367 = vrot.slane %v1359, %v1366
        %v1369 = vunpack.c.l.s4 1934713408
        %v1370 = vunpack.c.0.s8 %v1369
        %v1371 = vlaneseq
        %v1372 = vshrl.u32 %v1371, 7
        %v1373 = vsub.s32 %v1370, %v1372
        %v1374 = vrot.slane %v1360, %v1373
        %v1375 = vcombine.low %v1310, %v1326
        %v1376 = vcombine.high %v1310, %v1326
        %v1378 = vunpack.c.l.s4 1934713408
        %v1379 = vunpack.c.0.s8 %v1378
        %v1380 = vlaneseq
        %v1381 = vshrl.u32 %v1380, 7
        %v1382 = vsub.s32 %v1379, %v1381
        %v1383 = vrot.slane %v1375, %v1382
        %v1385 = vunpack.c.l.s4 1934713408
        %v1386 = vunpack.c.0.s8 %v1385
        %v1387 = vlaneseq
        %v1388 = vshrl.u32 %v1387, 7
        %v1389 = vsub.s32 %v1386, %v1388
        %v1390 = vrot.slane %v1376, %v1389
        %v1391 = vcombine.low %v1335, %v1351
        %v1392 = vcombine.high %v1335, %v1351
        %v1394 = vunpack.c.l.s4 1934713408
        %v1395 = vunpack.c.0.s8 %v1394
        %v1396 = vlaneseq
        %v1397 = vshrl.u32 %v1396, 7
        %v1398 = vsub.s32 %v1395, %v1397
        %v1399 = vrot.slane %v1391, %v1398
        %v1401 = vunpack.c.l.s4 1934713408
        %v1402 = vunpack.c.0.s8 %v1401
        %v1403 = vlaneseq
        %v1404 = vshrl.u32 %v1403, 7
        %v1405 = vsub.s32 %v1402, %v1404
        %v1406 = vrot.slane %v1392, %v1405
        %v1407 = vcombine.low %v1342, %v1358
        %v1408 = vcombine.high %v1342, %v1358
        %v1410 = vunpack.c.l.s4 1934713408
        %v1411 = vunpack.c.0.s8 %v1410
        %v1412 = vlaneseq
        %v1413 = vshrl.u32 %v1412, 7
        %v1414 = vsub.s32 %v1411, %v1413
        %v1415 = vrot.slane %v1407, %v1414
        %v1417 = vunpack.c.l.s4 1934713408
        %v1418 = vunpack.c.0.s8 %v1417
        %v1419 = vlaneseq
        %v1420 = vshrl.u32 %v1419, 7
        %v1421 = vsub.s32 %v1418, %v1420
        %v1422 = vrot.slane %v1408, %v1421
        %v1423 = vcombine.low %v1367, %v1399
        %v1424 = vcombine.high %v1367, %v1399
        %v1425 = vcombine.low %v1374, %v1406
        %v1426 = vcombine.high %v1374, %v1406
        %v1427 = vcombine.low %v1383, %v1415
        %v1428 = vcombine.high %v1383, %v1415
        %v1429 = vcombine.low %v1390, %v1422
        %v1430 = vcombine.high %v1390, %v1422
        %v1431 = vcombine.low %v1070, %v1082
        %v1432 = vcombine.high %v1070, %v1082
        %v1434 = vunpack.c.l.s4 1983009808
        %v1435 = vunpack.c.0.s8 %v1434
        %v1436 = vlaneseq
        %v1437 = vshrl.u32 %v1436, 7
        %v1438 = vsub.s32 %v1435, %v1437
        %v1439 = vrot.slane %v1431, %v1438
        %v1441 = vunpack.c.l.s4 1983009808
        %v1442 = vunpack.c.0.s8 %v1441
        %v1443 = vlaneseq
        %v1444 = vshrl.u32 %v1443, 7
        %v1445 = vsub.s32 %v1442, %v1444
        %v1446 = vrot.slane %v1432, %v1445
        %v1447 = vcombine.low %v1076, %v1088
        %v1448 = vcombine.high %v1076, %v1088
        %v1450 = vunpack.c.l.s4 1983009808
        %v1451 = vunpack.c.0.s8 %v1450
        %v1452 = vlaneseq
        %v1453 = vshrl.u32 %v1452, 7
        %v1454 = vsub.s32 %v1451, %v1453
        %v1455 = vrot.slane %v1447, %v1454
        %v1457 = vunpack.c.l.s4 1983009808
        %v1458 = vunpack.c.0.s8 %v1457
        %v1459 = vlaneseq
        %v1460 = vshrl.u32 %v1459, 7
        %v1461 = vsub.s32 %v1458, %v1460
        %v1462 = vrot.slane %v1448, %v1461
        %v1463 = vcombine.low %v1439, %v1455
        %v1464 = vcombine.high %v1439, %v1455
        %v1466 = vunpack.c.l.s4 1934713408
        %v1467 = vunpack.c.0.s8 %v1466
        %v1468 = vlaneseq
        %v1469 = vshrl.u32 %v1468, 7
        %v1470 = vsub.s32 %v1467, %v1469
        %v1471 = vrot.slane %v1463, %v1470
        %v1473 = vunpack.c.l.s4 1934713408
        %v1474 = vunpack.c.0.s8 %v1473
        %v1475 = vlaneseq
        %v1476 = vshrl.u32 %v1475, 7
        %v1477 = vsub.s32 %v1474, %v1476
        %v1478 = vrot.slane %v1464, %v1477
        %v1479 = vcombine.low %v1446, %v1462
        %v1480 = vcombine.high %v1446, %v1462
        %v1482 = vunpack.c.l.s4 1934713408
        %v1483 = vunpack.c.0.s8 %v1482
        %v1484 = vlaneseq
        %v1485 = vshrl.u32 %v1484, 7
        %v1486 = vsub.s32 %v1483, %v1485
        %v1487 = vrot.slane %v1479, %v1486
        %v1489 = vunpack.c.l.s4 1934713408
        %v1490 = vunpack.c.0.s8 %v1489
        %v1491 = vlaneseq
        %v1492 = vshrl.u32 %v1491, 7
        %v1493 = vsub.s32 %v1490, %v1492
        %v1494 = vrot.slane %v1480, %v1493
        %v1495 = vcombine.high %v1471, 0.0
        %v1496 = vcombine.high %v1478, 0.0
        %v1497 = vcombine.high %v1487, 0.0
        %v1498 = vcombine.high %v1494, 0.0
        %v1499 = vcombine.low %v1219, %v1221
        %v1500 = vcombine.high %v1219, %v1221
        %v1502 = vunpack.c.l.s4 1983009808
        %v1503 = vunpack.c.0.s8 %v1502
        %v1504 = vlaneseq
        %v1505 = vshrl.u32 %v1504, 7
        %v1506 = vsub.s32 %v1503, %v1505
        %v1507 = vrot.slane %v1499, %v1506
        %v1509 = vunpack.c.l.s4 1983009808
        %v1510 = vunpack.c.0.s8 %v1509
        %v1511 = vlaneseq
        %v1512 = vshrl.u32 %v1511, 7
        %v1513 = vsub.s32 %v1510, %v1512
        %v1514 = vrot.slane %v1500, %v1513
        %v1515 = vcombine.low %v1220, %v1222
        %v1516 = vcombine.high %v1220, %v1222
        %v1518 = vunpack.c.l.s4 1983009808
        %v1519 = vunpack.c.0.s8 %v1518
        %v1520 = vlaneseq
        %v1521 = vshrl.u32 %v1520, 7
        %v1522 = vsub.s32 %v1519, %v1521
        %v1523 = vrot.slane %v1515, %v1522
        %v1525 = vunpack.c.l.s4 1983009808
        %v1526 = vunpack.c.0.s8 %v1525
        %v1527 = vlaneseq
        %v1528 = vshrl.u32 %v1527, 7
        %v1529 = vsub.s32 %v1526, %v1528
        %v1530 = vrot.slane %v1516, %v1529
        %v1531 = vcombine.low %v1223, %v1225
        %v1532 = vcombine.high %v1223, %v1225
        %v1534 = vunpack.c.l.s4 1983009808
        %v1535 = vunpack.c.0.s8 %v1534
        %v1536 = vlaneseq
        %v1537 = vshrl.u32 %v1536, 7
        %v1538 = vsub.s32 %v1535, %v1537
        %v1539 = vrot.slane %v1531, %v1538
        %v1541 = vunpack.c.l.s4 1983009808
        %v1542 = vunpack.c.0.s8 %v1541
        %v1543 = vlaneseq
        %v1544 = vshrl.u32 %v1543, 7
        %v1545 = vsub.s32 %v1542, %v1544
        %v1546 = vrot.slane %v1532, %v1545
        %v1547 = vcombine.low %v1224, %v1226
        %v1548 = vcombine.high %v1224, %v1226
        %v1550 = vunpack.c.l.s4 1983009808
        %v1551 = vunpack.c.0.s8 %v1550
        %v1552 = vlaneseq
        %v1553 = vshrl.u32 %v1552, 7
        %v1554 = vsub.s32 %v1551, %v1553
        %v1555 = vrot.slane %v1547, %v1554
        %v1557 = vunpack.c.l.s4 1983009808
        %v1558 = vunpack.c.0.s8 %v1557
        %v1559 = vlaneseq
        %v1560 = vshrl.u32 %v1559, 7
        %v1561 = vsub.s32 %v1558, %v1560
        %v1562 = vrot.slane %v1548, %v1561
        %v1563 = vcombine.low %v1507, %v1523
        %v1564 = vcombine.high %v1507, %v1523
        %v1566 = vunpack.c.l.s4 1934713408
        %v1567 = vunpack.c.0.s8 %v1566
        %v1568 = vlaneseq
        %v1569 = vshrl.u32 %v1568, 7
        %v1570 = vsub.s32 %v1567, %v1569
        %v1571 = vrot.slane %v1563, %v1570
        %v1573 = vunpack.c.l.s4 1934713408
        %v1574 = vunpack.c.0.s8 %v1573
        %v1575 = vlaneseq
        %v1576 = vshrl.u32 %v1575, 7
        %v1577 = vsub.s32 %v1574, %v1576
        %v1578 = vrot.slane %v1564, %v1577
        %v1579 = vcombine.low %v1514, %v1530
        %v1580 = vcombine.high %v1514, %v1530
        %v1582 = vunpack.c.l.s4 1934713408
        %v1583 = vunpack.c.0.s8 %v1582
        %v1584 = vlaneseq
        %v1585 = vshrl.u32 %v1584, 7
        %v1586 = vsub.s32 %v1583, %v1585
        %v1587 = vrot.slane %v1579, %v1586
        %v1589 = vunpack.c.l.s4 1934713408
        %v1590 = vunpack.c.0.s8 %v1589
        %v1591 = vlaneseq
        %v1592 = vshrl.u32 %v1591, 7
        %v1593 = vsub.s32 %v1590, %v1592
        %v1594 = vrot.slane %v1580, %v1593
        %v1595 = vcombine.low %v1539, %v1555
        %v1596 = vcombine.high %v1539, %v1555
        %v1598 = vunpack.c.l.s4 1934713408
        %v1599 = vunpack.c.0.s8 %v1598
        %v1600 = vlaneseq
        %v1601 = vshrl.u32 %v1600, 7
        %v1602 = vsub.s32 %v1599, %v1601
        %v1603 = vrot.slane %v1595, %v1602
        %v1605 = vunpack.c.l.s4 1934713408
        %v1606 = vunpack.c.0.s8 %v1605
        %v1607 = vlaneseq
        %v1608 = vshrl.u32 %v1607, 7
        %v1609 = vsub.s32 %v1606, %v1608
        %v1610 = vrot.slane %v1596, %v1609
        %v1611 = vcombine.low %v1546, %v1562
        %v1612 = vcombine.high %v1546, %v1562
        %v1614 = vunpack.c.l.s4 1934713408
        %v1615 = vunpack.c.0.s8 %v1614
        %v1616 = vlaneseq
        %v1617 = vshrl.u32 %v1616, 7
        %v1618 = vsub.s32 %v1615, %v1617
        %v1619 = vrot.slane %v1611, %v1618
        %v1621 = vunpack.c.l.s4 1934713408
        %v1622 = vunpack.c.0.s8 %v1621
        %v1623 = vlaneseq
        %v1624 = vshrl.u32 %v1623, 7
        %v1625 = vsub.s32 %v1622, %v1624
        %v1626 = vrot.slane %v1612, %v1625
        %v1627 = vcombine.low %v1571, %v1603
        %v1628 = vcombine.high %v1571, %v1603
        %v1629 = vcombine.low %v1578, %v1610
        %v1630 = vcombine.high %v1578, %v1610
        %v1631 = vcombine.low %v1587, %v1619
        %v1632 = vcombine.high %v1587, %v1619
        %v1633 = vcombine.low %v1594, %v1626
        %v1634 = vcombine.high %v1594, %v1626
        %v1635 = vcombine.low %v1423, %v1425
        %v1636 = vcombine.high %v1423, %v1425
        %v1638 = vunpack.c.l.s4 1983009808
        %v1639 = vunpack.c.0.s8 %v1638
        %v1640 = vlaneseq
        %v1641 = vshrl.u32 %v1640, 7
        %v1642 = vsub.s32 %v1639, %v1641
        %v1643 = vrot.slane %v1635, %v1642
        %v1645 = vunpack.c.l.s4 1983009808
        %v1646 = vunpack.c.0.s8 %v1645
        %v1647 = vlaneseq
        %v1648 = vshrl.u32 %v1647, 7
        %v1649 = vsub.s32 %v1646, %v1648
        %v1650 = vrot.slane %v1636, %v1649
        %v1651 = vcombine.low %v1424, %v1426
        %v1652 = vcombine.high %v1424, %v1426
        %v1654 = vunpack.c.l.s4 1983009808
        %v1655 = vunpack.c.0.s8 %v1654
        %v1656 = vlaneseq
        %v1657 = vshrl.u32 %v1656, 7
        %v1658 = vsub.s32 %v1655, %v1657
        %v1659 = vrot.slane %v1651, %v1658
        %v1661 = vunpack.c.l.s4 1983009808
        %v1662 = vunpack.c.0.s8 %v1661
        %v1663 = vlaneseq
        %v1664 = vshrl.u32 %v1663, 7
        %v1665 = vsub.s32 %v1662, %v1664
        %v1666 = vrot.slane %v1652, %v1665
        %v1667 = vcombine.low %v1427, %v1429
        %v1668 = vcombine.high %v1427, %v1429
        %v1670 = vunpack.c.l.s4 1983009808
        %v1671 = vunpack.c.0.s8 %v1670
        %v1672 = vlaneseq
        %v1673 = vshrl.u32 %v1672, 7
        %v1674 = vsub.s32 %v1671, %v1673
        %v1675 = vrot.slane %v1667, %v1674
        %v1677 = vunpack.c.l.s4 1983009808
        %v1678 = vunpack.c.0.s8 %v1677
        %v1679 = vlaneseq
        %v1680 = vshrl.u32 %v1679, 7
        %v1681 = vsub.s32 %v1678, %v1680
        %v1682 = vrot.slane %v1668, %v1681
        %v1683 = vcombine.low %v1428, %v1430
        %v1684 = vcombine.high %v1428, %v1430
        %v1686 = vunpack.c.l.s4 1983009808
        %v1687 = vunpack.c.0.s8 %v1686
        %v1688 = vlaneseq
        %v1689 = vshrl.u32 %v1688, 7
        %v1690 = vsub.s32 %v1687, %v1689
        %v1691 = vrot.slane %v1683, %v1690
        %v1693 = vunpack.c.l.s4 1983009808
        %v1694 = vunpack.c.0.s8 %v1693
        %v1695 = vlaneseq
        %v1696 = vshrl.u32 %v1695, 7
        %v1697 = vsub.s32 %v1694, %v1696
        %v1698 = vrot.slane %v1684, %v1697
        %v1699 = vcombine.low %v1643, %v1659
        %v1700 = vcombine.high %v1643, %v1659
        %v1702 = vunpack.c.l.s4 1934713408
        %v1703 = vunpack.c.0.s8 %v1702
        %v1704 = vlaneseq
        %v1705 = vshrl.u32 %v1704, 7
        %v1706 = vsub.s32 %v1703, %v1705
        %v1707 = vrot.slane %v1699, %v1706
        %v1709 = vunpack.c.l.s4 1934713408
        %v1710 = vunpack.c.0.s8 %v1709
        %v1711 = vlaneseq
        %v1712 = vshrl.u32 %v1711, 7
        %v1713 = vsub.s32 %v1710, %v1712
        %v1714 = vrot.slane %v1700, %v1713
        %v1715 = vcombine.low %v1650, %v1666
        %v1716 = vcombine.high %v1650, %v1666
        %v1718 = vunpack.c.l.s4 1934713408
        %v1719 = vunpack.c.0.s8 %v1718
        %v1720 = vlaneseq
        %v1721 = vshrl.u32 %v1720, 7
        %v1722 = vsub.s32 %v1719, %v1721
        %v1723 = vrot.slane %v1715, %v1722
        %v1725 = vunpack.c.l.s4 1934713408
        %v1726 = vunpack.c.0.s8 %v1725
        %v1727 = vlaneseq
        %v1728 = vshrl.u32 %v1727, 7
        %v1729 = vsub.s32 %v1726, %v1728
        %v1730 = vrot.slane %v1716, %v1729
        %v1731 = vcombine.low %v1675, %v1691
        %v1732 = vcombine.high %v1675, %v1691
        %v1734 = vunpack.c.l.s4 1934713408
        %v1735 = vunpack.c.0.s8 %v1734
        %v1736 = vlaneseq
        %v1737 = vshrl.u32 %v1736, 7
        %v1738 = vsub.s32 %v1735, %v1737
        %v1739 = vrot.slane %v1731, %v1738
        %v1741 = vunpack.c.l.s4 1934713408
        %v1742 = vunpack.c.0.s8 %v1741
        %v1743 = vlaneseq
        %v1744 = vshrl.u32 %v1743, 7
        %v1745 = vsub.s32 %v1742, %v1744
        %v1746 = vrot.slane %v1732, %v1745
        %v1747 = vcombine.low %v1682, %v1698
        %v1748 = vcombine.high %v1682, %v1698
        %v1750 = vunpack.c.l.s4 1934713408
        %v1751 = vunpack.c.0.s8 %v1750
        %v1752 = vlaneseq
        %v1753 = vshrl.u32 %v1752, 7
        %v1754 = vsub.s32 %v1751, %v1753
        %v1755 = vrot.slane %v1747, %v1754
        %v1757 = vunpack.c.l.s4 1934713408
        %v1758 = vunpack.c.0.s8 %v1757
        %v1759 = vlaneseq
        %v1760 = vshrl.u32 %v1759, 7
        %v1761 = vsub.s32 %v1758, %v1760
        %v1762 = vrot.slane %v1748, %v1761
        %v1763 = vcombine.low %v1707, %v1739
        %v1764 = vcombine.high %v1707, %v1739
        %v1765 = vcombine.low %v1714, %v1746
        %v1766 = vcombine.high %v1714, %v1746
        %v1767 = vcombine.low %v1723, %v1755
        %v1768 = vcombine.high %v1723, %v1755
        %v1769 = vcombine.low %v1730, %v1762
        %v1770 = vcombine.high %v1730, %v1762
        %v1771 = vcombine.low %v1267, %v1274
        %v1773 = vunpack.c.l.s4 1983009808
        %v1774 = vunpack.c.0.s8 %v1773
        %v1775 = vlaneseq
        %v1776 = vshrl.u32 %v1775, 7
        %v1777 = vsub.s32 %v1774, %v1776
        %v1778 = vrot.slane %v1771, %v1777
        %v1779 = vcombine.low %v1291, %v1292
        %v1781 = vunpack.c.l.s4 1983009808
        %v1782 = vunpack.c.0.s8 %v1781
        %v1783 = vlaneseq
        %v1784 = vshrl.u32 %v1783, 7
        %v1785 = vsub.s32 %v1782, %v1784
        %v1786 = vrot.slane %v1779, %v1785
        %v1787 = vcombine.low %v1283, %v1290
        %v1789 = vunpack.c.l.s4 1983009808
        %v1790 = vunpack.c.0.s8 %v1789
        %v1791 = vlaneseq
        %v1792 = vshrl.u32 %v1791, 7
        %v1793 = vsub.s32 %v1790, %v1792
        %v1794 = vrot.slane %v1787, %v1793
        %v1795 = vcombine.low %v1293, %v1294
        %v1797 = vunpack.c.l.s4 1983009808
        %v1798 = vunpack.c.0.s8 %v1797
        %v1799 = vlaneseq
        %v1800 = vshrl.u32 %v1799, 7
        %v1801 = vsub.s32 %v1798, %v1800
        %v1802 = vrot.slane %v1795, %v1801
        %v1803 = vcombine.low %v1778, %v1786
        %v1804 = vcombine.high %v1778, %v1786
        %v1806 = vunpack.c.l.s4 1934713408
        %v1807 = vunpack.c.0.s8 %v1806
        %v1808 = vlaneseq
        %v1809 = vshrl.u32 %v1808, 7
        %v1810 = vsub.s32 %v1807, %v1809
        %v1811 = vrot.slane %v1803, %v1810
        %v1813 = vunpack.c.l.s4 1934713408
        %v1814 = vunpack.c.0.s8 %v1813
        %v1815 = vlaneseq
        %v1816 = vshrl.u32 %v1815, 7
        %v1817 = vsub.s32 %v1814, %v1816
        %v1818 = vrot.slane %v1804, %v1817
        %v1819 = vcombine.low %v1794, %v1802
        %v1820 = vcombine.high %v1794, %v1802
        %v1822 = vunpack.c.l.s4 1934713408
        %v1823 = vunpack.c.0.s8 %v1822
        %v1824 = vlaneseq
        %v1825 = vshrl.u32 %v1824, 7
        %v1826 = vsub.s32 %v1823, %v1825
        %v1827 = vrot.slane %v1819, %v1826
        %v1829 = vunpack.c.l.s4 1934713408
        %v1830 = vunpack.c.0.s8 %v1829
        %v1831 = vlaneseq
        %v1832 = vshrl.u32 %v1831, 7
        %v1833 = vsub.s32 %v1830, %v1832
        %v1834 = vrot.slane %v1820, %v1833
        %v1835 = vcombine.low %v1811, %v1827
        %v1836 = vcombine.high %v1811, %v1827
        %v1837 = vcombine.low %v1818, %v1834
        %v1838 = vcombine.high %v1818, %v1834
        %v1839 = vcombine.low %v1471, %v1478
        %v1841 = vunpack.c.l.s4 1983009808
        %v1842 = vunpack.c.0.s8 %v1841
        %v1843 = vlaneseq
        %v1844 = vshrl.u32 %v1843, 7
        %v1845 = vsub.s32 %v1842, %v1844
        %v1846 = vrot.slane %v1839, %v1845
        %v1847 = vcombine.low %v1495, %v1496
        %v1849 = vunpack.c.l.s4 1983009808
        %v1850 = vunpack.c.0.s8 %v1849
        %v1851 = vlaneseq
        %v1852 = vshrl.u32 %v1851, 7
        %v1853 = vsub.s32 %v1850, %v1852
        %v1854 = vrot.slane %v1847, %v1853
        %v1855 = vcombine.low %v1487, %v1494
        %v1857 = vunpack.c.l.s4 1983009808
        %v1858 = vunpack.c.0.s8 %v1857
        %v1859 = vlaneseq
        %v1860 = vshrl.u32 %v1859, 7
        %v1861 = vsub.s32 %v1858, %v1860
        %v1862 = vrot.slane %v1855, %v1861
        %v1863 = vcombine.low %v1497, %v1498
        %v1865 = vunpack.c.l.s4 1983009808
        %v1866 = vunpack.c.0.s8 %v1865
        %v1867 = vlaneseq
        %v1868 = vshrl.u32 %v1867, 7
        %v1869 = vsub.s32 %v1866, %v1868
        %v1870 = vrot.slane %v1863, %v1869
        %v1871 = vcombine.low %v1846, %v1854
        %v1872 = vcombine.high %v1846, %v1854
        %v1874 = vunpack.c.l.s4 1934713408
        %v1875 = vunpack.c.0.s8 %v1874
        %v1876 = vlaneseq
        %v1877 = vshrl.u32 %v1876, 7
        %v1878 = vsub.s32 %v1875, %v1877
        %v1879 = vrot.slane %v1871, %v1878
        %v1881 = vunpack.c.l.s4 1934713408
        %v1882 = vunpack.c.0.s8 %v1881
        %v1883 = vlaneseq
        %v1884 = vshrl.u32 %v1883, 7
        %v1885 = vsub.s32 %v1882, %v1884
        %v1886 = vrot.slane %v1872, %v1885
        %v1887 = vcombine.low %v1862, %v1870
        %v1888 = vcombine.high %v1862, %v1870
        %v1890 = vunpack.c.l.s4 1934713408
        %v1891 = vunpack.c.0.s8 %v1890
        %v1892 = vlaneseq
        %v1893 = vshrl.u32 %v1892, 7
        %v1894 = vsub.s32 %v1891, %v1893
        %v1895 = vrot.slane %v1887, %v1894
        %v1897 = vunpack.c.l.s4 1934713408
        %v1898 = vunpack.c.0.s8 %v1897
        %v1899 = vlaneseq
        %v1900 = vshrl.u32 %v1899, 7
        %v1901 = vsub.s32 %v1898, %v1900
        %v1902 = vrot.slane %v1888, %v1901
        %v1903 = vcombine.low %v1879, %v1895
        %v1904 = vcombine.high %v1879, %v1895
        %v1905 = vcombine.low %v1886, %v1902
        %v1906 = vcombine.high %v1886, %v1902
        %v1907 = vpack.c.bf16 %v1763, %v1627
        %v1908 = vpack.c.bf16 %v1764, %v1628
        %v1909 = vpack.c.bf16 %v1765, %v1629
        %v1910 = vpack.c.bf16 %v1766, %v1630
        %v1911 = vpack.c.bf16 %v1767, %v1631
        %v1912 = vpack.c.bf16 %v1768, %v1632
        %v1913 = vpack.c.bf16 %v1769, %v1633
        %v1914 = vpack.c.bf16 %v1770, %v1634
        %v1915 = vpack.c.bf16 %v1903, %v1835
        %v1916 = vpack.c.bf16 %v1904, %v1836
        %v1917 = vpack.c.bf16 %v1905, %v1837
        %v1918 = vpack.c.bf16 %v1906, %v1838
        %v1919 = vld [vmem:[#allocation2] sm:$0xff]
        %v1920 = vld [vmem:[#allocation2 + $0x8] sm:$0xff]
        %v1921 = vld [vmem:[#allocation3] sm:$0x1]
        %v1922 = vld [vmem:[#allocation3 + $0x1] sm:$0x1]
        %vm1923 = vcmask 64512
        %v1925 = vsel %vm1923, %v1907, 0
        %v1928 = vsel %vm1923, %v1911, 0
        %1930 = vmatprep.subr.bf16.mxu0 0
        %1931 = vmatpush1.bf16.xpose.msra.mxu0 %v1928
        %1932 = vmatprep.subr.bf16.mxu0 0
        %1933 = vmatpush1.bf16.xpose.msra.mxu0 0
        %1934 = vmatprep.subr.bf16.mxu0 0
        %1935 = vmatpush1.bf16.xpose.msra.mxu0 0
        %1936 = vmatprep.subr.bf16.mxu0 0
        %1937 = vmatpush1.bf16.xpose.msra.mxu0 0
        %1938 = vmatprep.subr.bf16.mxu0 0
        %1939 = vmatpush1.bf16.xpose.msra.mxu0 0
        %1940 = vmatprep.subr.bf16.mxu0 0
        %1941 = vmatpush1.bf16.xpose.msra.mxu0 0
        %1942 = vmatprep.subr.bf16.mxu0 0
        %1943 = vmatpush1.bf16.xpose.msra.mxu0 0
        %1944 = vmatprep.subr.bf16.mxu0 0
        %1945 = vmatpush1.bf16.xpose.msra.mxu0 0
        %1946 = vmatprep.subr.bf16.mxu0 0
        %1947 = vmatpush1.bf16.xpose.msra.mxu0 0
        %1948 = vmatprep.subr.bf16.mxu0 0
        %1949 = vmatpush1.bf16.xpose.msra.mxu0 0
        %1950 = vmatprep.subr.bf16.mxu0 0
        %1951 = vmatpush1.bf16.xpose.msra.mxu0 0
        %1952 = vmatprep.subr.bf16.mxu0 0
        %1953 = vmatpush1.bf16.xpose.msra.mxu0 0
        %1954 = vmatprep.subr.bf16.mxu0 0
        %1955 = vmatpush1.bf16.xpose.msra.mxu0 0
        %1956 = vmatprep.subr.bf16.mxu0 0
        %1957 = vmatpush1.bf16.xpose.msra.mxu0 0
        %1958 = vmatprep.subr.bf16.mxu0 0
        %1959 = vmatpush1.bf16.xpose.msra.mxu0 0
        %1960 = vmatprep.subr.bf16.mxu0 0
        %1961 = vmatpush1.bf16.xpose.msra.mxu0 0
        %1962 = vmatprep.mubr.bf16.mxu0 0
        %1963 = vmatmul.mubr.bf16.gmra.mrb[0].mxu0 %v1925
        %v1964 = vpop.f32.mrb[0].mxu0
        %v1965 = vadd.f32 %v1919, %v1964
        %v1966 = vpop.f32.mrb[0].mxu0
        %v1967 = vpop.f32.mrb[0].mxu0
        %v1968 = vpop.f32.mrb[0].mxu0
        %1969 = vdwg.mxu0
        %v1971 = vsel %vm1923, %v1908, 0
        %v1974 = vsel %vm1923, %v1912, 0
        %1976 = vmatprep.subr.bf16.mxu0 0
        %1977 = vmatpush1.bf16.xpose.msra.mxu0 %v1974
        %1978 = vmatprep.subr.bf16.mxu0 0
        %1979 = vmatpush1.bf16.xpose.msra.mxu0 0
        %1980 = vmatprep.subr.bf16.mxu0 0
        %1981 = vmatpush1.bf16.xpose.msra.mxu0 0
        %1982 = vmatprep.subr.bf16.mxu0 0
        %1983 = vmatpush1.bf16.xpose.msra.mxu0 0
        %1984 = vmatprep.subr.bf16.mxu0 0
        %1985 = vmatpush1.bf16.xpose.msra.mxu0 0
        %1986 = vmatprep.subr.bf16.mxu0 0
        %1987 = vmatpush1.bf16.xpose.msra.mxu0 0
        %1988 = vmatprep.subr.bf16.mxu0 0
        %1989 = vmatpush1.bf16.xpose.msra.mxu0 0
        %1990 = vmatprep.subr.bf16.mxu0 0
        %1991 = vmatpush1.bf16.xpose.msra.mxu0 0
        %1992 = vmatprep.subr.bf16.mxu0 0
        %1993 = vmatpush1.bf16.xpose.msra.mxu0 0
        %1994 = vmatprep.subr.bf16.mxu0 0
        %1995 = vmatpush1.bf16.xpose.msra.mxu0 0
        %1996 = vmatprep.subr.bf16.mxu0 0
        %1997 = vmatpush1.bf16.xpose.msra.mxu0 0
        %1998 = vmatprep.subr.bf16.mxu0 0
        %1999 = vmatpush1.bf16.xpose.msra.mxu0 0
        %2000 = vmatprep.subr.bf16.mxu0 0
        %2001 = vmatpush1.bf16.xpose.msra.mxu0 0
        %2002 = vmatprep.subr.bf16.mxu0 0
        %2003 = vmatpush1.bf16.xpose.msra.mxu0 0
        %2004 = vmatprep.subr.bf16.mxu0 0
        %2005 = vmatpush1.bf16.xpose.msra.mxu0 0
        %2006 = vmatprep.subr.bf16.mxu0 0
        %2007 = vmatpush1.bf16.xpose.msra.mxu0 0
        %2008 = vmatprep.mubr.bf16.mxu0 0
        %2009 = vmatmul.mubr.bf16.gmra.mrb[0].mxu0 %v1971
        %v2010 = vpop.f32.mrb[0].mxu0
        %v2011 = vadd.f32 %v1919, %v2010
        %v2012 = vpop.f32.mrb[0].mxu0
        %v2013 = vpop.f32.mrb[0].mxu0
        %v2014 = vpop.f32.mrb[0].mxu0
        %2015 = vdwg.mxu0
        %v2017 = vsel %vm1923, %v1909, 0
        %v2020 = vsel %vm1923, %v1913, 0
        %2022 = vmatprep.subr.bf16.mxu0 0
        %2023 = vmatpush1.bf16.xpose.msra.mxu0 %v2020
        %2024 = vmatprep.subr.bf16.mxu0 0
        %2025 = vmatpush1.bf16.xpose.msra.mxu0 0
        %2026 = vmatprep.subr.bf16.mxu0 0
        %2027 = vmatpush1.bf16.xpose.msra.mxu0 0
        %2028 = vmatprep.subr.bf16.mxu0 0
        %2029 = vmatpush1.bf16.xpose.msra.mxu0 0
        %2030 = vmatprep.subr.bf16.mxu0 0
        %2031 = vmatpush1.bf16.xpose.msra.mxu0 0
        %2032 = vmatprep.subr.bf16.mxu0 0
        %2033 = vmatpush1.bf16.xpose.msra.mxu0 0
        %2034 = vmatprep.subr.bf16.mxu0 0
        %2035 = vmatpush1.bf16.xpose.msra.mxu0 0
        %2036 = vmatprep.subr.bf16.mxu0 0
        %2037 = vmatpush1.bf16.xpose.msra.mxu0 0
        %2038 = vmatprep.subr.bf16.mxu0 0
        %2039 = vmatpush1.bf16.xpose.msra.mxu0 0
        %2040 = vmatprep.subr.bf16.mxu0 0
        %2041 = vmatpush1.bf16.xpose.msra.mxu0 0
        %2042 = vmatprep.subr.bf16.mxu0 0
        %2043 = vmatpush1.bf16.xpose.msra.mxu0 0
        %2044 = vmatprep.subr.bf16.mxu0 0
        %2045 = vmatpush1.bf16.xpose.msra.mxu0 0
        %2046 = vmatprep.subr.bf16.mxu0 0
        %2047 = vmatpush1.bf16.xpose.msra.mxu0 0
        %2048 = vmatprep.subr.bf16.mxu0 0
        %2049 = vmatpush1.bf16.xpose.msra.mxu0 0
        %2050 = vmatprep.subr.bf16.mxu0 0
        %2051 = vmatpush1.bf16.xpose.msra.mxu0 0
        %2052 = vmatprep.subr.bf16.mxu0 0
        %2053 = vmatpush1.bf16.xpose.msra.mxu0 0
        %2054 = vmatprep.mubr.bf16.mxu0 0
        %2055 = vmatmul.mubr.bf16.gmra.mrb[0].mxu0 %v2017
        %v2056 = vpop.f32.mrb[0].mxu0
        %v2057 = vadd.f32 %v1919, %v2056
        %v2058 = vpop.f32.mrb[0].mxu0
        %v2059 = vpop.f32.mrb[0].mxu0
        %v2060 = vpop.f32.mrb[0].mxu0
        %2061 = vdwg.mxu0
        %v2063 = vsel %vm1923, %v1910, 0
        %v2066 = vsel %vm1923, %v1914, 0
        %2068 = vmatprep.subr.bf16.mxu0 0
        %2069 = vmatpush1.bf16.xpose.msra.mxu0 %v2066
        %2070 = vmatprep.subr.bf16.mxu0 0
        %2071 = vmatpush1.bf16.xpose.msra.mxu0 0
        %2072 = vmatprep.subr.bf16.mxu0 0
        %2073 = vmatpush1.bf16.xpose.msra.mxu0 0
        %2074 = vmatprep.subr.bf16.mxu0 0
        %2075 = vmatpush1.bf16.xpose.msra.mxu0 0
        %2076 = vmatprep.subr.bf16.mxu0 0
        %2077 = vmatpush1.bf16.xpose.msra.mxu0 0
        %2078 = vmatprep.subr.bf16.mxu0 0
        %2079 = vmatpush1.bf16.xpose.msra.mxu0 0
        %2080 = vmatprep.subr.bf16.mxu0 0
        %2081 = vmatpush1.bf16.xpose.msra.mxu0 0
        %2082 = vmatprep.subr.bf16.mxu0 0
        %2083 = vmatpush1.bf16.xpose.msra.mxu0 0
        %2084 = vmatprep.subr.bf16.mxu0 0
        %2085 = vmatpush1.bf16.xpose.msra.mxu0 0
        %2086 = vmatprep.subr.bf16.mxu0 0
        %2087 = vmatpush1.bf16.xpose.msra.mxu0 0
        %2088 = vmatprep.subr.bf16.mxu0 0
        %2089 = vmatpush1.bf16.xpose.msra.mxu0 0
        %2090 = vmatprep.subr.bf16.mxu0 0
        %2091 = vmatpush1.bf16.xpose.msra.mxu0 0
        %2092 = vmatprep.subr.bf16.mxu0 0
        %2093 = vmatpush1.bf16.xpose.msra.mxu0 0
        %2094 = vmatprep.subr.bf16.mxu0 0
        %2095 = vmatpush1.bf16.xpose.msra.mxu0 0
        %2096 = vmatprep.subr.bf16.mxu0 0
        %2097 = vmatpush1.bf16.xpose.msra.mxu0 0
        %2098 = vmatprep.subr.bf16.mxu0 0
        %2099 = vmatpush1.bf16.xpose.msra.mxu0 0
        %2100 = vmatprep.mubr.bf16.mxu0 0
        %2101 = vmatmul.mubr.bf16.gmra.mrb[0].mxu0 %v2063
        %v2102 = vpop.f32.mrb[0].mxu0
        %v2103 = vadd.f32 %v1919, %v2102
        %v2104 = vpop.f32.mrb[0].mxu0
        %v2105 = vpop.f32.mrb[0].mxu0
        %v2106 = vpop.f32.mrb[0].mxu0
        %2107 = vdwg.mxu0
        %v2108 = vsel %vm1923, %v1965, -inf
        %2109 = vmax.xlane.f32.xlu0 %v2108
        %v2110 = vpop.xlane.xlu0 %2109
        %v2111 = vsel %vm1923, %v2011, -inf
        %2112 = vmax.xlane.f32.xlu0 %v2111
        %v2113 = vpop.xlane.xlu0 %2112
        %v2114 = vsel %vm1923, %v2057, -inf
        %2115 = vmax.xlane.f32.xlu0 %v2114
        %v2116 = vpop.xlane.xlu0 %2115
        %v2117 = vsel %vm1923, %v2103, -inf
        %2118 = vmax.xlane.f32.xlu0 %v2117
        %v2119 = vpop.xlane.xlu0 %2118
        %v2120 = vsub.f32 %v1965, %v2110
        %v2121 = vsub.f32 %v2011, %v2113
        %v2122 = vsub.f32 %v2057, %v2116
        %v2123 = vsub.f32 %v2103, %v2119
        %v2124 = vmul.f32 %v2120, 1.442695
        %v2125 = vpow.pop %v2124
        %v2126 = vmul.f32 %v2121, 1.442695
        %v2127 = vpow.pop %v2126
        %v2128 = vmul.f32 %v2122, 1.442695
        %v2129 = vpow.pop %v2128
        %v2130 = vmul.f32 %v2123, 1.442695
        %v2131 = vpow.pop %v2130
        %v2132 = vsel %vm1923, %v2125, 0.0
        %2133 = vadd.xlane.f32.xlu0 %v2132
        %v2134 = vpop.xlane.xlu0 %2133
        %v2135 = vsel %vm1923, %v2127, 0.0
        %2136 = vadd.xlane.f32.xlu0 %v2135
        %v2137 = vpop.xlane.xlu0 %2136
        %v2138 = vsel %vm1923, %v2129, 0.0
        %2139 = vadd.xlane.f32.xlu0 %v2138
        %v2140 = vpop.xlane.xlu0 %2139
        %v2141 = vsel %vm1923, %v2131, 0.0
        %2142 = vadd.xlane.f32.xlu0 %v2141
        %v2143 = vpop.xlane.xlu0 %2142
        %v2144 = vrcp.pop %v2134
        %v2145 = vrcp.pop %v2137
        %v2146 = vrcp.pop %v2140
        %v2147 = vrcp.pop %v2143
        %v2148 = vmul.f32 %v2125, %v2144
        %v2149 = vmul.f32 %v2127, %v2145
        %v2150 = vmul.f32 %v2129, %v2146
        %v2151 = vmul.f32 %v2131, %v2147
        %v2152 = vpack.c.bf16 %v2148, %v2148
        %v2153 = vpack.c.bf16 %v2149, %v2149
        %v2154 = vpack.c.bf16 %v2150, %v2150
        %v2155 = vpack.c.bf16 %v2151, %v2151
        %v2157 = vsel %vm1923, %v2152, 0
        %vm2159 = vcmask 1043456
        %v2161 = vsel %vm2159, %v1915, 0
        %2163 = vmatprep.subr.bf16.mxu0 0
        %2164 = vmatpush1.bf16.msra.mxu0 %v2161
        %2165 = vmatprep.subr.bf16.mxu0 0
        %2166 = vmatpush1.bf16.msra.mxu0 0
        %2167 = vmatprep.subr.bf16.mxu0 0
        %2168 = vmatpush1.bf16.msra.mxu0 0
        %2169 = vmatprep.subr.bf16.mxu0 0
        %2170 = vmatpush1.bf16.msra.mxu0 0
        %2171 = vmatprep.subr.bf16.mxu0 0
        %2172 = vmatpush1.bf16.msra.mxu0 0
        %2173 = vmatprep.subr.bf16.mxu0 0
        %2174 = vmatpush1.bf16.msra.mxu0 0
        %2175 = vmatprep.subr.bf16.mxu0 0
        %2176 = vmatpush1.bf16.msra.mxu0 0
        %2177 = vmatprep.subr.bf16.mxu0 0
        %2178 = vmatpush1.bf16.msra.mxu0 0
        %2179 = vmatprep.subr.bf16.mxu0 0
        %2180 = vmatpush1.bf16.msra.mxu0 0
        %2181 = vmatprep.subr.bf16.mxu0 0
        %2182 = vmatpush1.bf16.msra.mxu0 0
        %2183 = vmatprep.subr.bf16.mxu0 0
        %2184 = vmatpush1.bf16.msra.mxu0 0
        %2185 = vmatprep.subr.bf16.mxu0 0
        %2186 = vmatpush1.bf16.msra.mxu0 0
        %2187 = vmatprep.subr.bf16.mxu0 0
        %2188 = vmatpush1.bf16.msra.mxu0 0
        %2189 = vmatprep.subr.bf16.mxu0 0
        %2190 = vmatpush1.bf16.msra.mxu0 0
        %2191 = vmatprep.subr.bf16.mxu0 0
        %2192 = vmatpush1.bf16.msra.mxu0 0
        %2193 = vmatprep.subr.bf16.mxu0 0
        %2194 = vmatpush1.bf16.msra.mxu0 0
        %2195 = vmatprep.mubr.bf16.mxu0 0
        %2196 = vmatmul.mubr.bf16.gmra.mrb[0].mxu0 %v2157
        %v2197 = vpop.f32.mrb[0].mxu0
        %v2198 = vadd.f32 0.0, %v2197
        %v2199 = vpop.f32.mrb[0].mxu0
        %v2200 = vpop.f32.mrb[0].mxu0
        %v2201 = vpop.f32.mrb[0].mxu0
        %2202 = vdwg.mxu0
        %v2204 = vsel %vm1923, %v2153, 0
        %v2207 = vsel %vm2159, %v1916, 0
        %2209 = vmatprep.subr.bf16.mxu0 0
        %2210 = vmatpush1.bf16.msra.mxu0 %v2207
        %2211 = vmatprep.subr.bf16.mxu0 0
        %2212 = vmatpush1.bf16.msra.mxu0 0
        %2213 = vmatprep.subr.bf16.mxu0 0
        %2214 = vmatpush1.bf16.msra.mxu0 0
        %2215 = vmatprep.subr.bf16.mxu0 0
        %2216 = vmatpush1.bf16.msra.mxu0 0
        %2217 = vmatprep.subr.bf16.mxu0 0
        %2218 = vmatpush1.bf16.msra.mxu0 0
        %2219 = vmatprep.subr.bf16.mxu0 0
        %2220 = vmatpush1.bf16.msra.mxu0 0
        %2221 = vmatprep.subr.bf16.mxu0 0
        %2222 = vmatpush1.bf16.msra.mxu0 0
        %2223 = vmatprep.subr.bf16.mxu0 0
        %2224 = vmatpush1.bf16.msra.mxu0 0
        %2225 = vmatprep.subr.bf16.mxu0 0
        %2226 = vmatpush1.bf16.msra.mxu0 0
        %2227 = vmatprep.subr.bf16.mxu0 0
        %2228 = vmatpush1.bf16.msra.mxu0 0
        %2229 = vmatprep.subr.bf16.mxu0 0
        %2230 = vmatpush1.bf16.msra.mxu0 0
        %2231 = vmatprep.subr.bf16.mxu0 0
        %2232 = vmatpush1.bf16.msra.mxu0 0
        %2233 = vmatprep.subr.bf16.mxu0 0
        %2234 = vmatpush1.bf16.msra.mxu0 0
        %2235 = vmatprep.subr.bf16.mxu0 0
        %2236 = vmatpush1.bf16.msra.mxu0 0
        %2237 = vmatprep.subr.bf16.mxu0 0
        %2238 = vmatpush1.bf16.msra.mxu0 0
        %2239 = vmatprep.subr.bf16.mxu0 0
        %2240 = vmatpush1.bf16.msra.mxu0 0
        %2241 = vmatprep.mubr.bf16.mxu0 0
        %2242 = vmatmul.mubr.bf16.gmra.mrb[0].mxu0 %v2204
        %v2243 = vpop.f32.mrb[0].mxu0
        %v2244 = vadd.f32 0.0, %v2243
        %v2245 = vpop.f32.mrb[0].mxu0
        %v2246 = vpop.f32.mrb[0].mxu0
        %v2247 = vpop.f32.mrb[0].mxu0
        %2248 = vdwg.mxu0
        %v2250 = vsel %vm1923, %v2154, 0
        %v2253 = vsel %vm2159, %v1917, 0
        %2255 = vmatprep.subr.bf16.mxu0 0
        %2256 = vmatpush1.bf16.msra.mxu0 %v2253
        %2257 = vmatprep.subr.bf16.mxu0 0
        %2258 = vmatpush1.bf16.msra.mxu0 0
        %2259 = vmatprep.subr.bf16.mxu0 0
        %2260 = vmatpush1.bf16.msra.mxu0 0
        %2261 = vmatprep.subr.bf16.mxu0 0
        %2262 = vmatpush1.bf16.msra.mxu0 0
        %2263 = vmatprep.subr.bf16.mxu0 0
        %2264 = vmatpush1.bf16.msra.mxu0 0
        %2265 = vmatprep.subr.bf16.mxu0 0
        %2266 = vmatpush1.bf16.msra.mxu0 0
        %2267 = vmatprep.subr.bf16.mxu0 0
        %2268 = vmatpush1.bf16.msra.mxu0 0
        %2269 = vmatprep.subr.bf16.mxu0 0
        %2270 = vmatpush1.bf16.msra.mxu0 0
        %2271 = vmatprep.subr.bf16.mxu0 0
        %2272 = vmatpush1.bf16.msra.mxu0 0
        %2273 = vmatprep.subr.bf16.mxu0 0
        %2274 = vmatpush1.bf16.msra.mxu0 0
        %2275 = vmatprep.subr.bf16.mxu0 0
        %2276 = vmatpush1.bf16.msra.mxu0 0
        %2277 = vmatprep.subr.bf16.mxu0 0
        %2278 = vmatpush1.bf16.msra.mxu0 0
        %2279 = vmatprep.subr.bf16.mxu0 0
        %2280 = vmatpush1.bf16.msra.mxu0 0
        %2281 = vmatprep.subr.bf16.mxu0 0
        %2282 = vmatpush1.bf16.msra.mxu0 0
        %2283 = vmatprep.subr.bf16.mxu0 0
        %2284 = vmatpush1.bf16.msra.mxu0 0
        %2285 = vmatprep.subr.bf16.mxu0 0
        %2286 = vmatpush1.bf16.msra.mxu0 0
        %2287 = vmatprep.mubr.bf16.mxu0 0
        %2288 = vmatmul.mubr.bf16.gmra.mrb[0].mxu0 %v2250
        %v2289 = vpop.f32.mrb[0].mxu0
        %v2290 = vadd.f32 0.0, %v2289
        %v2291 = vpop.f32.mrb[0].mxu0
        %v2292 = vpop.f32.mrb[0].mxu0
        %v2293 = vpop.f32.mrb[0].mxu0
        %2294 = vdwg.mxu0
        %v2296 = vsel %vm1923, %v2155, 0
        %v2299 = vsel %vm2159, %v1918, 0
        %2301 = vmatprep.subr.bf16.mxu0 0
        %2302 = vmatpush1.bf16.msra.mxu0 %v2299
        %2303 = vmatprep.subr.bf16.mxu0 0
        %2304 = vmatpush1.bf16.msra.mxu0 0
        %2305 = vmatprep.subr.bf16.mxu0 0
        %2306 = vmatpush1.bf16.msra.mxu0 0
        %2307 = vmatprep.subr.bf16.mxu0 0
        %2308 = vmatpush1.bf16.msra.mxu0 0
        %2309 = vmatprep.subr.bf16.mxu0 0
        %2310 = vmatpush1.bf16.msra.mxu0 0
        %2311 = vmatprep.subr.bf16.mxu0 0
        %2312 = vmatpush1.bf16.msra.mxu0 0
        %2313 = vmatprep.subr.bf16.mxu0 0
        %2314 = vmatpush1.bf16.msra.mxu0 0
        %2315 = vmatprep.subr.bf16.mxu0 0
        %2316 = vmatpush1.bf16.msra.mxu0 0
        %2317 = vmatprep.subr.bf16.mxu0 0
        %2318 = vmatpush1.bf16.msra.mxu0 0
        %2319 = vmatprep.subr.bf16.mxu0 0
        %2320 = vmatpush1.bf16.msra.mxu0 0
        %2321 = vmatprep.subr.bf16.mxu0 0
        %2322 = vmatpush1.bf16.msra.mxu0 0
        %2323 = vmatprep.subr.bf16.mxu0 0
        %2324 = vmatpush1.bf16.msra.mxu0 0
        %2325 = vmatprep.subr.bf16.mxu0 0
        %2326 = vmatpush1.bf16.msra.mxu0 0
        %2327 = vmatprep.subr.bf16.mxu0 0
        %2328 = vmatpush1.bf16.msra.mxu0 0
        %2329 = vmatprep.subr.bf16.mxu0 0
        %2330 = vmatpush1.bf16.msra.mxu0 0
        %2331 = vmatprep.subr.bf16.mxu0 0
        %2332 = vmatpush1.bf16.msra.mxu0 0
        %2333 = vmatprep.mubr.bf16.mxu0 0
        %2334 = vmatmul.mubr.bf16.gmra.mrb[0].mxu0 %v2296
        %v2335 = vpop.f32.mrb[0].mxu0
        %v2336 = vadd.f32 0.0, %v2335
        %v2337 = vpop.f32.mrb[0].mxu0
        %v2338 = vpop.f32.mrb[0].mxu0
        %v2339 = vpop.f32.mrb[0].mxu0
        %2340 = vdwg.mxu0
        %v2342 = vlaneseq
        %v2343 = vshrl.u32 %v2342, 7
        %v2344 = vsub.s32 0, %v2343
        %v2345 = vrot.slane %v1921, %v2344
        %2346 = vset.pattern.permute.xlu0 0
        %2347 = vperm.xlu0 %2346, %v2345
        %v2348 = vpop.permute.xlu0 %2347
        %v2350 = vmul.f32 %v2198, %v2348
        %v2351 = vmul.f32 %v2244, %v2348
        %v2352 = vmul.f32 %v2290, %v2348
        %v2353 = vmul.f32 %v2336, %v2348
        %v2354 = vcombine.low %v2350, %v2352
        %v2355 = vcombine.high %v2350, %v2352
        %v2357 = vunpack.c.l.s4 1983009808
        %v2358 = vunpack.c.0.s8 %v2357
        %v2359 = vlaneseq
        %v2360 = vshrl.u32 %v2359, 7
        %v2361 = vsub.s32 %v2358, %v2360
        %v2362 = vrot.slane %v2354, %v2361
        %v2364 = vunpack.c.l.s4 1983009808
        %v2365 = vunpack.c.0.s8 %v2364
        %v2366 = vlaneseq
        %v2367 = vshrl.u32 %v2366, 7
        %v2368 = vsub.s32 %v2365, %v2367
        %v2369 = vrot.slane %v2355, %v2368
        %v2370 = vcombine.low %v2351, %v2353
        %v2371 = vcombine.high %v2351, %v2353
        %v2373 = vunpack.c.l.s4 1983009808
        %v2374 = vunpack.c.0.s8 %v2373
        %v2375 = vlaneseq
        %v2376 = vshrl.u32 %v2375, 7
        %v2377 = vsub.s32 %v2374, %v2376
        %v2378 = vrot.slane %v2370, %v2377
        %v2380 = vunpack.c.l.s4 1983009808
        %v2381 = vunpack.c.0.s8 %v2380
        %v2382 = vlaneseq
        %v2383 = vshrl.u32 %v2382, 7
        %v2384 = vsub.s32 %v2381, %v2383
        %v2385 = vrot.slane %v2371, %v2384
        %v2386 = vcombine.low %v2362, %v2378
        %v2387 = vcombine.high %v2362, %v2378
        %v2389 = vunpack.c.l.s4 1934713408
        %v2390 = vunpack.c.0.s8 %v2389
        %v2391 = vlaneseq
        %v2392 = vshrl.u32 %v2391, 7
        %v2393 = vsub.s32 %v2390, %v2392
        %v2394 = vrot.slane %v2386, %v2393
        %v2396 = vunpack.c.l.s4 1934713408
        %v2397 = vunpack.c.0.s8 %v2396
        %v2398 = vlaneseq
        %v2399 = vshrl.u32 %v2398, 7
        %v2400 = vsub.s32 %v2397, %v2399
        %v2401 = vrot.slane %v2387, %v2400
        %v2402 = vcombine.low %v2369, %v2385
        %v2403 = vcombine.high %v2369, %v2385
        %v2405 = vunpack.c.l.s4 1934713408
        %v2406 = vunpack.c.0.s8 %v2405
        %v2407 = vlaneseq
        %v2408 = vshrl.u32 %v2407, 7
        %v2409 = vsub.s32 %v2406, %v2408
        %v2410 = vrot.slane %v2402, %v2409
        %v2412 = vunpack.c.l.s4 1934713408
        %v2413 = vunpack.c.0.s8 %v2412
        %v2414 = vlaneseq
        %v2415 = vshrl.u32 %v2414, 7
        %v2416 = vsub.s32 %v2413, %v2415
        %v2417 = vrot.slane %v2403, %v2416
        %v2418 = vcombine.high %v2394, 0.0
        %v2419 = vcombine.high %v2401, 0.0
        %v2420 = vcombine.high %v2410, 0.0
        %v2421 = vcombine.high %v2417, 0.0
        %v2422 = vcombine.low %v2394, %v2401
        %v2424 = vunpack.c.l.s4 1983009808
        %v2425 = vunpack.c.0.s8 %v2424
        %v2426 = vlaneseq
        %v2427 = vshrl.u32 %v2426, 7
        %v2428 = vsub.s32 %v2425, %v2427
        %v2429 = vrot.slane %v2422, %v2428
        %v2430 = vcombine.low %v2418, %v2419
        %v2432 = vunpack.c.l.s4 1983009808
        %v2433 = vunpack.c.0.s8 %v2432
        %v2434 = vlaneseq
        %v2435 = vshrl.u32 %v2434, 7
        %v2436 = vsub.s32 %v2433, %v2435
        %v2437 = vrot.slane %v2430, %v2436
        %v2438 = vcombine.low %v2410, %v2417
        %v2440 = vunpack.c.l.s4 1983009808
        %v2441 = vunpack.c.0.s8 %v2440
        %v2442 = vlaneseq
        %v2443 = vshrl.u32 %v2442, 7
        %v2444 = vsub.s32 %v2441, %v2443
        %v2445 = vrot.slane %v2438, %v2444
        %v2446 = vcombine.low %v2420, %v2421
        %v2448 = vunpack.c.l.s4 1983009808
        %v2449 = vunpack.c.0.s8 %v2448
        %v2450 = vlaneseq
        %v2451 = vshrl.u32 %v2450, 7
        %v2452 = vsub.s32 %v2449, %v2451
        %v2453 = vrot.slane %v2446, %v2452
        %v2454 = vcombine.low %v2429, %v2437
        %v2455 = vcombine.high %v2429, %v2437
        %v2457 = vunpack.c.l.s4 1934713408
        %v2458 = vunpack.c.0.s8 %v2457
        %v2459 = vlaneseq
        %v2460 = vshrl.u32 %v2459, 7
        %v2461 = vsub.s32 %v2458, %v2460
        %v2462 = vrot.slane %v2454, %v2461
        %v2464 = vunpack.c.l.s4 1934713408
        %v2465 = vunpack.c.0.s8 %v2464
        %v2466 = vlaneseq
        %v2467 = vshrl.u32 %v2466, 7
        %v2468 = vsub.s32 %v2465, %v2467
        %v2469 = vrot.slane %v2455, %v2468
        %v2470 = vcombine.low %v2445, %v2453
        %v2471 = vcombine.high %v2445, %v2453
        %v2473 = vunpack.c.l.s4 1934713408
        %v2474 = vunpack.c.0.s8 %v2473
        %v2475 = vlaneseq
        %v2476 = vshrl.u32 %v2475, 7
        %v2477 = vsub.s32 %v2474, %v2476
        %v2478 = vrot.slane %v2470, %v2477
        %v2480 = vunpack.c.l.s4 1934713408
        %v2481 = vunpack.c.0.s8 %v2480
        %v2482 = vlaneseq
        %v2483 = vshrl.u32 %v2482, 7
        %v2484 = vsub.s32 %v2481, %v2483
        %v2485 = vrot.slane %v2471, %v2484
        %v2486 = vcombine.low %v2462, %v2478
        %v2487 = vcombine.high %v2462, %v2478
        %v2488 = vcombine.low %v2469, %v2485
        %v2489 = vcombine.high %v2469, %v2485
        %2491 = vrot.lane.b32.xlu0 %v2487, 8
        %v2492 = vpop.permute.xlu0 %2491
        %2495 = vrot.lane.b32.xlu0 %v2488, 16
        %v2496 = vpop.permute.xlu0 %2495
        %2499 = vrot.lane.b32.xlu0 %v2489, 24
        %v2500 = vpop.permute.xlu0 %2499
        %v2502 = vsel %vm1923, %v2486, %v2492
        %vm2503 = vcmask 130048
        %v2504 = vsel %vm2503, %v2502, %v2496
        %vm2505 = vcmask 195584
        %v2506 = vsel %vm2505, %v2504, %v2500
        %v2508 = vrot.slane %v1907, 4
        %v2510 = vrot.slane %v1911, 4
        %v2512 = vsel %vm1923, %v2508, 0
        %v2515 = vsel %vm1923, %v2510, 0
        %2517 = vmatprep.subr.bf16.mxu0 0
        %2518 = vmatpush1.bf16.xpose.msra.mxu0 %v2515
        %2519 = vmatprep.subr.bf16.mxu0 0
        %2520 = vmatpush1.bf16.xpose.msra.mxu0 0
        %2521 = vmatprep.subr.bf16.mxu0 0
        %2522 = vmatpush1.bf16.xpose.msra.mxu0 0
        %2523 = vmatprep.subr.bf16.mxu0 0
        %2524 = vmatpush1.bf16.xpose.msra.mxu0 0
        %2525 = vmatprep.subr.bf16.mxu0 0
        %2526 = vmatpush1.bf16.xpose.msra.mxu0 0
        %2527 = vmatprep.subr.bf16.mxu0 0
        %2528 = vmatpush1.bf16.xpose.msra.mxu0 0
        %2529 = vmatprep.subr.bf16.mxu0 0
        %2530 = vmatpush1.bf16.xpose.msra.mxu0 0
        %2531 = vmatprep.subr.bf16.mxu0 0
        %2532 = vmatpush1.bf16.xpose.msra.mxu0 0
        %2533 = vmatprep.subr.bf16.mxu0 0
        %2534 = vmatpush1.bf16.xpose.msra.mxu0 0
        %2535 = vmatprep.subr.bf16.mxu0 0
        %2536 = vmatpush1.bf16.xpose.msra.mxu0 0
        %2537 = vmatprep.subr.bf16.mxu0 0
        %2538 = vmatpush1.bf16.xpose.msra.mxu0 0
        %2539 = vmatprep.subr.bf16.mxu0 0
        %2540 = vmatpush1.bf16.xpose.msra.mxu0 0
        %2541 = vmatprep.subr.bf16.mxu0 0
        %2542 = vmatpush1.bf16.xpose.msra.mxu0 0
        %2543 = vmatprep.subr.bf16.mxu0 0
        %2544 = vmatpush1.bf16.xpose.msra.mxu0 0
        %2545 = vmatprep.subr.bf16.mxu0 0
        %2546 = vmatpush1.bf16.xpose.msra.mxu0 0
        %2547 = vmatprep.subr.bf16.mxu0 0
        %2548 = vmatpush1.bf16.xpose.msra.mxu0 0
        %2549 = vmatprep.mubr.bf16.mxu0 0
        %2550 = vmatmul.mubr.bf16.gmra.mrb[0].mxu0 %v2512
        %v2551 = vpop.f32.mrb[0].mxu0
        %v2552 = vadd.f32 %v1920, %v2551
        %v2553 = vpop.f32.mrb[0].mxu0
        %v2554 = vpop.f32.mrb[0].mxu0
        %v2555 = vpop.f32.mrb[0].mxu0
        %2556 = vdwg.mxu0
        %v2558 = vrot.slane %v1908, 4
        %v2560 = vrot.slane %v1912, 4
        %v2562 = vsel %vm1923, %v2558, 0
        %v2565 = vsel %vm1923, %v2560, 0
        %2567 = vmatprep.subr.bf16.mxu0 0
        %2568 = vmatpush1.bf16.xpose.msra.mxu0 %v2565
        %2569 = vmatprep.subr.bf16.mxu0 0
        %2570 = vmatpush1.bf16.xpose.msra.mxu0 0
        %2571 = vmatprep.subr.bf16.mxu0 0
        %2572 = vmatpush1.bf16.xpose.msra.mxu0 0
        %2573 = vmatprep.subr.bf16.mxu0 0
        %2574 = vmatpush1.bf16.xpose.msra.mxu0 0
        %2575 = vmatprep.subr.bf16.mxu0 0
        %2576 = vmatpush1.bf16.xpose.msra.mxu0 0
        %2577 = vmatprep.subr.bf16.mxu0 0
        %2578 = vmatpush1.bf16.xpose.msra.mxu0 0
        %2579 = vmatprep.subr.bf16.mxu0 0
        %2580 = vmatpush1.bf16.xpose.msra.mxu0 0
        %2581 = vmatprep.subr.bf16.mxu0 0
        %2582 = vmatpush1.bf16.xpose.msra.mxu0 0
        %2583 = vmatprep.subr.bf16.mxu0 0
        %2584 = vmatpush1.bf16.xpose.msra.mxu0 0
        %2585 = vmatprep.subr.bf16.mxu0 0
        %2586 = vmatpush1.bf16.xpose.msra.mxu0 0
        %2587 = vmatprep.subr.bf16.mxu0 0
        %2588 = vmatpush1.bf16.xpose.msra.mxu0 0
        %2589 = vmatprep.subr.bf16.mxu0 0
        %2590 = vmatpush1.bf16.xpose.msra.mxu0 0
        %2591 = vmatprep.subr.bf16.mxu0 0
        %2592 = vmatpush1.bf16.xpose.msra.mxu0 0
        %2593 = vmatprep.subr.bf16.mxu0 0
        %2594 = vmatpush1.bf16.xpose.msra.mxu0 0
        %2595 = vmatprep.subr.bf16.mxu0 0
        %2596 = vmatpush1.bf16.xpose.msra.mxu0 0
        %2597 = vmatprep.subr.bf16.mxu0 0
        %2598 = vmatpush1.bf16.xpose.msra.mxu0 0
        %2599 = vmatprep.mubr.bf16.mxu0 0
        %2600 = vmatmul.mubr.bf16.gmra.mrb[0].mxu0 %v2562
        %v2601 = vpop.f32.mrb[0].mxu0
        %v2602 = vadd.f32 %v1920, %v2601
        %v2603 = vpop.f32.mrb[0].mxu0
        %v2604 = vpop.f32.mrb[0].mxu0
        %v2605 = vpop.f32.mrb[0].mxu0
        %2606 = vdwg.mxu0
        %v2608 = vrot.slane %v1909, 4
        %v2610 = vrot.slane %v1913, 4
        %v2612 = vsel %vm1923, %v2608, 0
        %v2615 = vsel %vm1923, %v2610, 0
        %2617 = vmatprep.subr.bf16.mxu0 0
        %2618 = vmatpush1.bf16.xpose.msra.mxu0 %v2615
        %2619 = vmatprep.subr.bf16.mxu0 0
        %2620 = vmatpush1.bf16.xpose.msra.mxu0 0
        %2621 = vmatprep.subr.bf16.mxu0 0
        %2622 = vmatpush1.bf16.xpose.msra.mxu0 0
        %2623 = vmatprep.subr.bf16.mxu0 0
        %2624 = vmatpush1.bf16.xpose.msra.mxu0 0
        %2625 = vmatprep.subr.bf16.mxu0 0
        %2626 = vmatpush1.bf16.xpose.msra.mxu0 0
        %2627 = vmatprep.subr.bf16.mxu0 0
        %2628 = vmatpush1.bf16.xpose.msra.mxu0 0
        %2629 = vmatprep.subr.bf16.mxu0 0
        %2630 = vmatpush1.bf16.xpose.msra.mxu0 0
        %2631 = vmatprep.subr.bf16.mxu0 0
        %2632 = vmatpush1.bf16.xpose.msra.mxu0 0
        %2633 = vmatprep.subr.bf16.mxu0 0
        %2634 = vmatpush1.bf16.xpose.msra.mxu0 0
        %2635 = vmatprep.subr.bf16.mxu0 0
        %2636 = vmatpush1.bf16.xpose.msra.mxu0 0
        %2637 = vmatprep.subr.bf16.mxu0 0
        %2638 = vmatpush1.bf16.xpose.msra.mxu0 0
        %2639 = vmatprep.subr.bf16.mxu0 0
        %2640 = vmatpush1.bf16.xpose.msra.mxu0 0
        %2641 = vmatprep.subr.bf16.mxu0 0
        %2642 = vmatpush1.bf16.xpose.msra.mxu0 0
        %2643 = vmatprep.subr.bf16.mxu0 0
        %2644 = vmatpush1.bf16.xpose.msra.mxu0 0
        %2645 = vmatprep.subr.bf16.mxu0 0
        %2646 = vmatpush1.bf16.xpose.msra.mxu0 0
        %2647 = vmatprep.subr.bf16.mxu0 0
        %2648 = vmatpush1.bf16.xpose.msra.mxu0 0
        %2649 = vmatprep.mubr.bf16.mxu0 0
        %2650 = vmatmul.mubr.bf16.gmra.mrb[0].mxu0 %v2612
        %v2651 = vpop.f32.mrb[0].mxu0
        %v2652 = vadd.f32 %v1920, %v2651
        %v2653 = vpop.f32.mrb[0].mxu0
        %v2654 = vpop.f32.mrb[0].mxu0
        %v2655 = vpop.f32.mrb[0].mxu0
        %2656 = vdwg.mxu0
        %v2658 = vrot.slane %v1910, 4
        %v2660 = vrot.slane %v1914, 4
        %v2662 = vsel %vm1923, %v2658, 0
        %v2665 = vsel %vm1923, %v2660, 0
        %2667 = vmatprep.subr.bf16.mxu0 0
        %2668 = vmatpush1.bf16.xpose.msra.mxu0 %v2665
        %2669 = vmatprep.subr.bf16.mxu0 0
        %2670 = vmatpush1.bf16.xpose.msra.mxu0 0
        %2671 = vmatprep.subr.bf16.mxu0 0
        %2672 = vmatpush1.bf16.xpose.msra.mxu0 0
        %2673 = vmatprep.subr.bf16.mxu0 0
        %2674 = vmatpush1.bf16.xpose.msra.mxu0 0
        %2675 = vmatprep.subr.bf16.mxu0 0
        %2676 = vmatpush1.bf16.xpose.msra.mxu0 0
        %2677 = vmatprep.subr.bf16.mxu0 0
        %2678 = vmatpush1.bf16.xpose.msra.mxu0 0
        %2679 = vmatprep.subr.bf16.mxu0 0
        %2680 = vmatpush1.bf16.xpose.msra.mxu0 0
        %2681 = vmatprep.subr.bf16.mxu0 0
        %2682 = vmatpush1.bf16.xpose.msra.mxu0 0
        %2683 = vmatprep.subr.bf16.mxu0 0
        %2684 = vmatpush1.bf16.xpose.msra.mxu0 0
        %2685 = vmatprep.subr.bf16.mxu0 0
        %2686 = vmatpush1.bf16.xpose.msra.mxu0 0
        %2687 = vmatprep.subr.bf16.mxu0 0
        %2688 = vmatpush1.bf16.xpose.msra.mxu0 0
        %2689 = vmatprep.subr.bf16.mxu0 0
        %2690 = vmatpush1.bf16.xpose.msra.mxu0 0
        %2691 = vmatprep.subr.bf16.mxu0 0
        %2692 = vmatpush1.bf16.xpose.msra.mxu0 0
        %2693 = vmatprep.subr.bf16.mxu0 0
        %2694 = vmatpush1.bf16.xpose.msra.mxu0 0
        %2695 = vmatprep.subr.bf16.mxu0 0
        %2696 = vmatpush1.bf16.xpose.msra.mxu0 0
        %2697 = vmatprep.subr.bf16.mxu0 0
        %2698 = vmatpush1.bf16.xpose.msra.mxu0 0
        %2699 = vmatprep.mubr.bf16.mxu0 0
        %2700 = vmatmul.mubr.bf16.gmra.mrb[0].mxu0 %v2662
        %v2701 = vpop.f32.mrb[0].mxu0
        %v2702 = vadd.f32 %v1920, %v2701
        %v2703 = vpop.f32.mrb[0].mxu0
        %v2704 = vpop.f32.mrb[0].mxu0
        %v2705 = vpop.f32.mrb[0].mxu0
        %2706 = vdwg.mxu0
        %v2707 = vsel %vm1923, %v2552, -inf
        %2708 = vmax.xlane.f32.xlu0 %v2707
        %v2709 = vpop.xlane.xlu0 %2708
        %v2710 = vsel %vm1923, %v2602, -inf
        %2711 = vmax.xlane.f32.xlu0 %v2710
        %v2712 = vpop.xlane.xlu0 %2711
        %v2713 = vsel %vm1923, %v2652, -inf
        %2714 = vmax.xlane.f32.xlu0 %v2713
        %v2715 = vpop.xlane.xlu0 %2714
        %v2716 = vsel %vm1923, %v2702, -inf
        %2717 = vmax.xlane.f32.xlu0 %v2716
        %v2718 = vpop.xlane.xlu0 %2717
        %v2719 = vsub.f32 %v2552, %v2709
        %v2720 = vsub.f32 %v2602, %v2712
        %v2721 = vsub.f32 %v2652, %v2715
        %v2722 = vsub.f32 %v2702, %v2718
        %v2723 = vmul.f32 %v2719, 1.442695
        %v2724 = vpow.pop %v2723
        %v2725 = vmul.f32 %v2720, 1.442695
        %v2726 = vpow.pop %v2725
        %v2727 = vmul.f32 %v2721, 1.442695
        %v2728 = vpow.pop %v2727
        %v2729 = vmul.f32 %v2722, 1.442695
        %v2730 = vpow.pop %v2729
        %v2731 = vsel %vm1923, %v2724, 0.0
        %2732 = vadd.xlane.f32.xlu0 %v2731
        %v2733 = vpop.xlane.xlu0 %2732
        %v2734 = vsel %vm1923, %v2726, 0.0
        %2735 = vadd.xlane.f32.xlu0 %v2734
        %v2736 = vpop.xlane.xlu0 %2735
        %v2737 = vsel %vm1923, %v2728, 0.0
        %2738 = vadd.xlane.f32.xlu0 %v2737
        %v2739 = vpop.xlane.xlu0 %2738
        %v2740 = vsel %vm1923, %v2730, 0.0
        %2741 = vadd.xlane.f32.xlu0 %v2740
        %v2742 = vpop.xlane.xlu0 %2741
        %v2743 = vrcp.pop %v2733
        %v2744 = vrcp.pop %v2736
        %v2745 = vrcp.pop %v2739
        %v2746 = vrcp.pop %v2742
        %v2747 = vmul.f32 %v2724, %v2743
        %v2748 = vmul.f32 %v2726, %v2744
        %v2749 = vmul.f32 %v2728, %v2745
        %v2750 = vmul.f32 %v2730, %v2746
        %v2751 = vpack.c.bf16 %v2747, %v2747
        %v2752 = vpack.c.bf16 %v2748, %v2748
        %v2753 = vpack.c.bf16 %v2749, %v2749
        %v2754 = vpack.c.bf16 %v2750, %v2750
        %v2756 = vrot.slane %v1915, 4
        %v2758 = vsel %vm1923, %v2751, 0
        %v2761 = vsel %vm2159, %v2756, 0
        %2763 = vmatprep.subr.bf16.mxu0 0
        %2764 = vmatpush1.bf16.msra.mxu0 %v2761
        %2765 = vmatprep.subr.bf16.mxu0 0
        %2766 = vmatpush1.bf16.msra.mxu0 0
        %2767 = vmatprep.subr.bf16.mxu0 0
        %2768 = vmatpush1.bf16.msra.mxu0 0
        %2769 = vmatprep.subr.bf16.mxu0 0
        %2770 = vmatpush1.bf16.msra.mxu0 0
        %2771 = vmatprep.subr.bf16.mxu0 0
        %2772 = vmatpush1.bf16.msra.mxu0 0
        %2773 = vmatprep.subr.bf16.mxu0 0
        %2774 = vmatpush1.bf16.msra.mxu0 0
        %2775 = vmatprep.subr.bf16.mxu0 0
        %2776 = vmatpush1.bf16.msra.mxu0 0
        %2777 = vmatprep.subr.bf16.mxu0 0
        %2778 = vmatpush1.bf16.msra.mxu0 0
        %2779 = vmatprep.subr.bf16.mxu0 0
        %2780 = vmatpush1.bf16.msra.mxu0 0
        %2781 = vmatprep.subr.bf16.mxu0 0
        %2782 = vmatpush1.bf16.msra.mxu0 0
        %2783 = vmatprep.subr.bf16.mxu0 0
        %2784 = vmatpush1.bf16.msra.mxu0 0
        %2785 = vmatprep.subr.bf16.mxu0 0
        %2786 = vmatpush1.bf16.msra.mxu0 0
        %2787 = vmatprep.subr.bf16.mxu0 0
        %2788 = vmatpush1.bf16.msra.mxu0 0
        %2789 = vmatprep.subr.bf16.mxu0 0
        %2790 = vmatpush1.bf16.msra.mxu0 0
        %2791 = vmatprep.subr.bf16.mxu0 0
        %2792 = vmatpush1.bf16.msra.mxu0 0
        %2793 = vmatprep.subr.bf16.mxu0 0
        %2794 = vmatpush1.bf16.msra.mxu0 0
        %2795 = vmatprep.mubr.bf16.mxu0 0
        %2796 = vmatmul.mubr.bf16.gmra.mrb[0].mxu0 %v2758
        %v2797 = vpop.f32.mrb[0].mxu0
        %v2798 = vadd.f32 0.0, %v2797
        %v2799 = vpop.f32.mrb[0].mxu0
        %v2800 = vpop.f32.mrb[0].mxu0
        %v2801 = vpop.f32.mrb[0].mxu0
        %2802 = vdwg.mxu0
        %v2804 = vrot.slane %v1916, 4
        %v2806 = vsel %vm1923, %v2752, 0
        %v2809 = vsel %vm2159, %v2804, 0
        %2811 = vmatprep.subr.bf16.mxu0 0
        %2812 = vmatpush1.bf16.msra.mxu0 %v2809
        %2813 = vmatprep.subr.bf16.mxu0 0
        %2814 = vmatpush1.bf16.msra.mxu0 0
        %2815 = vmatprep.subr.bf16.mxu0 0
        %2816 = vmatpush1.bf16.msra.mxu0 0
        %2817 = vmatprep.subr.bf16.mxu0 0
        %2818 = vmatpush1.bf16.msra.mxu0 0
        %2819 = vmatprep.subr.bf16.mxu0 0
        %2820 = vmatpush1.bf16.msra.mxu0 0
        %2821 = vmatprep.subr.bf16.mxu0 0
        %2822 = vmatpush1.bf16.msra.mxu0 0
        %2823 = vmatprep.subr.bf16.mxu0 0
        %2824 = vmatpush1.bf16.msra.mxu0 0
        %2825 = vmatprep.subr.bf16.mxu0 0
        %2826 = vmatpush1.bf16.msra.mxu0 0
        %2827 = vmatprep.subr.bf16.mxu0 0
        %2828 = vmatpush1.bf16.msra.mxu0 0
        %2829 = vmatprep.subr.bf16.mxu0 0
        %2830 = vmatpush1.bf16.msra.mxu0 0
        %2831 = vmatprep.subr.bf16.mxu0 0
        %2832 = vmatpush1.bf16.msra.mxu0 0
        %2833 = vmatprep.subr.bf16.mxu0 0
        %2834 = vmatpush1.bf16.msra.mxu0 0
        %2835 = vmatprep.subr.bf16.mxu0 0
        %2836 = vmatpush1.bf16.msra.mxu0 0
        %2837 = vmatprep.subr.bf16.mxu0 0
        %2838 = vmatpush1.bf16.msra.mxu0 0
        %2839 = vmatprep.subr.bf16.mxu0 0
        %2840 = vmatpush1.bf16.msra.mxu0 0
        %2841 = vmatprep.subr.bf16.mxu0 0
        %2842 = vmatpush1.bf16.msra.mxu0 0
        %2843 = vmatprep.mubr.bf16.mxu0 0
        %2844 = vmatmul.mubr.bf16.gmra.mrb[0].mxu0 %v2806
        %v2845 = vpop.f32.mrb[0].mxu0
        %v2846 = vadd.f32 0.0, %v2845
        %v2847 = vpop.f32.mrb[0].mxu0
        %v2848 = vpop.f32.mrb[0].mxu0
        %v2849 = vpop.f32.mrb[0].mxu0
        %2850 = vdwg.mxu0
        %v2852 = vrot.slane %v1917, 4
        %v2854 = vsel %vm1923, %v2753, 0
        %v2857 = vsel %vm2159, %v2852, 0
        %2859 = vmatprep.subr.bf16.mxu0 0
        %2860 = vmatpush1.bf16.msra.mxu0 %v2857
        %2861 = vmatprep.subr.bf16.mxu0 0
        %2862 = vmatpush1.bf16.msra.mxu0 0
        %2863 = vmatprep.subr.bf16.mxu0 0
        %2864 = vmatpush1.bf16.msra.mxu0 0
        %2865 = vmatprep.subr.bf16.mxu0 0
        %2866 = vmatpush1.bf16.msra.mxu0 0
        %2867 = vmatprep.subr.bf16.mxu0 0
        %2868 = vmatpush1.bf16.msra.mxu0 0
        %2869 = vmatprep.subr.bf16.mxu0 0
        %2870 = vmatpush1.bf16.msra.mxu0 0
        %2871 = vmatprep.subr.bf16.mxu0 0
        %2872 = vmatpush1.bf16.msra.mxu0 0
        %2873 = vmatprep.subr.bf16.mxu0 0
        %2874 = vmatpush1.bf16.msra.mxu0 0
        %2875 = vmatprep.subr.bf16.mxu0 0
        %2876 = vmatpush1.bf16.msra.mxu0 0
        %2877 = vmatprep.subr.bf16.mxu0 0
        %2878 = vmatpush1.bf16.msra.mxu0 0
        %2879 = vmatprep.subr.bf16.mxu0 0
        %2880 = vmatpush1.bf16.msra.mxu0 0
        %2881 = vmatprep.subr.bf16.mxu0 0
        %2882 = vmatpush1.bf16.msra.mxu0 0
        %2883 = vmatprep.subr.bf16.mxu0 0
        %2884 = vmatpush1.bf16.msra.mxu0 0
        %2885 = vmatprep.subr.bf16.mxu0 0
        %2886 = vmatpush1.bf16.msra.mxu0 0
        %2887 = vmatprep.subr.bf16.mxu0 0
        %2888 = vmatpush1.bf16.msra.mxu0 0
        %2889 = vmatprep.subr.bf16.mxu0 0
        %2890 = vmatpush1.bf16.msra.mxu0 0
        %2891 = vmatprep.mubr.bf16.mxu0 0
        %2892 = vmatmul.mubr.bf16.gmra.mrb[0].mxu0 %v2854
        %v2893 = vpop.f32.mrb[0].mxu0
        %v2894 = vadd.f32 0.0, %v2893
        %v2895 = vpop.f32.mrb[0].mxu0
        %v2896 = vpop.f32.mrb[0].mxu0
        %v2897 = vpop.f32.mrb[0].mxu0
        %2898 = vdwg.mxu0
        %v2900 = vrot.slane %v1918, 4
        %v2902 = vsel %vm1923, %v2754, 0
        %v2905 = vsel %vm2159, %v2900, 0
        %2907 = vmatprep.subr.bf16.mxu0 0
        %2908 = vmatpush1.bf16.msra.mxu0 %v2905
        %2909 = vmatprep.subr.bf16.mxu0 0
        %2910 = vmatpush1.bf16.msra.mxu0 0
        %2911 = vmatprep.subr.bf16.mxu0 0
        %2912 = vmatpush1.bf16.msra.mxu0 0
        %2913 = vmatprep.subr.bf16.mxu0 0
        %2914 = vmatpush1.bf16.msra.mxu0 0
        %2915 = vmatprep.subr.bf16.mxu0 0
        %2916 = vmatpush1.bf16.msra.mxu0 0
        %2917 = vmatprep.subr.bf16.mxu0 0
        %2918 = vmatpush1.bf16.msra.mxu0 0
        %2919 = vmatprep.subr.bf16.mxu0 0
        %2920 = vmatpush1.bf16.msra.mxu0 0
        %2921 = vmatprep.subr.bf16.mxu0 0
        %2922 = vmatpush1.bf16.msra.mxu0 0
        %2923 = vmatprep.subr.bf16.mxu0 0
        %2924 = vmatpush1.bf16.msra.mxu0 0
        %2925 = vmatprep.subr.bf16.mxu0 0
        %2926 = vmatpush1.bf16.msra.mxu0 0
        %2927 = vmatprep.subr.bf16.mxu0 0
        %2928 = vmatpush1.bf16.msra.mxu0 0
        %2929 = vmatprep.subr.bf16.mxu0 0
        %2930 = vmatpush1.bf16.msra.mxu0 0
        %2931 = vmatprep.subr.bf16.mxu0 0
        %2932 = vmatpush1.bf16.msra.mxu0 0
        %2933 = vmatprep.subr.bf16.mxu0 0
        %2934 = vmatpush1.bf16.msra.mxu0 0
        %2935 = vmatprep.subr.bf16.mxu0 0
        %2936 = vmatpush1.bf16.msra.mxu0 0
        %2937 = vmatprep.subr.bf16.mxu0 0
        %2938 = vmatpush1.bf16.msra.mxu0 0
        %2939 = vmatprep.mubr.bf16.mxu0 0
        %2940 = vmatmul.mubr.bf16.gmra.mrb[0].mxu0 %v2902
        %v2941 = vpop.f32.mrb[0].mxu0
        %v2942 = vadd.f32 0.0, %v2941
        %v2943 = vpop.f32.mrb[0].mxu0
        %v2944 = vpop.f32.mrb[0].mxu0
        %v2945 = vpop.f32.mrb[0].mxu0
        %2946 = vdwg.mxu0
        %v2948 = vlaneseq
        %v2949 = vshrl.u32 %v2948, 7
        %v2950 = vsub.s32 0, %v2949
        %v2951 = vrot.slane %v1922, %v2950
        %2952 = vset.pattern.permute.xlu0 0
        %2953 = vperm.xlu0 %2952, %v2951
        %v2954 = vpop.permute.xlu0 %2953
        %v2956 = vmul.f32 %v2798, %v2954
        %v2957 = vmul.f32 %v2846, %v2954
        %v2958 = vmul.f32 %v2894, %v2954
        %v2959 = vmul.f32 %v2942, %v2954
        %v2960 = vcombine.low %v2956, %v2958
        %v2961 = vcombine.high %v2956, %v2958
        %v2963 = vunpack.c.l.s4 1983009808
        %v2964 = vunpack.c.0.s8 %v2963
        %v2965 = vlaneseq
        %v2966 = vshrl.u32 %v2965, 7
        %v2967 = vsub.s32 %v2964, %v2966
        %v2968 = vrot.slane %v2960, %v2967
        %v2970 = vunpack.c.l.s4 1983009808
        %v2971 = vunpack.c.0.s8 %v2970
        %v2972 = vlaneseq
        %v2973 = vshrl.u32 %v2972, 7
        %v2974 = vsub.s32 %v2971, %v2973
        %v2975 = vrot.slane %v2961, %v2974
        %v2976 = vcombine.low %v2957, %v2959
        %v2977 = vcombine.high %v2957, %v2959
        %v2979 = vunpack.c.l.s4 1983009808
        %v2980 = vunpack.c.0.s8 %v2979
        %v2981 = vlaneseq
        %v2982 = vshrl.u32 %v2981, 7
        %v2983 = vsub.s32 %v2980, %v2982
        %v2984 = vrot.slane %v2976, %v2983
        %v2986 = vunpack.c.l.s4 1983009808
        %v2987 = vunpack.c.0.s8 %v2986
        %v2988 = vlaneseq
        %v2989 = vshrl.u32 %v2988, 7
        %v2990 = vsub.s32 %v2987, %v2989
        %v2991 = vrot.slane %v2977, %v2990
        %v2992 = vcombine.low %v2968, %v2984
        %v2993 = vcombine.high %v2968, %v2984
        %v2995 = vunpack.c.l.s4 1934713408
        %v2996 = vunpack.c.0.s8 %v2995
        %v2997 = vlaneseq
        %v2998 = vshrl.u32 %v2997, 7
        %v2999 = vsub.s32 %v2996, %v2998
        %v3000 = vrot.slane %v2992, %v2999
        %v3002 = vunpack.c.l.s4 1934713408
        %v3003 = vunpack.c.0.s8 %v3002
        %v3004 = vlaneseq
        %v3005 = vshrl.u32 %v3004, 7
        %v3006 = vsub.s32 %v3003, %v3005
        %v3007 = vrot.slane %v2993, %v3006
        %v3008 = vcombine.low %v2975, %v2991
        %v3009 = vcombine.high %v2975, %v2991
        %v3011 = vunpack.c.l.s4 1934713408
        %v3012 = vunpack.c.0.s8 %v3011
        %v3013 = vlaneseq
        %v3014 = vshrl.u32 %v3013, 7
        %v3015 = vsub.s32 %v3012, %v3014
        %v3016 = vrot.slane %v3008, %v3015
        %v3018 = vunpack.c.l.s4 1934713408
        %v3019 = vunpack.c.0.s8 %v3018
        %v3020 = vlaneseq
        %v3021 = vshrl.u32 %v3020, 7
        %v3022 = vsub.s32 %v3019, %v3021
        %v3023 = vrot.slane %v3009, %v3022
        %v3024 = vcombine.high %v3000, 0.0
        %v3025 = vcombine.high %v3007, 0.0
        %v3026 = vcombine.high %v3016, 0.0
        %v3027 = vcombine.high %v3023, 0.0
        %v3028 = vcombine.low %v3000, %v3007
        %v3030 = vunpack.c.l.s4 1983009808
        %v3031 = vunpack.c.0.s8 %v3030
        %v3032 = vlaneseq
        %v3033 = vshrl.u32 %v3032, 7
        %v3034 = vsub.s32 %v3031, %v3033
        %v3035 = vrot.slane %v3028, %v3034
        %v3036 = vcombine.low %v3024, %v3025
        %v3038 = vunpack.c.l.s4 1983009808
        %v3039 = vunpack.c.0.s8 %v3038
        %v3040 = vlaneseq
        %v3041 = vshrl.u32 %v3040, 7
        %v3042 = vsub.s32 %v3039, %v3041
        %v3043 = vrot.slane %v3036, %v3042
        %v3044 = vcombine.low %v3016, %v3023
        %v3046 = vunpack.c.l.s4 1983009808
        %v3047 = vunpack.c.0.s8 %v3046
        %v3048 = vlaneseq
        %v3049 = vshrl.u32 %v3048, 7
        %v3050 = vsub.s32 %v3047, %v3049
        %v3051 = vrot.slane %v3044, %v3050
        %v3052 = vcombine.low %v3026, %v3027
        %v3054 = vunpack.c.l.s4 1983009808
        %v3055 = vunpack.c.0.s8 %v3054
        %v3056 = vlaneseq
        %v3057 = vshrl.u32 %v3056, 7
        %v3058 = vsub.s32 %v3055, %v3057
        %v3059 = vrot.slane %v3052, %v3058
        %v3060 = vcombine.low %v3035, %v3043
        %v3061 = vcombine.high %v3035, %v3043
        %v3063 = vunpack.c.l.s4 1934713408
        %v3064 = vunpack.c.0.s8 %v3063
        %v3065 = vlaneseq
        %v3066 = vshrl.u32 %v3065, 7
        %v3067 = vsub.s32 %v3064, %v3066
        %v3068 = vrot.slane %v3060, %v3067
        %v3070 = vunpack.c.l.s4 1934713408
        %v3071 = vunpack.c.0.s8 %v3070
        %v3072 = vlaneseq
        %v3073 = vshrl.u32 %v3072, 7
        %v3074 = vsub.s32 %v3071, %v3073
        %v3075 = vrot.slane %v3061, %v3074
        %v3076 = vcombine.low %v3051, %v3059
        %v3077 = vcombine.high %v3051, %v3059
        %v3079 = vunpack.c.l.s4 1934713408
        %v3080 = vunpack.c.0.s8 %v3079
        %v3081 = vlaneseq
        %v3082 = vshrl.u32 %v3081, 7
        %v3083 = vsub.s32 %v3080, %v3082
        %v3084 = vrot.slane %v3076, %v3083
        %v3086 = vunpack.c.l.s4 1934713408
        %v3087 = vunpack.c.0.s8 %v3086
        %v3088 = vlaneseq
        %v3089 = vshrl.u32 %v3088, 7
        %v3090 = vsub.s32 %v3087, %v3089
        %v3091 = vrot.slane %v3077, %v3090
        %v3092 = vcombine.low %v3068, %v3084
        %v3093 = vcombine.high %v3068, %v3084
        %v3094 = vcombine.low %v3075, %v3091
        %v3095 = vcombine.high %v3075, %v3091
        %3097 = vrot.lane.b32.xlu0 %v3093, 8
        %v3098 = vpop.permute.xlu0 %3097
        %3101 = vrot.lane.b32.xlu0 %v3094, 16
        %v3102 = vpop.permute.xlu0 %3101
        %3105 = vrot.lane.b32.xlu0 %v3095, 24
        %v3106 = vpop.permute.xlu0 %3105
        %v3108 = vsel %vm1923, %v3092, %v3098
        %v3109 = vsel %vm2503, %v3108, %v3102
        %v3110 = vsel %vm2505, %v3109, %v3106
        %v3111 = vpack.c.bf16 %v3110, %v2506
        %v3112 = vld [vmem:[%s732] sm:$0xf]
        %v3113 = vld [vmem:[%s732 + $0x4] sm:$0xf]
        %v3114 = vld [vmem:[%s732 + $0x8] sm:$0xf]
        %v3115 = vld [vmem:[%s732 + $0xc] sm:$0xf]
        %v3116 = vld [vmem:[%s740] sm:$0x1]
        %v3118 = vlaneseq
        %v3119 = vshrl.u32 %v3118, 7
        %v3120 = vsub.s32 0, %v3119
        %v3121 = vrot.slane %v3116, %v3120
        %v3127 = vunpack.c.l.b16 %v3112
        %v3128 = vunpack.c.l.b16 %v3113
        %v3129 = vunpack.c.l.b16 %v3114
        %v3130 = vunpack.c.l.b16 %v3115
        %v3131 = vpack.c.b16 %v3128, %v3127
        %v3132 = vpack.c.b16 %v3130, %v3129
        %v3136 = vsel %vm978, %v3111, 0
        %3138 = vmatprep.subr.bf16.mxu0 0
        %3139 = vmatpush1.bf16.msra.mxu0 %v3131
        %3140 = vmatprep.subr.bf16.mxu0 0
        %3141 = vmatpush1.bf16.msra.mxu0 %v3132
        %3142 = vmatprep.subr.bf16.mxu0 0
        %3143 = vmatpush1.bf16.msra.mxu0 0
        %3144 = vmatprep.subr.bf16.mxu0 0
        %3145 = vmatpush1.bf16.msra.mxu0 0
        %3146 = vmatprep.subr.bf16.mxu0 0
        %3147 = vmatpush1.bf16.msra.mxu0 0
        %3148 = vmatprep.subr.bf16.mxu0 0
        %3149 = vmatpush1.bf16.msra.mxu0 0
        %3150 = vmatprep.subr.bf16.mxu0 0
        %3151 = vmatpush1.bf16.msra.mxu0 0
        %3152 = vmatprep.subr.bf16.mxu0 0
        %3153 = vmatpush1.bf16.msra.mxu0 0
        %3154 = vmatprep.subr.bf16.mxu0 0
        %3155 = vmatpush1.bf16.msra.mxu0 0
        %3156 = vmatprep.subr.bf16.mxu0 0
        %3157 = vmatpush1.bf16.msra.mxu0 0
        %3158 = vmatprep.subr.bf16.mxu0 0
        %3159 = vmatpush1.bf16.msra.mxu0 0
        %3160 = vmatprep.subr.bf16.mxu0 0
        %3161 = vmatpush1.bf16.msra.mxu0 0
        %3162 = vmatprep.subr.bf16.mxu0 0
        %3163 = vmatpush1.bf16.msra.mxu0 0
        %3164 = vmatprep.subr.bf16.mxu0 0
        %3165 = vmatpush1.bf16.msra.mxu0 0
        %3166 = vmatprep.subr.bf16.mxu0 0
        %3167 = vmatpush1.bf16.msra.mxu0 0
        %3168 = vmatprep.subr.bf16.mxu0 0
        %3169 = vmatpush1.bf16.msra.mxu0 0
        %3170 = vmatprep.mubr.bf16.mxu0 0
        %3171 = vmatmul.mubr.bf16.gmra.mrb[0].mxu0 %v3136
        %v3172 = vpop.f32.mrb[0].mxu0
        %v3173 = vadd.f32 %v3121, %v3172
        %v3174 = vpop.f32.mrb[0].mxu0
        %v3175 = vpop.f32.mrb[0].mxu0
        %v3176 = vadd.f32 %v3121, %v3175
        %v3177 = vpop.f32.mrb[0].mxu0
        %3178 = vdwg.mxu0
        %v3179 = vadd.f32 %v952, %v3173
        %v3180 = vadd.f32 %v953, %v3176
        %v3181 = vld [vmem:[%s748] sm:$0x1]
        %v3182 = vld [vmem:[%s756] sm:$0x1]
        %v3183 = vsel %vm978, %v3179, 0.0
        %3184 = vadd.xlane.f32.xlu0 %v3183
        %v3185 = vpop.xlane.xlu0 %3184
        %v3186 = vsel %vm978, %v3180, 0.0
        %3187 = vadd.xlane.f32.xlu0 %v3186
        %v3188 = vpop.xlane.xlu0 %3187
        %v3189 = vrcp.pop 32.0
        %v3190 = vmul.f32 %v3185, %v3189
        %v3191 = vmul.f32 %v3188, %v3189
        %v3192 = vsub.f32 %v3179, %v3190
        %v3193 = vsub.f32 %v3180, %v3191
        %v3194 = vmul.f32 %v3192, %v3192
        %v3195 = vmul.f32 %v3193, %v3193
        %v3196 = vsel %vm978, %v3194, 0.0
        %3197 = vadd.xlane.f32.xlu0 %v3196
        %v3198 = vpop.xlane.xlu0 %3197
        %v3199 = vsel %vm978, %v3195, 0.0
        %3200 = vadd.xlane.f32.xlu0 %v3199
        %v3201 = vpop.xlane.xlu0 %3200
        %v3202 = vmul.f32 %v3198, %v3189
        %v3203 = vmul.f32 %v3201, %v3189
        %v3204 = vadd.f32 %v3202, 1e-05
        %v3205 = vadd.f32 %v3203, 1e-05
        %v3206 = vrsqrt.pop %v3204
        %v3207 = vrsqrt.pop %v3205
        %v3208 = vmul.f32 %v3192, %v3206
        %v3209 = vmul.f32 %v3193, %v3207
        %v3211 = vlaneseq
        %v3212 = vshrl.u32 %v3211, 7
        %v3213 = vsub.s32 0, %v3212
        %v3214 = vrot.slane %v3181, %v3213
        %v3216 = vmul.f32 %v3208, %v3214
        %v3217 = vmul.f32 %v3209, %v3214
        %v3219 = vlaneseq
        %v3220 = vshrl.u32 %v3219, 7
        %v3221 = vsub.s32 0, %v3220
        %v3222 = vrot.slane %v3182, %v3221
        %v3224 = vadd.f32 %v3216, %v3222
        %v3225 = vadd.f32 %v3217, %v3222
        %v3226 = vpack.c.bf16 %v3225, %v3224
        %v3227 = vld [vmem:[%s765] sm:$0xf]
        %v3228 = vld [vmem:[%s765 + $0x4] sm:$0xf]
        %v3229 = vld [vmem:[%s765 + $0x8] sm:$0xf]
        %v3230 = vld [vmem:[%s765 + $0xc] sm:$0xf]
        %v3231 = vld [vmem:[%s773] sm:$0x1]
        %v3233 = vlaneseq
        %v3234 = vshrl.u32 %v3233, 7
        %v3235 = vsub.s32 0, %v3234
        %v3236 = vrot.slane %v3231, %v3235
        %v3242 = vunpack.c.l.b16 %v3227
        %v3243 = vunpack.c.l.b16 %v3228
        %v3244 = vunpack.c.l.b16 %v3229
        %v3245 = vunpack.c.l.b16 %v3230
        %v3246 = vpack.c.b16 %v3243, %v3242
        %v3247 = vpack.c.b16 %v3245, %v3244
        %v3251 = vsel %vm978, %v3226, 0
        %3253 = vmatprep.subr.bf16.mxu0 0
        %3254 = vmatpush1.bf16.msra.mxu0 %v3246
        %3255 = vmatprep.subr.bf16.mxu0 0
        %3256 = vmatpush1.bf16.msra.mxu0 %v3247
        %3257 = vmatprep.subr.bf16.mxu0 0
        %3258 = vmatpush1.bf16.msra.mxu0 0
        %3259 = vmatprep.subr.bf16.mxu0 0
        %3260 = vmatpush1.bf16.msra.mxu0 0
        %3261 = vmatprep.subr.bf16.mxu0 0
        %3262 = vmatpush1.bf16.msra.mxu0 0
        %3263 = vmatprep.subr.bf16.mxu0 0
        %3264 = vmatpush1.bf16.msra.mxu0 0
        %3265 = vmatprep.subr.bf16.mxu0 0
        %3266 = vmatpush1.bf16.msra.mxu0 0
        %3267 = vmatprep.subr.bf16.mxu0 0
        %3268 = vmatpush1.bf16.msra.mxu0 0
        %3269 = vmatprep.subr.bf16.mxu0 0
        %3270 = vmatpush1.bf16.msra.mxu0 0
        %3271 = vmatprep.subr.bf16.mxu0 0
        %3272 = vmatpush1.bf16.msra.mxu0 0
        %3273 = vmatprep.subr.bf16.mxu0 0
        %3274 = vmatpush1.bf16.msra.mxu0 0
        %3275 = vmatprep.subr.bf16.mxu0 0
        %3276 = vmatpush1.bf16.msra.mxu0 0
        %3277 = vmatprep.subr.bf16.mxu0 0
        %3278 = vmatpush1.bf16.msra.mxu0 0
        %3279 = vmatprep.subr.bf16.mxu0 0
        %3280 = vmatpush1.bf16.msra.mxu0 0
        %3281 = vmatprep.subr.bf16.mxu0 0
        %3282 = vmatpush1.bf16.msra.mxu0 0
        %3283 = vmatprep.subr.bf16.mxu0 0
        %3284 = vmatpush1.bf16.msra.mxu0 0
        %3285 = vmatprep.mubr.bf16.mxu0 0
        %3286 = vmatmul.mubr.bf16.gmra.mrb[0].mxu0 %v3251
        %v3287 = vpop.f32.mrb[0].mxu0
        %v3288 = vadd.f32 %v3236, %v3287
        %v3289 = vpop.f32.mrb[0].mxu0
        %v3290 = vpop.f32.mrb[0].mxu0
        %v3291 = vadd.f32 %v3236, %v3290
        %v3292 = vpop.f32.mrb[0].mxu0
        %3293 = vdwg.mxu0
        %v3294 = vmul.f32 %v3288, 0.5
        %v3295 = vmul.f32 %v3291, 0.5
        %v3296 = vmul.f32 %v3288, 0.044715
        %v3297 = vmul.f32 %v3291, 0.044715
        %v3298 = vmul.f32 %v3296, %v3288
        %v3299 = vmul.f32 %v3297, %v3291
        %v3300 = vmul.f32 %v3298, %v3288
        %v3301 = vmul.f32 %v3299, %v3291
        %v3302 = vadd.f32 %v3288, %v3300
        %v3303 = vadd.f32 %v3291, %v3301
        %v3304 = vmul.f32 %v3302, 0.7978846
        %v3305 = vmul.f32 %v3303, 0.7978846
        %v3306 = vtanh.pop %v3304
        %v3307 = vtanh.pop %v3305
        %v3308 = vadd.f32 %v3306, 1.0
        %v3309 = vadd.f32 %v3307, 1.0
        %v3310 = vmul.f32 %v3294, %v3308
        %v3311 = vmul.f32 %v3295, %v3309
        %v3312 = vpack.c.bf16 %v3311, %v3310
        %v3313 = vld [vmem:[%s782] sm:$0xf]
        %v3314 = vld [vmem:[%s782 + $0x4] sm:$0xf]
        %v3315 = vld [vmem:[%s782 + $0x8] sm:$0xf]
        %v3316 = vld [vmem:[%s782 + $0xc] sm:$0xf]
        %v3317 = vld [vmem:[%s782 + $0x10] sm:$0xf]
        %v3318 = vld [vmem:[%s782 + $0x14] sm:$0xf]
        %v3319 = vld [vmem:[%s782 + $0x18] sm:$0xf]
        %v3320 = vld [vmem:[%s782 + $0x1c] sm:$0xf]
        %v3321 = vld [vmem:[%s782 + $0x20] sm:$0xf]
        %v3322 = vld [vmem:[%s782 + $0x24] sm:$0xf]
        %v3323 = vld [vmem:[%s782 + $0x28] sm:$0xf]
        %v3324 = vld [vmem:[%s782 + $0x2c] sm:$0xf]
        %v3325 = vld [vmem:[%s782 + $0x30] sm:$0xf]
        %v3326 = vld [vmem:[%s782 + $0x34] sm:$0xf]
        %v3327 = vld [vmem:[%s782 + $0x38] sm:$0xf]
        %v3328 = vld [vmem:[%s782 + $0x3c] sm:$0xf]
        %v3329 = vld [vmem:[%s790] sm:$0x1]
        %v3331 = vlaneseq
        %v3332 = vshrl.u32 %v3331, 7
        %v3333 = vsub.s32 0, %v3332
        %v3334 = vrot.slane %v3329, %v3333
        %v3352 = vunpack.c.l.b16 %v3313
        %v3353 = vunpack.c.l.b16 %v3314
        %v3354 = vunpack.c.l.b16 %v3315
        %v3355 = vunpack.c.l.b16 %v3316
        %v3356 = vunpack.c.l.b16 %v3317
        %v3357 = vunpack.c.l.b16 %v3318
        %v3358 = vunpack.c.l.b16 %v3319
        %v3359 = vunpack.c.l.b16 %v3320
        %v3360 = vunpack.c.l.b16 %v3321
        %v3361 = vunpack.c.l.b16 %v3322
        %v3362 = vunpack.c.l.b16 %v3323
        %v3363 = vunpack.c.l.b16 %v3324
        %v3364 = vunpack.c.l.b16 %v3325
        %v3365 = vunpack.c.l.b16 %v3326
        %v3366 = vunpack.c.l.b16 %v3327
        %v3367 = vunpack.c.l.b16 %v3328
        %v3368 = vpack.c.b16 %v3353, %v3352
        %v3369 = vpack.c.b16 %v3355, %v3354
        %v3370 = vpack.c.b16 %v3357, %v3356
        %v3371 = vpack.c.b16 %v3359, %v3358
        %v3372 = vpack.c.b16 %v3361, %v3360
        %v3373 = vpack.c.b16 %v3363, %v3362
        %v3374 = vpack.c.b16 %v3365, %v3364
        %v3375 = vpack.c.b16 %v3367, %v3366
        %3384 = vmatprep.subr.bf16.mxu0 0
        %3385 = vmatpush1.bf16.msra.mxu0 %v3368
        %3386 = vmatprep.subr.bf16.mxu0 0
        %3387 = vmatpush1.bf16.msra.mxu0 %v3369
        %3388 = vmatprep.subr.bf16.mxu0 0
        %3389 = vmatpush1.bf16.msra.mxu0 %v3370
        %3390 = vmatprep.subr.bf16.mxu0 0
        %3391 = vmatpush1.bf16.msra.mxu0 %v3371
        %3392 = vmatprep.subr.bf16.mxu0 0
        %3393 = vmatpush1.bf16.msra.mxu0 %v3372
        %3394 = vmatprep.subr.bf16.mxu0 0
        %3395 = vmatpush1.bf16.msra.mxu0 %v3373
        %3396 = vmatprep.subr.bf16.mxu0 0
        %3397 = vmatpush1.bf16.msra.mxu0 %v3374
        %3398 = vmatprep.subr.bf16.mxu0 0
        %3399 = vmatpush1.bf16.msra.mxu0 %v3375
        %3400 = vmatprep.subr.bf16.mxu0 0
        %3401 = vmatpush1.bf16.msra.mxu0 0
        %3402 = vmatprep.subr.bf16.mxu0 0
        %3403 = vmatpush1.bf16.msra.mxu0 0
        %3404 = vmatprep.subr.bf16.mxu0 0
        %3405 = vmatpush1.bf16.msra.mxu0 0
        %3406 = vmatprep.subr.bf16.mxu0 0
        %3407 = vmatpush1.bf16.msra.mxu0 0
        %3408 = vmatprep.subr.bf16.mxu0 0
        %3409 = vmatpush1.bf16.msra.mxu0 0
        %3410 = vmatprep.subr.bf16.mxu0 0
        %3411 = vmatpush1.bf16.msra.mxu0 0
        %3412 = vmatprep.subr.bf16.mxu0 0
        %3413 = vmatpush1.bf16.msra.mxu0 0
        %3414 = vmatprep.subr.bf16.mxu0 0
        %3415 = vmatpush1.bf16.msra.mxu0 0
        %3416 = vmatprep.mubr.bf16.mxu0 0
        %3417 = vmatmul.mubr.bf16.gmra.mrb[0].mxu0 %v3312
        %v3418 = vpop.f32.mrb[0].mxu0
        %v3419 = vadd.f32 %v3334, %v3418
        %v3420 = vpop.f32.mrb[0].mxu0
        %v3421 = vpop.f32.mrb[0].mxu0
        %v3422 = vadd.f32 %v3334, %v3421
        %v3423 = vpop.f32.mrb[0].mxu0
        %3424 = vdwg.mxu0
        %v3425 = vadd.f32 %v3224, %v3419
        %v3426 = vadd.f32 %v3225, %v3422
        %v3427 = vld [vmem:[%s798] sm:$0x1]
        %v3428 = vld [vmem:[%s806] sm:$0x1]
        %v3429 = vsel %vm978, %v3425, 0.0
        %3430 = vadd.xlane.f32.xlu0 %v3429
        %v3431 = vpop.xlane.xlu0 %3430
        %v3432 = vsel %vm978, %v3426, 0.0
        %3433 = vadd.xlane.f32.xlu0 %v3432
        %v3434 = vpop.xlane.xlu0 %3433
        %v3435 = vmul.f32 %v3431, %v3189
        %v3436 = vmul.f32 %v3434, %v3189
        %v3437 = vsub.f32 %v3425, %v3435
        %v3438 = vsub.f32 %v3426, %v3436
        %v3439 = vmul.f32 %v3437, %v3437
        %v3440 = vmul.f32 %v3438, %v3438
        %v3441 = vsel %vm978, %v3439, 0.0
        %3442 = vadd.xlane.f32.xlu0 %v3441
        %v3443 = vpop.xlane.xlu0 %3442
        %v3444 = vsel %vm978, %v3440, 0.0
        %3445 = vadd.xlane.f32.xlu0 %v3444
        %v3446 = vpop.xlane.xlu0 %3445
        %v3447 = vmul.f32 %v3443, %v3189
        %v3448 = vmul.f32 %v3446, %v3189
        %v3449 = vadd.f32 %v3447, 1e-05
        %v3450 = vadd.f32 %v3448, 1e-05
        %v3451 = vrsqrt.pop %v3449
        %v3452 = vrsqrt.pop %v3450
        %v3453 = vmul.f32 %v3437, %v3451
        %v3454 = vmul.f32 %v3438, %v3452
        %v3456 = vlaneseq
        %v3457 = vshrl.u32 %v3456, 7
        %v3458 = vsub.s32 0, %v3457
        %v3459 = vrot.slane %v3427, %v3458
        %v3461 = vmul.f32 %v3453, %v3459
        %v3462 = vmul.f32 %v3454, %v3459
        %v3464 = vlaneseq
        %v3465 = vshrl.u32 %v3464, 7
        %v3466 = vsub.s32 0, %v3465
        %v3467 = vrot.slane %v3428, %v3466
        %v3469 = vadd.f32 %v3461, %v3467
        %v3470 = vadd.f32 %v3462, %v3467
        %3471 = vst.msk [vmem:[#allocation21] sm:$0xff] %vm978, %v3469
        %3472 = vst.msk [vmem:[#allocation21 + $0x8] sm:$0xff] %vm978, %v3470
        // Predicated region
        $region137: #{tpu_custom_call.1} parent=75 // pred_check
          %p3473 = pneg %p422
        $region138: #{tpu_custom_call.1} parent=75 // pred_check_branch
          %3475 = sbr.rel (%p3473) target = $region140
        $region139: #{tpu_custom_call.1} parent=75 // pred_region
          %s3476 = smul.u32 2, %s32
          %s3478 = ssub.s32 256, 256
          %3479 = vsyncadd [#allocation6], %s3478
          %s3480 = smul.addr %s3476, 128
          %s3481 = scalar_lea.hbm %s14, %s3480
          %s3482 = sshll.u32 [#allocation21], 4
          %s3483 = int_to_ptr.vmem [resolvable:$true] %s3482
          %3488 = dma.vmem_to_hbm [thread:$0]  %s3483, 256, %s3481, [#allocation6], 128, 128, 8
        $region140: #{tpu_custom_call.1} parent=75 // pred_fallthru
          _
        // Predicated region
        $region141: #{tpu_custom_call.1} parent=75 // pred_check
          %p3489 = pneg %p422
        $region142: #{tpu_custom_call.1} parent=75 // pred_check_branch
          %3491 = sbr.rel (%p3489) target = $region144
        $region143: #{tpu_custom_call.1} parent=75 // pred_region
          %3492 = dma.done [#allocation6], 256
        $region144: #{tpu_custom_call.1} parent=75 // pred_fallthru
          _
      $region76: #{tpu_custom_call.1} parent=5 // pred_fallthru
        _
      %p3493 = scmp.le.s32.totalorder 2, %s23
      // Predicated region
      $region145: #{tpu_custom_call.1} parent=5 // pred_check
        %p3494 = pneg %p3493
      $region146: #{tpu_custom_call.1} parent=5 // pred_check_branch
        %3496 = sbr.rel (%p3494) target = $region148
      $region147: #{tpu_custom_call.1} parent=5 // pred_region
        %s3497 = ssub.s32 %s23, 2
      $region148: #{tpu_custom_call.1} parent=5 // pred_fallthru
        _
    $region6: #{tpu_custom_call.1} parent=1 // loop_footer
      %s27 = sadd.s32 1, %s23
    $region7: #{tpu_custom_call.1} parent=1 // loop_footer_branch
      %22 = sbr.rel target = $region3
    $region8: #{tpu_custom_call.1} parent=1 // loop_exit
      _
    %3498 = vsyncpa [#allocation5], 1
    %s3499 = scalar_lea.sflag [#allocation5], 1
    %3500 = vsyncpa %s3499, 1
    %3501 = vsyncpa [#allocation8], 1
    %3502 = vsyncpa [#allocation6], 1
    %s3503 = scalar_lea.sflag [#allocation6], 1
    %3504 = vsyncpa %s3503, 1

</llo_original>
